<compile_context>
chip_gen: v7x
topology: tpu7x:2x2x1
jax: 0.10.0
libtpu: 0.0.40
codegen_flags: <defaults>
</compile_context>

<pallas_src>
import math
import jax
import jax.numpy as jnp
from jax import lax
from jax.experimental import pallas as pl
from jax.experimental.pallas import tpu as pltpu

# ----------------------------- model config (small, synthetic) -----------------------------
BATCH = 2
SEQ = 8
HIDDEN = 32
NUM_HEADS = 8                 # BartForNMTConfig.foreign_encoder_num_heads default
HEAD_DIM = HIDDEN // NUM_HEADS
INTERMEDIATE = 64
NUM_LAYERS = 2                # small stand-in for foreign_encoder_num_layers=6
SRC_VOCAB = 50
MAX_POS = 64
PRE_NORM = True
LN_EPS = 1e-5
EMB_SCALE = math.sqrt(HIDDEN)
ROWS = BATCH * SEQ


# ----------------------------- in-kernel helpers -----------------------------
def _layer_norm(x, g, b):
    # x: (R, H), g/b: (1, H)
    mu = jnp.mean(x, axis=-1, keepdims=True)
    var = jnp.mean((x - mu) ** 2, axis=-1, keepdims=True)
    return (x - mu) * lax.rsqrt(var + LN_EPS) * g + b


# ----------------------------- fused encoder kernel -----------------------------
# grid = (NUM_LAYERS,), "arbitrary".  x lives in VMEM scratch across grid steps.
def fused_encoder_kernel(tok_ref, pos_ref,
                         wqkv_ref, bqkv_ref, wo_ref, bo_ref,
                         ln1_g_ref, ln1_b_ref,
                         w1_ref, b1_ref, w2_ref, b2_ref,
                         ln2_g_ref, ln2_b_ref,
                         fin_g_ref, fin_b_ref,
                         out_ref, x_scratch):
    l = pl.program_id(0)

    # ---- fused embedding sum (only on the first layer step) ----
    @pl.when(l == 0)
    def _():
        tok = tok_ref[...] * EMB_SCALE                              # (B, S, H) f32
        pos = pos_ref[...]                                          # (S, H)    f32
        x_scratch[...] = (tok + pos[None, :, :]).reshape(ROWS, HIDDEN)

    x = x_scratch[...]                                              # (R, H) f32 residual stream

    # ---- self-attention sublayer (pre-norm residual) ----
    h = _layer_norm(x, ln1_g_ref[0], ln1_b_ref[0])
    # fused QKV projection; 1/sqrt(HEAD_DIM) score scale already folded into the Q columns
    qkv = jnp.dot(h.astype(jnp.bfloat16), wqkv_ref[0],
                  preferred_element_type=jnp.float32) + bqkv_ref[0]  # (R, 3H)
    q3 = qkv[:, 0 * HIDDEN:1 * HIDDEN].reshape(BATCH, SEQ, HIDDEN)
    k3 = qkv[:, 1 * HIDDEN:2 * HIDDEN].reshape(BATCH, SEQ, HIDDEN)
    v3 = qkv[:, 2 * HIDDEN:3 * HIDDEN].reshape(BATCH, SEQ, HIDDEN)

    # Per-head static loop, batched over B with the supported leading-batch einsum pattern,
    # then ONE output projection after concatenating head outputs.
    # TODO(synk): attn_mask is accepted by the PyTorch module but is None here; masking not wired in.
    head_outs = []
    for hi in range(NUM_HEADS):
        sl = slice(hi * HEAD_DIM, (hi + 1) * HEAD_DIM)
        s = jnp.einsum('bqd,bkd->bqk', q3[:, :, sl], k3[:, :, sl],
                       preferred_element_type=jnp.float32)          # (B, S, S)
        s = s - jnp.max(s, axis=-1, keepdims=True)
        p = jnp.exp(s)
        p = p * pl.reciprocal(jnp.sum(p, axis=-1, keepdims=True), approx=True)
        head_outs.append(jnp.einsum('bqk,bkd->bqd', p, v3[:, :, sl],
                                    preferred_element_type=jnp.float32))  # (B, S, HD)
    attn = jnp.concatenate(head_outs, axis=-1).reshape(ROWS, HIDDEN)      # (R, H)
    attn = jnp.dot(attn.astype(jnp.bfloat16), wo_ref[0],
                   preferred_element_type=jnp.float32) + bo_ref[0]
    x = x + attn                                                    # attn_dropout/dropout: identity (eval)

    # ---- feed-forward sublayer (pre-norm residual) ----
    h2 = _layer_norm(x, ln2_g_ref[0], ln2_b_ref[0])
    ff = jnp.dot(h2.astype(jnp.bfloat16), w1_ref[0],
                 preferred_element_type=jnp.float32) + b1_ref[0]
    ff = jax.nn.gelu(ff, approximate=True)  # TODO(synk): use exact erf GELU if config.activation is exact 'gelu'
    ff = jnp.dot(ff.astype(jnp.bfloat16), w2_ref[0],
                 preferred_element_type=jnp.float32) + b2_ref[0]
    x = x + ff

    x_scratch[...] = x

    # ---- final LayerNorm + single HBM writeback on the last layer step ----
    @pl.when(l == pl.num_programs(0) - 1)
    def _():
        y = _layer_norm(x, fin_g_ref[...], fin_b_ref[...])
        out_ref[...] = y.reshape(BATCH, SEQ, HIDDEN).astype(out_ref.dtype)


# ----------------------------- wrapper -----------------------------
def _stacked_spec(p):
    # per-layer stacked param: leading L axis, one layer slice per grid step
    nd = p.ndim
    return pl.BlockSpec((1,) + p.shape[1:], lambda l, nd=nd: (l,) + (0,) * (nd - 1))


def _full_spec(p):
    # whole-array block, same block on every grid step (stays VMEM-resident)
    nd = p.ndim
    return pl.BlockSpec(p.shape, lambda l, nd=nd: (0,) * nd)


def bart_foreign_encoder_forward(token_ids, params):
    B, S = token_ids.shape
    # Embedding gather: plain-JAX glue (scale + pos add are fused into the kernel).
    tok = jnp.take(params["tok_emb"], token_ids, axis=0)            # (B, S, H)
    pos = params["pos_emb"][:S]                                     # (S, H)
    # TODO(synk): HF BART's learned positions use a +2 offset; this module's PositionEmbeddings is
    # assumed to index positions 0..S-1 directly.

    layer_names = ["wqkv", "bqkv", "wo", "bo",
                   "ln1_g", "ln1_b", "w1", "b1", "w2", "b2", "ln2_g", "ln2_b"]
    layer_params = [params[n] for n in layer_names]

    in_specs = ([_full_spec(tok), _full_spec(pos)]
                + [_stacked_spec(p) for p in layer_params]
                + [_full_spec(params["final_ln_g"]), _full_spec(params["final_ln_b"])])

    return pl.pallas_call(
        fused_encoder_kernel,
        out_shape=jax.ShapeDtypeStruct((B, S, HIDDEN), jnp.float32),
        grid=(NUM_LAYERS,),
        in_specs=in_specs,
        out_specs=pl.BlockSpec((B, S, HIDDEN), lambda l: (0, 0, 0)),
        scratch_shapes=[pltpu.VMEM((B * S, HIDDEN), jnp.float32)],
        compiler_params=pltpu.CompilerParams(dimension_semantics=("arbitrary",)),
        # NOTE: at real BART sizes, add a "parallel" batch/seq grid axis (v7x 2-TC) and K-tile the
        # FFN weights / keep them bf16 so whole-weight blocks stay inside the VMEM budget.
    )(tok, pos, *layer_params, params["final_ln_g"], params["final_ln_b"])


# ----------------------------- parameter init (deterministic, synthetic) -----------------------------
def init_params(key):
    def nrm(k, shape, std=0.02):
        return jax.random.normal(k, shape, dtype=jnp.float32) * std

    keys = jax.random.split(key, 8)
    L, H, I = NUM_LAYERS, HIDDEN, INTERMEDIATE
    attn_scale = 1.0 / math.sqrt(HEAD_DIM)   # folded into the Q projection — same forward math

    # per-layer q/k/v projections (as in the PyTorch module), then fused into one (H, 3H) matmul
    wq = nrm(keys[2], (L, H, H))
    wk = nrm(keys[3], (L, H, H))
    wv = nrm(keys[4], (L, H, H))
    bq = jnp.zeros((L, 1, H), jnp.float32)
    bk = jnp.zeros((L, 1, H), jnp.float32)
    bv = jnp.zeros((L, 1, H), jnp.float32)
    wqkv = jnp.concatenate([wq * attn_scale, wk, wv], axis=-1).astype(jnp.bfloat16)   # (L, H, 3H)
    bqkv = jnp.concatenate([bq * attn_scale, bk, bv], axis=-1)                        # (L, 1, 3H)

    params = {
        "tok_emb": nrm(keys[0], (SRC_VOCAB, H)),
        "pos_emb": nrm(keys[1], (MAX_POS, H)),
        "wqkv": wqkv,
        "bqkv": bqkv,
        "wo": nrm(keys[5], (L, H, H)).astype(jnp.bfloat16),
        "bo": jnp.zeros((L, 1, H), jnp.float32),
        "ln1_g": jnp.ones((L, 1, H), jnp.float32),
        "ln1_b": jnp.zeros((L, 1, H), jnp.float32),
        "w1": nrm(keys[6], (L, H, I)).astype(jnp.bfloat16),
        "b1": jnp.zeros((L, 1, I), jnp.float32),
        "w2": nrm(keys[7], (L, I, H)).astype(jnp.bfloat16),
        "b2": jnp.zeros((L, 1, H), jnp.float32),
        "ln2_g": jnp.ones((L, 1, H), jnp.float32),
        "ln2_b": jnp.zeros((L, 1, H), jnp.float32),
        "final_ln_g": jnp.ones((1, H), jnp.float32),
        "final_ln_b": jnp.zeros((1, H), jnp.float32),
    }
    return params


if __name__ == "__main__":
    key = jax.random.PRNGKey(0)
    k_param, k_ids = jax.random.split(key)
    params = init_params(k_param)
    token_ids = jax.random.randint(k_ids, (BATCH, SEQ), 0, SRC_VOCAB, dtype=jnp.int32)

    fwd = jax.jit(bart_foreign_encoder_forward)
    out = jax.block_until_ready(fwd(token_ids, params))
    assert out.shape == (BATCH, SEQ, HIDDEN), out.shape
    assert bool(jnp.all(jnp.isfinite(out)))
    print("KERNEL_OK")
</pallas_src>

<mosaic_0001>
module attributes {stable_mosaic.version = 11 : i64} {
  func.func @fused_encoder_kernel(%arg0: i32, %arg1: memref<2x8x32xf32, #tpu.memory_space<vmem>>, %arg2: memref<8x32xf32, #tpu.memory_space<vmem>>, %arg3: memref<1x32x96xbf16, #tpu.memory_space<vmem>>, %arg4: memref<1x1x96xf32, #tpu.memory_space<vmem>>, %arg5: memref<1x32x32xbf16, #tpu.memory_space<vmem>>, %arg6: memref<1x1x32xf32, #tpu.memory_space<vmem>>, %arg7: memref<1x1x32xf32, #tpu.memory_space<vmem>>, %arg8: memref<1x1x32xf32, #tpu.memory_space<vmem>>, %arg9: memref<1x32x64xbf16, #tpu.memory_space<vmem>>, %arg10: memref<1x1x64xf32, #tpu.memory_space<vmem>>, %arg11: memref<1x64x32xbf16, #tpu.memory_space<vmem>>, %arg12: memref<1x1x32xf32, #tpu.memory_space<vmem>>, %arg13: memref<1x1x32xf32, #tpu.memory_space<vmem>>, %arg14: memref<1x1x32xf32, #tpu.memory_space<vmem>>, %arg15: memref<1x32xf32, #tpu.memory_space<vmem>>, %arg16: memref<1x32xf32, #tpu.memory_space<vmem>>, %arg17: memref<2x8x32xf32, #tpu.memory_space<vmem>>, %arg18: memref<16x32xf32, #tpu.memory_space<vmem>>) attributes {dimension_semantics = [#tpu.dimension_semantics<arbitrary>], iteration_bounds = array<i64: 2>, scalar_prefetch = 0 : i64, scratch_operands = 1 : i64, tpu.core_type = #tpu.core_type<tc>, window_params = [{pipeline_mode = #tpu.pipeline_mode<synchronous>, transform_indices = @transform_0, window_bounds = array<i64: 2, 8, 32>}, {pipeline_mode = #tpu.pipeline_mode<synchronous>, transform_indices = @transform_1, window_bounds = array<i64: 8, 32>}, {transform_indices = @transform_2, window_bounds = array<i64: 1, 32, 96>}, {transform_indices = @transform_3, window_bounds = array<i64: 1, 1, 96>}, {transform_indices = @transform_4, window_bounds = array<i64: 1, 32, 32>}, {transform_indices = @transform_5, window_bounds = array<i64: 1, 1, 32>}, {transform_indices = @transform_6, window_bounds = array<i64: 1, 1, 32>}, {transform_indices = @transform_7, window_bounds = array<i64: 1, 1, 32>}, {transform_indices = @transform_8, window_bounds = array<i64: 1, 32, 64>}, {transform_indices = @transform_9, window_bounds = array<i64: 1, 1, 64>}, {transform_indices = @transform_10, window_bounds = array<i64: 1, 64, 32>}, {transform_indices = @transform_11, window_bounds = array<i64: 1, 1, 32>}, {transform_indices = @transform_12, window_bounds = array<i64: 1, 1, 32>}, {transform_indices = @transform_13, window_bounds = array<i64: 1, 1, 32>}, {pipeline_mode = #tpu.pipeline_mode<synchronous>, transform_indices = @transform_14, window_bounds = array<i64: 1, 32>}, {pipeline_mode = #tpu.pipeline_mode<synchronous>, transform_indices = @transform_15, window_bounds = array<i64: 1, 32>}, {pipeline_mode = #tpu.pipeline_mode<synchronous>, transform_indices = @transform_16, window_bounds = array<i64: 2, 8, 32>}]} {
    %c0_i32 = arith.constant 0 : i32
    %0 = arith.cmpi eq, %arg0, %c0_i32 : i32
    %1 = arith.extui %0 : i1 to i32
    %c0_i32_0 = arith.constant 0 : i32
    %2 = arith.cmpi ne, %1, %c0_i32_0 : i32
    scf.if %2 {
      %c0_90 = arith.constant 0 : index
      %c0_91 = arith.constant 0 : index
      %c0_92 = arith.constant 0 : index
      %235 = vector.load %arg1[%c0_90, %c0_91, %c0_92] : memref<2x8x32xf32, #tpu.memory_space<vmem>>, vector<2x8x32xf32>
      %cst_93 = arith.constant 5.65685415 : f32
      %236 = vector.broadcast %cst_93 : f32 to vector<2x8x32xf32>
      %237 = arith.mulf %235, %236 : vector<2x8x32xf32>
      %c0_94 = arith.constant 0 : index
      %c0_95 = arith.constant 0 : index
      %238 = vector.load %arg2[%c0_94, %c0_95] : memref<8x32xf32, #tpu.memory_space<vmem>>, vector<8x32xf32>
      %239 = vector.shape_cast %238 : vector<8x32xf32> to vector<1x8x32xf32>
      %240 = vector.broadcast %239 : vector<1x8x32xf32> to vector<2x8x32xf32>
      %241 = arith.addf %237, %240 : vector<2x8x32xf32>
      %242 = vector.shape_cast %241 : vector<2x8x32xf32> to vector<16x32xf32>
      %c0_96 = arith.constant 0 : index
      %c0_97 = arith.constant 0 : index
      %243 = vector.load %arg18[%c0_96, %c0_97] : memref<16x32xf32, #tpu.memory_space<vmem>>, vector<16x32xf32>
      tpu.vector_store %arg18[%c0_96, %c0_97], %242 {strides = array<i32>} : memref<16x32xf32, #tpu.memory_space<vmem>>, vector<16x32xf32>,
    } else {
    }
    %c0 = arith.constant 0 : index
    %c0_1 = arith.constant 0 : index
    %3 = vector.load %arg18[%c0, %c0_1] : memref<16x32xf32, #tpu.memory_space<vmem>>, vector<16x32xf32>
    %c0_2 = arith.constant 0 : index
    %c0_3 = arith.constant 0 : index
    %c0_4 = arith.constant 0 : index
    %4 = vector.load %arg7[%c0_2, %c0_3, %c0_4] : memref<1x1x32xf32, #tpu.memory_space<vmem>>, vector<1x1x32xf32>
    %5 = vector.shape_cast %4 : vector<1x1x32xf32> to vector<1x32xf32>
    %c0_5 = arith.constant 0 : index
    %c0_6 = arith.constant 0 : index
    %c0_7 = arith.constant 0 : index
    %6 = vector.load %arg8[%c0_5, %c0_6, %c0_7] : memref<1x1x32xf32, #tpu.memory_space<vmem>>, vector<1x1x32xf32>
    %7 = vector.shape_cast %6 : vector<1x1x32xf32> to vector<1x32xf32>
    %cst = arith.constant dense<0.000000e+00> : vector<16xf32>
    %8 = vector.multi_reduction <add>, %3, %cst [1] : vector<16x32xf32> to vector<16xf32>
    %9 = vector.shape_cast %8 : vector<16xf32> to vector<16x1xf32>
    %cst_8 = arith.constant 3.200000e+01 : f32
    %10 = vector.broadcast %cst_8 : f32 to vector<16x1xf32>
    %11 = arith.divf %9, %10 : vector<16x1xf32>
    %12 = vector.broadcast %11 : vector<16x1xf32> to vector<16x32xf32>
    %13 = arith.subf %3, %12 : vector<16x32xf32>
    %14 = arith.mulf %13, %13 : vector<16x32xf32>
    %cst_9 = arith.constant dense<0.000000e+00> : vector<16xf32>
    %15 = vector.multi_reduction <add>, %14, %cst_9 [1] : vector<16x32xf32> to vector<16xf32>
    %16 = vector.shape_cast %15 : vector<16xf32> to vector<16x1xf32>
    %cst_10 = arith.constant 3.200000e+01 : f32
    %17 = vector.broadcast %cst_10 : f32 to vector<16x1xf32>
    %18 = arith.divf %16, %17 : vector<16x1xf32>
    %19 = vector.broadcast %11 : vector<16x1xf32> to vector<16x32xf32>
    %20 = arith.subf %3, %19 : vector<16x32xf32>
    %cst_11 = arith.constant 9.99999974E-6 : f32
    %21 = vector.broadcast %cst_11 : f32 to vector<16x1xf32>
    %22 = arith.addf %18, %21 : vector<16x1xf32>
    %23 = math.rsqrt %22 : vector<16x1xf32>
    %24 = vector.broadcast %23 : vector<16x1xf32> to vector<16x32xf32>
    %25 = arith.mulf %20, %24 : vector<16x32xf32>
    %26 = vector.broadcast %5 : vector<1x32xf32> to vector<16x32xf32>
    %27 = arith.mulf %25, %26 : vector<16x32xf32>
    %28 = vector.broadcast %7 : vector<1x32xf32> to vector<16x32xf32>
    %29 = arith.addf %27, %28 : vector<16x32xf32>
    %30 = arith.truncf %29 : vector<16x32xf32> to vector<16x32xbf16>
    %c0_12 = arith.constant 0 : index
    %c0_13 = arith.constant 0 : index
    %c0_14 = arith.constant 0 : index
    %31 = vector.load %arg3[%c0_12, %c0_13, %c0_14] : memref<1x32x96xbf16, #tpu.memory_space<vmem>>, vector<1x32x96xbf16>
    %32 = vector.shape_cast %31 : vector<1x32x96xbf16> to vector<32x96xbf16>
    %cst_15 = arith.constant dense<0.000000e+00> : vector<16x96xf32>
    %33 = tpu.matmul %30, %32, %cst_15 {dimension_numbers = #tpu.dot_dimension_numbers<[1], [0], [0], [1], [0, 0, 1, 1], [], []>} : vector<16x32xbf16>, vector<32x96xbf16>, vector<16x96xf32> -> vector<16x96xf32>
    %c0_16 = arith.constant 0 : index
    %c0_17 = arith.constant 0 : index
    %c0_18 = arith.constant 0 : index
    %34 = vector.load %arg4[%c0_16, %c0_17, %c0_18] : memref<1x1x96xf32, #tpu.memory_space<vmem>>, vector<1x1x96xf32>
    %35 = vector.shape_cast %34 : vector<1x1x96xf32> to vector<1x96xf32>
    %36 = vector.broadcast %35 : vector<1x96xf32> to vector<16x96xf32>
    %37 = arith.addf %33, %36 : vector<16x96xf32>
    %38 = vector.extract_strided_slice %37 {offsets = [0, 0], sizes = [16, 32], strides = [1, 1]} : vector<16x96xf32> to vector<16x32xf32>
    %39 = vector.shape_cast %38 : vector<16x32xf32> to vector<2x8x32xf32>
    %40 = vector.extract_strided_slice %37 {offsets = [0, 32], sizes = [16, 32], strides = [1, 1]} : vector<16x96xf32> to vector<16x32xf32>
    %41 = vector.shape_cast %40 : vector<16x32xf32> to vector<2x8x32xf32>
    %42 = vector.extract_strided_slice %37 {offsets = [0, 64], sizes = [16, 32], strides = [1, 1]} : vector<16x96xf32> to vector<16x32xf32>
    %43 = vector.shape_cast %42 : vector<16x32xf32> to vector<2x8x32xf32>
    %44 = vector.extract_strided_slice %39 {offsets = [0, 0, 0], sizes = [2, 8, 4], strides = [1, 1, 1]} : vector<2x8x32xf32> to vector<2x8x4xf32>
    %45 = vector.extract_strided_slice %41 {offsets = [0, 0, 0], sizes = [2, 8, 4], strides = [1, 1, 1]} : vector<2x8x32xf32> to vector<2x8x4xf32>
    "tpu.trace_start"() <{level = 10 : i32, message = "bqd,bkd->bqk"}> : () -> ()
    %cst_19 = arith.constant dense<0.000000e+00> : vector<2x8x8xf32>
    %46 = tpu.matmul %44, %45, %cst_19 {dimension_numbers = #tpu.dot_dimension_numbers<[2], [2], [1], [1], [0, 0, 0, 1, 1, 1], [0], [0]>} : vector<2x8x4xf32>, vector<2x8x4xf32>, vector<2x8x8xf32> -> vector<2x8x8xf32>
    "tpu.trace_stop"() : () -> ()
    %cst_20 = arith.constant dense<0xFF800000> : vector<2x8xf32>
    %47 = vector.multi_reduction <maximumf>, %46, %cst_20 [2] : vector<2x8x8xf32> to vector<2x8xf32>
    %48 = vector.shape_cast %47 : vector<2x8xf32> to vector<2x8x1xf32>
    %49 = vector.broadcast %48 : vector<2x8x1xf32> to vector<2x8x8xf32>
    %50 = arith.subf %46, %49 : vector<2x8x8xf32>
    %51 = math.exp %50 : vector<2x8x8xf32>
    %cst_21 = arith.constant dense<0.000000e+00> : vector<2x8xf32>
    %52 = vector.multi_reduction <add>, %51, %cst_21 [2] : vector<2x8x8xf32> to vector<2x8xf32>
    %53 = vector.shape_cast %52 : vector<2x8xf32> to vector<2x8x1xf32>
    %54 = tpu.reciprocal %53 {approx = true} : vector<2x8x1xf32> -> vector<2x8x1xf32>
    %55 = vector.broadcast %54 : vector<2x8x1xf32> to vector<2x8x8xf32>
    %56 = arith.mulf %51, %55 : vector<2x8x8xf32>
    %57 = vector.extract_strided_slice %43 {offsets = [0, 0, 0], sizes = [2, 8, 4], strides = [1, 1, 1]} : vector<2x8x32xf32> to vector<2x8x4xf32>
    "tpu.trace_start"() <{level = 10 : i32, message = "bqk,bkd->bqd"}> : () -> ()
    %cst_22 = arith.constant dense<0.000000e+00> : vector<2x8x4xf32>
    %58 = tpu.matmul %56, %57, %cst_22 {dimension_numbers = #tpu.dot_dimension_numbers<[2], [1], [1], [2], [0, 0, 0, 1, 1, 2], [0], [0]>} : vector<2x8x8xf32>, vector<2x8x4xf32>, vector<2x8x4xf32> -> vector<2x8x4xf32>
    "tpu.trace_stop"() : () -> ()
    %59 = vector.extract_strided_slice %39 {offsets = [0, 0, 4], sizes = [2, 8, 4], strides = [1, 1, 1]} : vector<2x8x32xf32> to vector<2x8x4xf32>
    %60 = vector.extract_strided_slice %41 {offsets = [0, 0, 4], sizes = [2, 8, 4], strides = [1, 1, 1]} : vector<2x8x32xf32> to vector<2x8x4xf32>
    "tpu.trace_start"() <{level = 10 : i32, message = "bqd,bkd->bqk"}> : () -> ()
    %cst_23 = arith.constant dense<0.000000e+00> : vector<2x8x8xf32>
    %61 = tpu.matmul %59, %60, %cst_23 {dimension_numbers = #tpu.dot_dimension_numbers<[2], [2], [1], [1], [0, 0, 0, 1, 1, 1], [0], [0]>} : vector<2x8x4xf32>, vector<2x8x4xf32>, vector<2x8x8xf32> -> vector<2x8x8xf32>
    "tpu.trace_stop"() : () -> ()
    %cst_24 = arith.constant dense<0xFF800000> : vector<2x8xf32>
    %62 = vector.multi_reduction <maximumf>, %61, %cst_24 [2] : vector<2x8x8xf32> to vector<2x8xf32>
    %63 = vector.shape_cast %62 : vector<2x8xf32> to vector<2x8x1xf32>
    %64 = vector.broadcast %63 : vector<2x8x1xf32> to vector<2x8x8xf32>
    %65 = arith.subf %61, %64 : vector<2x8x8xf32>
    %66 = math.exp %65 : vector<2x8x8xf32>
    %cst_25 = arith.constant dense<0.000000e+00> : vector<2x8xf32>
    %67 = vector.multi_reduction <add>, %66, %cst_25 [2] : vector<2x8x8xf32> to vector<2x8xf32>
    %68 = vector.shape_cast %67 : vector<2x8xf32> to vector<2x8x1xf32>
    %69 = tpu.reciprocal %68 {approx = true} : vector<2x8x1xf32> -> vector<2x8x1xf32>
    %70 = vector.broadcast %69 : vector<2x8x1xf32> to vector<2x8x8xf32>
    %71 = arith.mulf %66, %70 : vector<2x8x8xf32>
    %72 = vector.extract_strided_slice %43 {offsets = [0, 0, 4], sizes = [2, 8, 4], strides = [1, 1, 1]} : vector<2x8x32xf32> to vector<2x8x4xf32>
    "tpu.trace_start"() <{level = 10 : i32, message = "bqk,bkd->bqd"}> : () -> ()
    %cst_26 = arith.constant dense<0.000000e+00> : vector<2x8x4xf32>
    %73 = tpu.matmul %71, %72, %cst_26 {dimension_numbers = #tpu.dot_dimension_numbers<[2], [1], [1], [2], [0, 0, 0, 1, 1, 2], [0], [0]>} : vector<2x8x8xf32>, vector<2x8x4xf32>, vector<2x8x4xf32> -> vector<2x8x4xf32>
    "tpu.trace_stop"() : () -> ()
    %74 = vector.extract_strided_slice %39 {offsets = [0, 0, 8], sizes = [2, 8, 4], strides = [1, 1, 1]} : vector<2x8x32xf32> to vector<2x8x4xf32>
    %75 = vector.extract_strided_slice %41 {offsets = [0, 0, 8], sizes = [2, 8, 4], strides = [1, 1, 1]} : vector<2x8x32xf32> to vector<2x8x4xf32>
    "tpu.trace_start"() <{level = 10 : i32, message = "bqd,bkd->bqk"}> : () -> ()
    %cst_27 = arith.constant dense<0.000000e+00> : vector<2x8x8xf32>
    %76 = tpu.matmul %74, %75, %cst_27 {dimension_numbers = #tpu.dot_dimension_numbers<[2], [2], [1], [1], [0, 0, 0, 1, 1, 1], [0], [0]>} : vector<2x8x4xf32>, vector<2x8x4xf32>, vector<2x8x8xf32> -> vector<2x8x8xf32>
    "tpu.trace_stop"() : () -> ()
    %cst_28 = arith.constant dense<0xFF800000> : vector<2x8xf32>
    %77 = vector.multi_reduction <maximumf>, %76, %cst_28 [2] : vector<2x8x8xf32> to vector<2x8xf32>
    %78 = vector.shape_cast %77 : vector<2x8xf32> to vector<2x8x1xf32>
    %79 = vector.broadcast %78 : vector<2x8x1xf32> to vector<2x8x8xf32>
    %80 = arith.subf %76, %79 : vector<2x8x8xf32>
    %81 = math.exp %80 : vector<2x8x8xf32>
    %cst_29 = arith.constant dense<0.000000e+00> : vector<2x8xf32>
    %82 = vector.multi_reduction <add>, %81, %cst_29 [2] : vector<2x8x8xf32> to vector<2x8xf32>
    %83 = vector.shape_cast %82 : vector<2x8xf32> to vector<2x8x1xf32>
    %84 = tpu.reciprocal %83 {approx = true} : vector<2x8x1xf32> -> vector<2x8x1xf32>
    %85 = vector.broadcast %84 : vector<2x8x1xf32> to vector<2x8x8xf32>
    %86 = arith.mulf %81, %85 : vector<2x8x8xf32>
    %87 = vector.extract_strided_slice %43 {offsets = [0, 0, 8], sizes = [2, 8, 4], strides = [1, 1, 1]} : vector<2x8x32xf32> to vector<2x8x4xf32>
    "tpu.trace_start"() <{level = 10 : i32, message = "bqk,bkd->bqd"}> : () -> ()
    %cst_30 = arith.constant dense<0.000000e+00> : vector<2x8x4xf32>
    %88 = tpu.matmul %86, %87, %cst_30 {dimension_numbers = #tpu.dot_dimension_numbers<[2], [1], [1], [2], [0, 0, 0, 1, 1, 2], [0], [0]>} : vector<2x8x8xf32>, vector<2x8x4xf32>, vector<2x8x4xf32> -> vector<2x8x4xf32>
    "tpu.trace_stop"() : () -> ()
    %89 = vector.extract_strided_slice %39 {offsets = [0, 0, 12], sizes = [2, 8, 4], strides = [1, 1, 1]} : vector<2x8x32xf32> to vector<2x8x4xf32>
    %90 = vector.extract_strided_slice %41 {offsets = [0, 0, 12], sizes = [2, 8, 4], strides = [1, 1, 1]} : vector<2x8x32xf32> to vector<2x8x4xf32>
    "tpu.trace_start"() <{level = 10 : i32, message = "bqd,bkd->bqk"}> : () -> ()
    %cst_31 = arith.constant dense<0.000000e+00> : vector<2x8x8xf32>
    %91 = tpu.matmul %89, %90, %cst_31 {dimension_numbers = #tpu.dot_dimension_numbers<[2], [2], [1], [1], [0, 0, 0, 1, 1, 1], [0], [0]>} : vector<2x8x4xf32>, vector<2x8x4xf32>, vector<2x8x8xf32> -> vector<2x8x8xf32>
    "tpu.trace_stop"() : () -> ()
    %cst_32 = arith.constant dense<0xFF800000> : vector<2x8xf32>
    %92 = vector.multi_reduction <maximumf>, %91, %cst_32 [2] : vector<2x8x8xf32> to vector<2x8xf32>
    %93 = vector.shape_cast %92 : vector<2x8xf32> to vector<2x8x1xf32>
    %94 = vector.broadcast %93 : vector<2x8x1xf32> to vector<2x8x8xf32>
    %95 = arith.subf %91, %94 : vector<2x8x8xf32>
    %96 = math.exp %95 : vector<2x8x8xf32>
    %cst_33 = arith.constant dense<0.000000e+00> : vector<2x8xf32>
    %97 = vector.multi_reduction <add>, %96, %cst_33 [2] : vector<2x8x8xf32> to vector<2x8xf32>
    %98 = vector.shape_cast %97 : vector<2x8xf32> to vector<2x8x1xf32>
    %99 = tpu.reciprocal %98 {approx = true} : vector<2x8x1xf32> -> vector<2x8x1xf32>
    %100 = vector.broadcast %99 : vector<2x8x1xf32> to vector<2x8x8xf32>
    %101 = arith.mulf %96, %100 : vector<2x8x8xf32>
    %102 = vector.extract_strided_slice %43 {offsets = [0, 0, 12], sizes = [2, 8, 4], strides = [1, 1, 1]} : vector<2x8x32xf32> to vector<2x8x4xf32>
    "tpu.trace_start"() <{level = 10 : i32, message = "bqk,bkd->bqd"}> : () -> ()
    %cst_34 = arith.constant dense<0.000000e+00> : vector<2x8x4xf32>
    %103 = tpu.matmul %101, %102, %cst_34 {dimension_numbers = #tpu.dot_dimension_numbers<[2], [1], [1], [2], [0, 0, 0, 1, 1, 2], [0], [0]>} : vector<2x8x8xf32>, vector<2x8x4xf32>, vector<2x8x4xf32> -> vector<2x8x4xf32>
    "tpu.trace_stop"() : () -> ()
    %104 = vector.extract_strided_slice %39 {offsets = [0, 0, 16], sizes = [2, 8, 4], strides = [1, 1, 1]} : vector<2x8x32xf32> to vector<2x8x4xf32>
    %105 = vector.extract_strided_slice %41 {offsets = [0, 0, 16], sizes = [2, 8, 4], strides = [1, 1, 1]} : vector<2x8x32xf32> to vector<2x8x4xf32>
    "tpu.trace_start"() <{level = 10 : i32, message = "bqd,bkd->bqk"}> : () -> ()
    %cst_35 = arith.constant dense<0.000000e+00> : vector<2x8x8xf32>
    %106 = tpu.matmul %104, %105, %cst_35 {dimension_numbers = #tpu.dot_dimension_numbers<[2], [2], [1], [1], [0, 0, 0, 1, 1, 1], [0], [0]>} : vector<2x8x4xf32>, vector<2x8x4xf32>, vector<2x8x8xf32> -> vector<2x8x8xf32>
    "tpu.trace_stop"() : () -> ()
    %cst_36 = arith.constant dense<0xFF800000> : vector<2x8xf32>
    %107 = vector.multi_reduction <maximumf>, %106, %cst_36 [2] : vector<2x8x8xf32> to vector<2x8xf32>
    %108 = vector.shape_cast %107 : vector<2x8xf32> to vector<2x8x1xf32>
    %109 = vector.broadcast %108 : vector<2x8x1xf32> to vector<2x8x8xf32>
    %110 = arith.subf %106, %109 : vector<2x8x8xf32>
    %111 = math.exp %110 : vector<2x8x8xf32>
    %cst_37 = arith.constant dense<0.000000e+00> : vector<2x8xf32>
    %112 = vector.multi_reduction <add>, %111, %cst_37 [2] : vector<2x8x8xf32> to vector<2x8xf32>
    %113 = vector.shape_cast %112 : vector<2x8xf32> to vector<2x8x1xf32>
    %114 = tpu.reciprocal %113 {approx = true} : vector<2x8x1xf32> -> vector<2x8x1xf32>
    %115 = vector.broadcast %114 : vector<2x8x1xf32> to vector<2x8x8xf32>
    %116 = arith.mulf %111, %115 : vector<2x8x8xf32>
    %117 = vector.extract_strided_slice %43 {offsets = [0, 0, 16], sizes = [2, 8, 4], strides = [1, 1, 1]} : vector<2x8x32xf32> to vector<2x8x4xf32>
    "tpu.trace_start"() <{level = 10 : i32, message = "bqk,bkd->bqd"}> : () -> ()
    %cst_38 = arith.constant dense<0.000000e+00> : vector<2x8x4xf32>
    %118 = tpu.matmul %116, %117, %cst_38 {dimension_numbers = #tpu.dot_dimension_numbers<[2], [1], [1], [2], [0, 0, 0, 1, 1, 2], [0], [0]>} : vector<2x8x8xf32>, vector<2x8x4xf32>, vector<2x8x4xf32> -> vector<2x8x4xf32>
    "tpu.trace_stop"() : () -> ()
    %119 = vector.extract_strided_slice %39 {offsets = [0, 0, 20], sizes = [2, 8, 4], strides = [1, 1, 1]} : vector<2x8x32xf32> to vector<2x8x4xf32>
    %120 = vector.extract_strided_slice %41 {offsets = [0, 0, 20], sizes = [2, 8, 4], strides = [1, 1, 1]} : vector<2x8x32xf32> to vector<2x8x4xf32>
    "tpu.trace_start"() <{level = 10 : i32, message = "bqd,bkd->bqk"}> : () -> ()
    %cst_39 = arith.constant dense<0.000000e+00> : vector<2x8x8xf32>
    %121 = tpu.matmul %119, %120, %cst_39 {dimension_numbers = #tpu.dot_dimension_numbers<[2], [2], [1], [1], [0, 0, 0, 1, 1, 1], [0], [0]>} : vector<2x8x4xf32>, vector<2x8x4xf32>, vector<2x8x8xf32> -> vector<2x8x8xf32>
    "tpu.trace_stop"() : () -> ()
    %cst_40 = arith.constant dense<0xFF800000> : vector<2x8xf32>
    %122 = vector.multi_reduction <maximumf>, %121, %cst_40 [2] : vector<2x8x8xf32> to vector<2x8xf32>
    %123 = vector.shape_cast %122 : vector<2x8xf32> to vector<2x8x1xf32>
    %124 = vector.broadcast %123 : vector<2x8x1xf32> to vector<2x8x8xf32>
    %125 = arith.subf %121, %124 : vector<2x8x8xf32>
    %126 = math.exp %125 : vector<2x8x8xf32>
    %cst_41 = arith.constant dense<0.000000e+00> : vector<2x8xf32>
    %127 = vector.multi_reduction <add>, %126, %cst_41 [2] : vector<2x8x8xf32> to vector<2x8xf32>
    %128 = vector.shape_cast %127 : vector<2x8xf32> to vector<2x8x1xf32>
    %129 = tpu.reciprocal %128 {approx = true} : vector<2x8x1xf32> -> vector<2x8x1xf32>
    %130 = vector.broadcast %129 : vector<2x8x1xf32> to vector<2x8x8xf32>
    %131 = arith.mulf %126, %130 : vector<2x8x8xf32>
    %132 = vector.extract_strided_slice %43 {offsets = [0, 0, 20], sizes = [2, 8, 4], strides = [1, 1, 1]} : vector<2x8x32xf32> to vector<2x8x4xf32>
    "tpu.trace_start"() <{level = 10 : i32, message = "bqk,bkd->bqd"}> : () -> ()
    %cst_42 = arith.constant dense<0.000000e+00> : vector<2x8x4xf32>
    %133 = tpu.matmul %131, %132, %cst_42 {dimension_numbers = #tpu.dot_dimension_numbers<[2], [1], [1], [2], [0, 0, 0, 1, 1, 2], [0], [0]>} : vector<2x8x8xf32>, vector<2x8x4xf32>, vector<2x8x4xf32> -> vector<2x8x4xf32>
    "tpu.trace_stop"() : () -> ()
    %134 = vector.extract_strided_slice %39 {offsets = [0, 0, 24], sizes = [2, 8, 4], strides = [1, 1, 1]} : vector<2x8x32xf32> to vector<2x8x4xf32>
    %135 = vector.extract_strided_slice %41 {offsets = [0, 0, 24], sizes = [2, 8, 4], strides = [1, 1, 1]} : vector<2x8x32xf32> to vector<2x8x4xf32>
    "tpu.trace_start"() <{level = 10 : i32, message = "bqd,bkd->bqk"}> : () -> ()
    %cst_43 = arith.constant dense<0.000000e+00> : vector<2x8x8xf32>
    %136 = tpu.matmul %134, %135, %cst_43 {dimension_numbers = #tpu.dot_dimension_numbers<[2], [2], [1], [1], [0, 0, 0, 1, 1, 1], [0], [0]>} : vector<2x8x4xf32>, vector<2x8x4xf32>, vector<2x8x8xf32> -> vector<2x8x8xf32>
    "tpu.trace_stop"() : () -> ()
    %cst_44 = arith.constant dense<0xFF800000> : vector<2x8xf32>
    %137 = vector.multi_reduction <maximumf>, %136, %cst_44 [2] : vector<2x8x8xf32> to vector<2x8xf32>
    %138 = vector.shape_cast %137 : vector<2x8xf32> to vector<2x8x1xf32>
    %139 = vector.broadcast %138 : vector<2x8x1xf32> to vector<2x8x8xf32>
    %140 = arith.subf %136, %139 : vector<2x8x8xf32>
    %141 = math.exp %140 : vector<2x8x8xf32>
    %cst_45 = arith.constant dense<0.000000e+00> : vector<2x8xf32>
    %142 = vector.multi_reduction <add>, %141, %cst_45 [2] : vector<2x8x8xf32> to vector<2x8xf32>
    %143 = vector.shape_cast %142 : vector<2x8xf32> to vector<2x8x1xf32>
    %144 = tpu.reciprocal %143 {approx = true} : vector<2x8x1xf32> -> vector<2x8x1xf32>
    %145 = vector.broadcast %144 : vector<2x8x1xf32> to vector<2x8x8xf32>
    %146 = arith.mulf %141, %145 : vector<2x8x8xf32>
    %147 = vector.extract_strided_slice %43 {offsets = [0, 0, 24], sizes = [2, 8, 4], strides = [1, 1, 1]} : vector<2x8x32xf32> to vector<2x8x4xf32>
    "tpu.trace_start"() <{level = 10 : i32, message = "bqk,bkd->bqd"}> : () -> ()
    %cst_46 = arith.constant dense<0.000000e+00> : vector<2x8x4xf32>
    %148 = tpu.matmul %146, %147, %cst_46 {dimension_numbers = #tpu.dot_dimension_numbers<[2], [1], [1], [2], [0, 0, 0, 1, 1, 2], [0], [0]>} : vector<2x8x8xf32>, vector<2x8x4xf32>, vector<2x8x4xf32> -> vector<2x8x4xf32>
    "tpu.trace_stop"() : () -> ()
    %149 = vector.extract_strided_slice %39 {offsets = [0, 0, 28], sizes = [2, 8, 4], strides = [1, 1, 1]} : vector<2x8x32xf32> to vector<2x8x4xf32>
    %150 = vector.extract_strided_slice %41 {offsets = [0, 0, 28], sizes = [2, 8, 4], strides = [1, 1, 1]} : vector<2x8x32xf32> to vector<2x8x4xf32>
    "tpu.trace_start"() <{level = 10 : i32, message = "bqd,bkd->bqk"}> : () -> ()
    %cst_47 = arith.constant dense<0.000000e+00> : vector<2x8x8xf32>
    %151 = tpu.matmul %149, %150, %cst_47 {dimension_numbers = #tpu.dot_dimension_numbers<[2], [2], [1], [1], [0, 0, 0, 1, 1, 1], [0], [0]>} : vector<2x8x4xf32>, vector<2x8x4xf32>, vector<2x8x8xf32> -> vector<2x8x8xf32>
    "tpu.trace_stop"() : () -> ()
    %cst_48 = arith.constant dense<0xFF800000> : vector<2x8xf32>
    %152 = vector.multi_reduction <maximumf>, %151, %cst_48 [2] : vector<2x8x8xf32> to vector<2x8xf32>
    %153 = vector.shape_cast %152 : vector<2x8xf32> to vector<2x8x1xf32>
    %154 = vector.broadcast %153 : vector<2x8x1xf32> to vector<2x8x8xf32>
    %155 = arith.subf %151, %154 : vector<2x8x8xf32>
    %156 = math.exp %155 : vector<2x8x8xf32>
    %cst_49 = arith.constant dense<0.000000e+00> : vector<2x8xf32>
    %157 = vector.multi_reduction <add>, %156, %cst_49 [2] : vector<2x8x8xf32> to vector<2x8xf32>
    %158 = vector.shape_cast %157 : vector<2x8xf32> to vector<2x8x1xf32>
    %159 = tpu.reciprocal %158 {approx = true} : vector<2x8x1xf32> -> vector<2x8x1xf32>
    %160 = vector.broadcast %159 : vector<2x8x1xf32> to vector<2x8x8xf32>
    %161 = arith.mulf %156, %160 : vector<2x8x8xf32>
    %162 = vector.extract_strided_slice %43 {offsets = [0, 0, 28], sizes = [2, 8, 4], strides = [1, 1, 1]} : vector<2x8x32xf32> to vector<2x8x4xf32>
    "tpu.trace_start"() <{level = 10 : i32, message = "bqk,bkd->bqd"}> : () -> ()
    %cst_50 = arith.constant dense<0.000000e+00> : vector<2x8x4xf32>
    %163 = tpu.matmul %161, %162, %cst_50 {dimension_numbers = #tpu.dot_dimension_numbers<[2], [1], [1], [2], [0, 0, 0, 1, 1, 2], [0], [0]>} : vector<2x8x8xf32>, vector<2x8x4xf32>, vector<2x8x4xf32> -> vector<2x8x4xf32>
    "tpu.trace_stop"() : () -> ()
    %164 = tpu.concatenate %58, %73, %88, %103, %118, %133, %148, %163 in 2 : vector<2x8x4xf32>, vector<2x8x4xf32>, vector<2x8x4xf32>, vector<2x8x4xf32>, vector<2x8x4xf32>, vector<2x8x4xf32>, vector<2x8x4xf32>, vector<2x8x4xf32> -> vector<2x8x32xf32>
    %165 = vector.shape_cast %164 : vector<2x8x32xf32> to vector<16x32xf32>
    %166 = arith.truncf %165 : vector<16x32xf32> to vector<16x32xbf16>
    %c0_51 = arith.constant 0 : index
    %c0_52 = arith.constant 0 : index
    %c0_53 = arith.constant 0 : index
    %167 = vector.load %arg5[%c0_51, %c0_52, %c0_53] : memref<1x32x32xbf16, #tpu.memory_space<vmem>>, vector<1x32x32xbf16>
    %168 = vector.shape_cast %167 : vector<1x32x32xbf16> to vector<32x32xbf16>
    %cst_54 = arith.constant dense<0.000000e+00> : vector<16x32xf32>
    %169 = tpu.matmul %166, %168, %cst_54 {dimension_numbers = #tpu.dot_dimension_numbers<[1], [0], [0], [1], [0, 0, 1, 1], [], []>} : vector<16x32xbf16>, vector<32x32xbf16>, vector<16x32xf32> -> vector<16x32xf32>
    %c0_55 = arith.constant 0 : index
    %c0_56 = arith.constant 0 : index
    %c0_57 = arith.constant 0 : index
    %170 = vector.load %arg6[%c0_55, %c0_56, %c0_57] : memref<1x1x32xf32, #tpu.memory_space<vmem>>, vector<1x1x32xf32>
    %171 = vector.shape_cast %170 : vector<1x1x32xf32> to vector<1x32xf32>
    %172 = vector.broadcast %171 : vector<1x32xf32> to vector<16x32xf32>
    %173 = arith.addf %169, %172 : vector<16x32xf32>
    %174 = arith.addf %3, %173 : vector<16x32xf32>
    %c0_58 = arith.constant 0 : index
    %c0_59 = arith.constant 0 : index
    %c0_60 = arith.constant 0 : index
    %175 = vector.load %arg13[%c0_58, %c0_59, %c0_60] : memref<1x1x32xf32, #tpu.memory_space<vmem>>, vector<1x1x32xf32>
    %176 = vector.shape_cast %175 : vector<1x1x32xf32> to vector<1x32xf32>
    %c0_61 = arith.constant 0 : index
    %c0_62 = arith.constant 0 : index
    %c0_63 = arith.constant 0 : index
    %177 = vector.load %arg14[%c0_61, %c0_62, %c0_63] : memref<1x1x32xf32, #tpu.memory_space<vmem>>, vector<1x1x32xf32>
    %178 = vector.shape_cast %177 : vector<1x1x32xf32> to vector<1x32xf32>
    %cst_64 = arith.constant dense<0.000000e+00> : vector<16xf32>
    %179 = vector.multi_reduction <add>, %174, %cst_64 [1] : vector<16x32xf32> to vector<16xf32>
    %180 = vector.shape_cast %179 : vector<16xf32> to vector<16x1xf32>
    %cst_65 = arith.constant 3.200000e+01 : f32
    %181 = vector.broadcast %cst_65 : f32 to vector<16x1xf32>
    %182 = arith.divf %180, %181 : vector<16x1xf32>
    %183 = vector.broadcast %182 : vector<16x1xf32> to vector<16x32xf32>
    %184 = arith.subf %174, %183 : vector<16x32xf32>
    %185 = arith.mulf %184, %184 : vector<16x32xf32>
    %cst_66 = arith.constant dense<0.000000e+00> : vector<16xf32>
    %186 = vector.multi_reduction <add>, %185, %cst_66 [1] : vector<16x32xf32> to vector<16xf32>
    %187 = vector.shape_cast %186 : vector<16xf32> to vector<16x1xf32>
    %cst_67 = arith.constant 3.200000e+01 : f32
    %188 = vector.broadcast %cst_67 : f32 to vector<16x1xf32>
    %189 = arith.divf %187, %188 : vector<16x1xf32>
    %190 = vector.broadcast %182 : vector<16x1xf32> to vector<16x32xf32>
    %191 = arith.subf %174, %190 : vector<16x32xf32>
    %cst_68 = arith.constant 9.99999974E-6 : f32
    %192 = vector.broadcast %cst_68 : f32 to vector<16x1xf32>
    %193 = arith.addf %189, %192 : vector<16x1xf32>
    %194 = math.rsqrt %193 : vector<16x1xf32>
    %195 = vector.broadcast %194 : vector<16x1xf32> to vector<16x32xf32>
    %196 = arith.mulf %191, %195 : vector<16x32xf32>
    %197 = vector.broadcast %176 : vector<1x32xf32> to vector<16x32xf32>
    %198 = arith.mulf %196, %197 : vector<16x32xf32>
    %199 = vector.broadcast %178 : vector<1x32xf32> to vector<16x32xf32>
    %200 = arith.addf %198, %199 : vector<16x32xf32>
    %201 = arith.truncf %200 : vector<16x32xf32> to vector<16x32xbf16>
    %c0_69 = arith.constant 0 : index
    %c0_70 = arith.constant 0 : index
    %c0_71 = arith.constant 0 : index
    %202 = vector.load %arg9[%c0_69, %c0_70, %c0_71] : memref<1x32x64xbf16, #tpu.memory_space<vmem>>, vector<1x32x64xbf16>
    %203 = vector.shape_cast %202 : vector<1x32x64xbf16> to vector<32x64xbf16>
    %cst_72 = arith.constant dense<0.000000e+00> : vector<16x64xf32>
    %204 = tpu.matmul %201, %203, %cst_72 {dimension_numbers = #tpu.dot_dimension_numbers<[1], [0], [0], [1], [0, 0, 1, 1], [], []>} : vector<16x32xbf16>, vector<32x64xbf16>, vector<16x64xf32> -> vector<16x64xf32>
    %c0_73 = arith.constant 0 : index
    %c0_74 = arith.constant 0 : index
    %c0_75 = arith.constant 0 : index
    %205 = vector.load %arg10[%c0_73, %c0_74, %c0_75] : memref<1x1x64xf32, #tpu.memory_space<vmem>>, vector<1x1x64xf32>
    %206 = vector.shape_cast %205 : vector<1x1x64xf32> to vector<1x64xf32>
    %207 = vector.broadcast %206 : vector<1x64xf32> to vector<16x64xf32>
    %208 = arith.addf %204, %207 : vector<16x64xf32>
    %209 = arith.mulf %208, %208 : vector<16x64xf32>
    %210 = arith.mulf %208, %209 : vector<16x64xf32>
    %cst_76 = arith.constant 4.471500e-02 : f32
    %211 = vector.broadcast %cst_76 : f32 to vector<16x64xf32>
    %212 = arith.mulf %211, %210 : vector<16x64xf32>
    %213 = arith.addf %208, %212 : vector<16x64xf32>
    %cst_77 = arith.constant 0.797884583 : f32
    %214 = vector.broadcast %cst_77 : f32 to vector<16x64xf32>
    %215 = arith.mulf %214, %213 : vector<16x64xf32>
    %216 = math.tanh %215 : vector<16x64xf32>
    %cst_78 = arith.constant 1.000000e+00 : f32
    %217 = vector.broadcast %cst_78 : f32 to vector<16x64xf32>
    %218 = arith.addf %217, %216 : vector<16x64xf32>
    %cst_79 = arith.constant 5.000000e-01 : f32
    %219 = vector.broadcast %cst_79 : f32 to vector<16x64xf32>
    %220 = arith.mulf %219, %218 : vector<16x64xf32>
    %221 = arith.mulf %208, %220 : vector<16x64xf32>
    %222 = arith.truncf %221 : vector<16x64xf32> to vector<16x64xbf16>
    %c0_80 = arith.constant 0 : index
    %c0_81 = arith.constant 0 : index
    %c0_82 = arith.constant 0 : index
    %223 = vector.load %arg11[%c0_80, %c0_81, %c0_82] : memref<1x64x32xbf16, #tpu.memory_space<vmem>>, vector<1x64x32xbf16>
    %224 = vector.shape_cast %223 : vector<1x64x32xbf16> to vector<64x32xbf16>
    %cst_83 = arith.constant dense<0.000000e+00> : vector<16x32xf32>
    %225 = tpu.matmul %222, %224, %cst_83 {dimension_numbers = #tpu.dot_dimension_numbers<[1], [0], [0], [1], [0, 0, 1, 1], [], []>} : vector<16x64xbf16>, vector<64x32xbf16>, vector<16x32xf32> -> vector<16x32xf32>
    %c0_84 = arith.constant 0 : index
    %c0_85 = arith.constant 0 : index
    %c0_86 = arith.constant 0 : index
    %226 = vector.load %arg12[%c0_84, %c0_85, %c0_86] : memref<1x1x32xf32, #tpu.memory_space<vmem>>, vector<1x1x32xf32>
    %227 = vector.shape_cast %226 : vector<1x1x32xf32> to vector<1x32xf32>
    %228 = vector.broadcast %227 : vector<1x32xf32> to vector<16x32xf32>
    %229 = arith.addf %225, %228 : vector<16x32xf32>
    %230 = arith.addf %174, %229 : vector<16x32xf32>
    %c0_87 = arith.constant 0 : index
    %c0_88 = arith.constant 0 : index
    %231 = vector.load %arg18[%c0_87, %c0_88] : memref<16x32xf32, #tpu.memory_space<vmem>>, vector<16x32xf32>
    tpu.vector_store %arg18[%c0_87, %c0_88], %230 {strides = array<i32>} : memref<16x32xf32, #tpu.memory_space<vmem>>, vector<16x32xf32>,
    %c1_i32 = arith.constant 1 : i32
    %232 = arith.cmpi eq, %arg0, %c1_i32 : i32
    %233 = arith.extui %232 : i1 to i32
    %c0_i32_89 = arith.constant 0 : i32
    %234 = arith.cmpi ne, %233, %c0_i32_89 : i32
    scf.if %234 {
      %c0_90 = arith.constant 0 : index
      %c0_91 = arith.constant 0 : index
      %235 = vector.load %arg15[%c0_90, %c0_91] : memref<1x32xf32, #tpu.memory_space<vmem>>, vector<1x32xf32>
      %c0_92 = arith.constant 0 : index
      %c0_93 = arith.constant 0 : index
      %236 = vector.load %arg16[%c0_92, %c0_93] : memref<1x32xf32, #tpu.memory_space<vmem>>, vector<1x32xf32>
      %cst_94 = arith.constant dense<0.000000e+00> : vector<16xf32>
      %237 = vector.multi_reduction <add>, %230, %cst_94 [1] : vector<16x32xf32> to vector<16xf32>
      %238 = vector.shape_cast %237 : vector<16xf32> to vector<16x1xf32>
      %cst_95 = arith.constant 3.200000e+01 : f32
      %239 = vector.broadcast %cst_95 : f32 to vector<16x1xf32>
      %240 = arith.divf %238, %239 : vector<16x1xf32>
      %241 = vector.broadcast %240 : vector<16x1xf32> to vector<16x32xf32>
      %242 = arith.subf %230, %241 : vector<16x32xf32>
      %243 = arith.mulf %242, %242 : vector<16x32xf32>
      %cst_96 = arith.constant dense<0.000000e+00> : vector<16xf32>
      %244 = vector.multi_reduction <add>, %243, %cst_96 [1] : vector<16x32xf32> to vector<16xf32>
      %245 = vector.shape_cast %244 : vector<16xf32> to vector<16x1xf32>
      %cst_97 = arith.constant 3.200000e+01 : f32
      %246 = vector.broadcast %cst_97 : f32 to vector<16x1xf32>
      %247 = arith.divf %245, %246 : vector<16x1xf32>
      %248 = vector.broadcast %240 : vector<16x1xf32> to vector<16x32xf32>
      %249 = arith.subf %230, %248 : vector<16x32xf32>
      %cst_98 = arith.constant 9.99999974E-6 : f32
      %250 = vector.broadcast %cst_98 : f32 to vector<16x1xf32>
      %251 = arith.addf %247, %250 : vector<16x1xf32>
      %252 = math.rsqrt %251 : vector<16x1xf32>
      %253 = vector.broadcast %252 : vector<16x1xf32> to vector<16x32xf32>
      %254 = arith.mulf %249, %253 : vector<16x32xf32>
      %255 = vector.broadcast %235 : vector<1x32xf32> to vector<16x32xf32>
      %256 = arith.mulf %254, %255 : vector<16x32xf32>
      %257 = vector.broadcast %236 : vector<1x32xf32> to vector<16x32xf32>
      %258 = arith.addf %256, %257 : vector<16x32xf32>
      %259 = vector.shape_cast %258 : vector<16x32xf32> to vector<2x8x32xf32>
      %c0_99 = arith.constant 0 : index
      %c0_100 = arith.constant 0 : index
      %c0_101 = arith.constant 0 : index
      %260 = vector.load %arg17[%c0_99, %c0_100, %c0_101] : memref<2x8x32xf32, #tpu.memory_space<vmem>>, vector<2x8x32xf32>
      tpu.vector_store %arg17[%c0_99, %c0_100, %c0_101], %259 {strides = array<i32>} : memref<2x8x32xf32, #tpu.memory_space<vmem>>, vector<2x8x32xf32>,
    } else {
    }
    return
  }
  func.func @transform_0(%arg0: i32) -> (i32, i32, i32) {
    %c0_i32 = arith.constant 0 : i32
    %c0_i32_0 = arith.constant 0 : i32
    %c0_i32_1 = arith.constant 0 : i32
    %c0_i32_2 = arith.constant 0 : i32
    return %c0_i32, %c0_i32_0, %c0_i32_1 : i32, i32, i32
  }
  func.func @transform_1(%arg0: i32) -> (i32, i32) {
    %c0_i32 = arith.constant 0 : i32
    %c0_i32_0 = arith.constant 0 : i32
    %c0_i32_1 = arith.constant 0 : i32
    return %c0_i32, %c0_i32_0 : i32, i32
  }
  func.func @transform_2(%arg0: i32) -> (i32, i32, i32) {
    %c0_i32 = arith.constant 0 : i32
    %c0_i32_0 = arith.constant 0 : i32
    %c0_i32_1 = arith.constant 0 : i32
    return %arg0, %c0_i32, %c0_i32_0 : i32, i32, i32
  }
  func.func @transform_3(%arg0: i32) -> (i32, i32, i32) {
    %c0_i32 = arith.constant 0 : i32
    %c0_i32_0 = arith.constant 0 : i32
    %c0_i32_1 = arith.constant 0 : i32
    return %arg0, %c0_i32, %c0_i32_0 : i32, i32, i32
  }
  func.func @transform_4(%arg0: i32) -> (i32, i32, i32) {
    %c0_i32 = arith.constant 0 : i32
    %c0_i32_0 = arith.constant 0 : i32
    %c0_i32_1 = arith.constant 0 : i32
    return %arg0, %c0_i32, %c0_i32_0 : i32, i32, i32
  }
  func.func @transform_5(%arg0: i32) -> (i32, i32, i32) {
    %c0_i32 = arith.constant 0 : i32
    %c0_i32_0 = arith.constant 0 : i32
    %c0_i32_1 = arith.constant 0 : i32
    return %arg0, %c0_i32, %c0_i32_0 : i32, i32, i32
  }
  func.func @transform_6(%arg0: i32) -> (i32, i32, i32) {
    %c0_i32 = arith.constant 0 : i32
    %c0_i32_0 = arith.constant 0 : i32
    %c0_i32_1 = arith.constant 0 : i32
    return %arg0, %c0_i32, %c0_i32_0 : i32, i32, i32
  }
  func.func @transform_7(%arg0: i32) -> (i32, i32, i32) {
    %c0_i32 = arith.constant 0 : i32
    %c0_i32_0 = arith.constant 0 : i32
    %c0_i32_1 = arith.constant 0 : i32
    return %arg0, %c0_i32, %c0_i32_0 : i32, i32, i32
  }
  func.func @transform_8(%arg0: i32) -> (i32, i32, i32) {
    %c0_i32 = arith.constant 0 : i32
    %c0_i32_0 = arith.constant 0 : i32
    %c0_i32_1 = arith.constant 0 : i32
    return %arg0, %c0_i32, %c0_i32_0 : i32, i32, i32
  }
  func.func @transform_9(%arg0: i32) -> (i32, i32, i32) {
    %c0_i32 = arith.constant 0 : i32
    %c0_i32_0 = arith.constant 0 : i32
    %c0_i32_1 = arith.constant 0 : i32
    return %arg0, %c0_i32, %c0_i32_0 : i32, i32, i32
  }
  func.func @transform_10(%arg0: i32) -> (i32, i32, i32) {
    %c0_i32 = arith.constant 0 : i32
    %c0_i32_0 = arith.constant 0 : i32
    %c0_i32_1 = arith.constant 0 : i32
    return %arg0, %c0_i32, %c0_i32_0 : i32, i32, i32
  }
  func.func @transform_11(%arg0: i32) -> (i32, i32, i32) {
    %c0_i32 = arith.constant 0 : i32
    %c0_i32_0 = arith.constant 0 : i32
    %c0_i32_1 = arith.constant 0 : i32
    return %arg0, %c0_i32, %c0_i32_0 : i32, i32, i32
  }
  func.func @transform_12(%arg0: i32) -> (i32, i32, i32) {
    %c0_i32 = arith.constant 0 : i32
    %c0_i32_0 = arith.constant 0 : i32
    %c0_i32_1 = arith.constant 0 : i32
    return %arg0, %c0_i32, %c0_i32_0 : i32, i32, i32
  }
  func.func @transform_13(%arg0: i32) -> (i32, i32, i32) {
    %c0_i32 = arith.constant 0 : i32
    %c0_i32_0 = arith.constant 0 : i32
    %c0_i32_1 = arith.constant 0 : i32
    return %arg0, %c0_i32, %c0_i32_0 : i32, i32, i32
  }
  func.func @transform_14(%arg0: i32) -> (i32, i32) {
    %c0_i32 = arith.constant 0 : i32
    %c0_i32_0 = arith.constant 0 : i32
    %c0_i32_1 = arith.constant 0 : i32
    return %c0_i32, %c0_i32_0 : i32, i32
  }
  func.func @transform_15(%arg0: i32) -> (i32, i32) {
    %c0_i32 = arith.constant 0 : i32
    %c0_i32_0 = arith.constant 0 : i32
    %c0_i32_1 = arith.constant 0 : i32
    return %c0_i32, %c0_i32_0 : i32, i32
  }
  func.func @transform_16(%arg0: i32) -> (i32, i32, i32) {
    %c0_i32 = arith.constant 0 : i32
    %c0_i32_0 = arith.constant 0 : i32
    %c0_i32_1 = arith.constant 0 : i32
    %c0_i32_2 = arith.constant 0 : i32
    return %c0_i32, %c0_i32_0, %c0_i32_1 : i32, i32, i32
  }
}

</mosaic_0001>

<llo_original>
// kernel: bart_foreign_encoder_forward.1
$region0: #{bart_foreign_encoder_forward.1}
  #allocation0 [shape = 'u32[]', space=smem, size = 0x4, offset = 0x4, fixed_abs, tag = 'smem constant byte address 0x4 - core index']
  #allocation1 [shape = 'u32[144,128]{1,0:T(1,128)}', space=vmem, size = 0x12000, scoped, tag = 'internal scratch']
  #allocation2 [shape = 'f32[16,32]{1,0:T(8,128)}', space=vmem, size = 0x2000, scoped, tag = 'scratch operand']
  %s0 = inlined_call_operand.vmem [shape: f32[2,8,32], index: 0, kind: input, shape index: {}]
  %s1 = inlined_call_operand.vmem [shape: f32[8,32], index: 1, kind: input, shape index: {}]
  %s2 = inlined_call_operand.vmem [shape: bf16[2,32,96], index: 2, kind: input, shape index: {}]
  %s3 = inlined_call_operand.vmem [shape: f32[2,1,96], index: 3, kind: input, shape index: {}]
  %s4 = inlined_call_operand.vmem [shape: bf16[2,32,32], index: 4, kind: input, shape index: {}]
  %s5 = inlined_call_operand.vmem [shape: f32[2,1,32], index: 5, kind: input, shape index: {}]
  %s6 = inlined_call_operand.vmem [shape: f32[2,1,32], index: 6, kind: input, shape index: {}]
  %s7 = inlined_call_operand.vmem [shape: f32[2,1,32], index: 7, kind: input, shape index: {}]
  %s8 = inlined_call_operand.vmem [shape: bf16[2,32,64], index: 8, kind: input, shape index: {}]
  %s9 = inlined_call_operand.vmem [shape: f32[2,1,64], index: 9, kind: input, shape index: {}]
  %s10 = inlined_call_operand.vmem [shape: bf16[2,64,32], index: 10, kind: input, shape index: {}]
  %s11 = inlined_call_operand.vmem [shape: f32[2,1,32], index: 11, kind: input, shape index: {}]
  %s12 = inlined_call_operand.vmem [shape: f32[2,1,32], index: 12, kind: input, shape index: {}]
  %s13 = inlined_call_operand.vmem [shape: f32[2,1,32], index: 13, kind: input, shape index: {}]
  %s14 = inlined_call_operand.vmem [shape: f32[1,32], index: 14, kind: input, shape index: {}]
  %s15 = inlined_call_operand.vmem [shape: f32[1,32], index: 15, kind: input, shape index: {}]
  %s16 = inlined_call_operand.hbm [shape: f32[2,8,32], index: 16, kind: output, shape index: {}]
  %s17 = sld [smem:[#allocation0]]
  $region105: #{bart_foreign_encoder_forward.1} parent=0
    _
  %s19 = ssub.s32 1, %s17
  %s20 = scalar_select 0, %s19, %s17
  $region1: #{bart_foreign_encoder_forward.1} parent=0
    #allocation3 [shape = 'u8[8192]{0}', space=vmem, size = 0x2000, scoped, tag = 'output window, operand 0, single buffered']
    #allocation4 [shape = 's32[2]{0}', space=sflag, size = 0x8, scoped, tag = 'scoped memory for bart_foreign_encoder_forward.1']
    %21 = vsyncpa [#allocation4], 0
    loop: start=0, step=1, limit=4
    $region2: #{bart_foreign_encoder_forward.1} parent=1 // loop_pre_header
      _
    $region3: #{bart_foreign_encoder_forward.1} parent=1 // loop_header
      %s23 = sphi 0, %s27
      %p24 = scmp.ge.s32.totalorder %s23, 4
      %s31 = sphi 0, %s31
      %s33 = sphi 0, %s31
      %s34 = sphi 0, %s33
      %s48 = sphi 0, %s34
      %s52 = sphi 0, %s52
      %s54 = sphi 0, %s52
      %s55 = sphi 0, %s54
      %s69 = sphi 0, %s55
      %s75 = sphi 0, %s77
      %s78 = sphi 0, %s75
      %s79 = sphi 0, %s78
      %s95 = sphi 0, %s79
      %s101 = sphi 0, %s103
      %s104 = sphi 0, %s101
      %s105 = sphi 0, %s104
      %s121 = sphi 0, %s105
      %s127 = sphi 0, %s129
      %s130 = sphi 0, %s127
      %s131 = sphi 0, %s130
      %s147 = sphi 0, %s131
      %s153 = sphi 0, %s155
      %s156 = sphi 0, %s153
      %s157 = sphi 0, %s156
      %s173 = sphi 0, %s157
      %s179 = sphi 0, %s181
      %s182 = sphi 0, %s179
      %s183 = sphi 0, %s182
      %s199 = sphi 0, %s183
      %s205 = sphi 0, %s207
      %s208 = sphi 0, %s205
      %s209 = sphi 0, %s208
      %s225 = sphi 0, %s209
      %s231 = sphi 0, %s233
      %s234 = sphi 0, %s231
      %s235 = sphi 0, %s234
      %s251 = sphi 0, %s235
      %s257 = sphi 0, %s259
      %s260 = sphi 0, %s257
      %s261 = sphi 0, %s260
      %s277 = sphi 0, %s261
      %s283 = sphi 0, %s285
      %s286 = sphi 0, %s283
      %s287 = sphi 0, %s286
      %s303 = sphi 0, %s287
      %s309 = sphi 0, %s311
      %s312 = sphi 0, %s309
      %s313 = sphi 0, %s312
      %s329 = sphi 0, %s313
      %s335 = sphi 0, %s337
      %s338 = sphi 0, %s335
      %s339 = sphi 0, %s338
      %s355 = sphi 0, %s339
      %s361 = sphi 0, %s363
      %s364 = sphi 0, %s361
      %s365 = sphi 0, %s364
      %s381 = sphi 0, %s365
      %s385 = sphi 0, %s385
      %s387 = sphi 0, %s385
      %s388 = sphi 0, %s387
      %s402 = sphi 0, %s388
      %s406 = sphi 0, %s406
      %s408 = sphi 0, %s406
      %s409 = sphi 0, %s408
      %s423 = sphi 0, %s409
      %s427 = sphi 0, %s427
      %s429 = sphi 0, %s427
      %s430 = sphi 0, %s429
      %s444 = sphi 0, %s430
    $region4: #{bart_foreign_encoder_forward.1} parent=1 // loop_header_branch
      %26 = sbr.rel (%p24) target = $region8
    $region5: #{bart_foreign_encoder_forward.1} parent=1 // loop_body
      %s28 = ssub.s32 %s23, 1
      %s29 = ssub.s32 %s23, 2
      %s30 = sadd.s32 %s23, 1
      %s32 = sadd.s32 %s31, 1
      %p35 = scmp.eq.s32.totalorder %s23, 1
      %p36 = scmp.ne.s32.totalorder %s31, %s33
      %p37 = scmp.eq.s32.totalorder %s23, 0
      %p38 = por %p36, %p37
      %p39 = scmp.ne.s32.totalorder %s31, %s33
      %p40 = scmp.eq.s32.totalorder %s28, 1
      %p41 = por %p39, %p40
      %p42 = scmp.ne.s32.totalorder %s33, %s34
      %p43 = scmp.eq.s32.totalorder %s28, 0
      %p44 = por %p42, %p43
      %p45 = scmp.ne.s32.totalorder %s33, %s34
      %p46 = scmp.eq.s32.totalorder %s29, 1
      %p47 = por %p45, %p46
      %p49 = scmp.ne.s32.totalorder %s34, %s48
      %p50 = scmp.eq.s32.totalorder %s29, 0
      %p51 = por %p49, %p50
      %s53 = sadd.s32 %s52, 1
      %p56 = scmp.eq.s32.totalorder %s23, 1
      %p57 = scmp.ne.s32.totalorder %s52, %s54
      %p58 = scmp.eq.s32.totalorder %s23, 0
      %p59 = por %p57, %p58
      %p60 = scmp.ne.s32.totalorder %s52, %s54
      %p61 = scmp.eq.s32.totalorder %s28, 1
      %p62 = por %p60, %p61
      %p63 = scmp.ne.s32.totalorder %s54, %s55
      %p64 = scmp.eq.s32.totalorder %s28, 0
      %p65 = por %p63, %p64
      %p66 = scmp.ne.s32.totalorder %s54, %s55
      %p67 = scmp.eq.s32.totalorder %s29, 1
      %p68 = por %p66, %p67
      %p70 = scmp.ne.s32.totalorder %s55, %s69
      %p71 = scmp.eq.s32.totalorder %s29, 0
      %p72 = por %p70, %p71
      %s73 = ssub.s32 %s23, %s30
      %p74 = scmp.eq.s32.totalorder %s73, 0
      %s76 = sadd.s32 %s75, 1
      %s77 = scalar_select %p74, %s75, %s76
      %p80 = pneg %p74
      %p81 = scmp.eq.s32.totalorder %s23, 1
      %p82 = por %p80, %p81
      %p83 = scmp.ne.s32.totalorder %s75, %s78
      %p84 = scmp.eq.s32.totalorder %s23, 0
      %p85 = por %p83, %p84
      %p86 = scmp.ne.s32.totalorder %s75, %s78
      %p87 = scmp.eq.s32.totalorder %s28, 1
      %p88 = por %p86, %p87
      %p89 = scmp.ne.s32.totalorder %s78, %s79
      %p90 = scmp.eq.s32.totalorder %s28, 0
      %p91 = por %p89, %p90
      %p92 = scmp.ne.s32.totalorder %s78, %s79
      %p93 = scmp.eq.s32.totalorder %s29, 1
      %p94 = por %p92, %p93
      %p96 = scmp.ne.s32.totalorder %s79, %s95
      %p97 = scmp.eq.s32.totalorder %s29, 0
      %p98 = por %p96, %p97
      %s99 = ssub.s32 %s23, %s30
      %p100 = scmp.eq.s32.totalorder %s99, 0
      %s102 = sadd.s32 %s101, 1
      %s103 = scalar_select %p100, %s101, %s102
      %p106 = pneg %p100
      %p107 = scmp.eq.s32.totalorder %s23, 1
      %p108 = por %p106, %p107
      %p109 = scmp.ne.s32.totalorder %s101, %s104
      %p110 = scmp.eq.s32.totalorder %s23, 0
      %p111 = por %p109, %p110
      %p112 = scmp.ne.s32.totalorder %s101, %s104
      %p113 = scmp.eq.s32.totalorder %s28, 1
      %p114 = por %p112, %p113
      %p115 = scmp.ne.s32.totalorder %s104, %s105
      %p116 = scmp.eq.s32.totalorder %s28, 0
      %p117 = por %p115, %p116
      %p118 = scmp.ne.s32.totalorder %s104, %s105
      %p119 = scmp.eq.s32.totalorder %s29, 1
      %p120 = por %p118, %p119
      %p122 = scmp.ne.s32.totalorder %s105, %s121
      %p123 = scmp.eq.s32.totalorder %s29, 0
      %p124 = por %p122, %p123
      %s125 = ssub.s32 %s23, %s30
      %p126 = scmp.eq.s32.totalorder %s125, 0
      %s128 = sadd.s32 %s127, 1
      %s129 = scalar_select %p126, %s127, %s128
      %p132 = pneg %p126
      %p133 = scmp.eq.s32.totalorder %s23, 1
      %p134 = por %p132, %p133
      %p135 = scmp.ne.s32.totalorder %s127, %s130
      %p136 = scmp.eq.s32.totalorder %s23, 0
      %p137 = por %p135, %p136
      %p138 = scmp.ne.s32.totalorder %s127, %s130
      %p139 = scmp.eq.s32.totalorder %s28, 1
      %p140 = por %p138, %p139
      %p141 = scmp.ne.s32.totalorder %s130, %s131
      %p142 = scmp.eq.s32.totalorder %s28, 0
      %p143 = por %p141, %p142
      %p144 = scmp.ne.s32.totalorder %s130, %s131
      %p145 = scmp.eq.s32.totalorder %s29, 1
      %p146 = por %p144, %p145
      %p148 = scmp.ne.s32.totalorder %s131, %s147
      %p149 = scmp.eq.s32.totalorder %s29, 0
      %p150 = por %p148, %p149
      %s151 = ssub.s32 %s23, %s30
      %p152 = scmp.eq.s32.totalorder %s151, 0
      %s154 = sadd.s32 %s153, 1
      %s155 = scalar_select %p152, %s153, %s154
      %p158 = pneg %p152
      %p159 = scmp.eq.s32.totalorder %s23, 1
      %p160 = por %p158, %p159
      %p161 = scmp.ne.s32.totalorder %s153, %s156
      %p162 = scmp.eq.s32.totalorder %s23, 0
      %p163 = por %p161, %p162
      %p164 = scmp.ne.s32.totalorder %s153, %s156
      %p165 = scmp.eq.s32.totalorder %s28, 1
      %p166 = por %p164, %p165
      %p167 = scmp.ne.s32.totalorder %s156, %s157
      %p168 = scmp.eq.s32.totalorder %s28, 0
      %p169 = por %p167, %p168
      %p170 = scmp.ne.s32.totalorder %s156, %s157
      %p171 = scmp.eq.s32.totalorder %s29, 1
      %p172 = por %p170, %p171
      %p174 = scmp.ne.s32.totalorder %s157, %s173
      %p175 = scmp.eq.s32.totalorder %s29, 0
      %p176 = por %p174, %p175
      %s177 = ssub.s32 %s23, %s30
      %p178 = scmp.eq.s32.totalorder %s177, 0
      %s180 = sadd.s32 %s179, 1
      %s181 = scalar_select %p178, %s179, %s180
      %p184 = pneg %p178
      %p185 = scmp.eq.s32.totalorder %s23, 1
      %p186 = por %p184, %p185
      %p187 = scmp.ne.s32.totalorder %s179, %s182
      %p188 = scmp.eq.s32.totalorder %s23, 0
      %p189 = por %p187, %p188
      %p190 = scmp.ne.s32.totalorder %s179, %s182
      %p191 = scmp.eq.s32.totalorder %s28, 1
      %p192 = por %p190, %p191
      %p193 = scmp.ne.s32.totalorder %s182, %s183
      %p194 = scmp.eq.s32.totalorder %s28, 0
      %p195 = por %p193, %p194
      %p196 = scmp.ne.s32.totalorder %s182, %s183
      %p197 = scmp.eq.s32.totalorder %s29, 1
      %p198 = por %p196, %p197
      %p200 = scmp.ne.s32.totalorder %s183, %s199
      %p201 = scmp.eq.s32.totalorder %s29, 0
      %p202 = por %p200, %p201
      %s203 = ssub.s32 %s23, %s30
      %p204 = scmp.eq.s32.totalorder %s203, 0
      %s206 = sadd.s32 %s205, 1
      %s207 = scalar_select %p204, %s205, %s206
      %p210 = pneg %p204
      %p211 = scmp.eq.s32.totalorder %s23, 1
      %p212 = por %p210, %p211
      %p213 = scmp.ne.s32.totalorder %s205, %s208
      %p214 = scmp.eq.s32.totalorder %s23, 0
      %p215 = por %p213, %p214
      %p216 = scmp.ne.s32.totalorder %s205, %s208
      %p217 = scmp.eq.s32.totalorder %s28, 1
      %p218 = por %p216, %p217
      %p219 = scmp.ne.s32.totalorder %s208, %s209
      %p220 = scmp.eq.s32.totalorder %s28, 0
      %p221 = por %p219, %p220
      %p222 = scmp.ne.s32.totalorder %s208, %s209
      %p223 = scmp.eq.s32.totalorder %s29, 1
      %p224 = por %p222, %p223
      %p226 = scmp.ne.s32.totalorder %s209, %s225
      %p227 = scmp.eq.s32.totalorder %s29, 0
      %p228 = por %p226, %p227
      %s229 = ssub.s32 %s23, %s30
      %p230 = scmp.eq.s32.totalorder %s229, 0
      %s232 = sadd.s32 %s231, 1
      %s233 = scalar_select %p230, %s231, %s232
      %p236 = pneg %p230
      %p237 = scmp.eq.s32.totalorder %s23, 1
      %p238 = por %p236, %p237
      %p239 = scmp.ne.s32.totalorder %s231, %s234
      %p240 = scmp.eq.s32.totalorder %s23, 0
      %p241 = por %p239, %p240
      %p242 = scmp.ne.s32.totalorder %s231, %s234
      %p243 = scmp.eq.s32.totalorder %s28, 1
      %p244 = por %p242, %p243
      %p245 = scmp.ne.s32.totalorder %s234, %s235
      %p246 = scmp.eq.s32.totalorder %s28, 0
      %p247 = por %p245, %p246
      %p248 = scmp.ne.s32.totalorder %s234, %s235
      %p249 = scmp.eq.s32.totalorder %s29, 1
      %p250 = por %p248, %p249
      %p252 = scmp.ne.s32.totalorder %s235, %s251
      %p253 = scmp.eq.s32.totalorder %s29, 0
      %p254 = por %p252, %p253
      %s255 = ssub.s32 %s23, %s30
      %p256 = scmp.eq.s32.totalorder %s255, 0
      %s258 = sadd.s32 %s257, 1
      %s259 = scalar_select %p256, %s257, %s258
      %p262 = pneg %p256
      %p263 = scmp.eq.s32.totalorder %s23, 1
      %p264 = por %p262, %p263
      %p265 = scmp.ne.s32.totalorder %s257, %s260
      %p266 = scmp.eq.s32.totalorder %s23, 0
      %p267 = por %p265, %p266
      %p268 = scmp.ne.s32.totalorder %s257, %s260
      %p269 = scmp.eq.s32.totalorder %s28, 1
      %p270 = por %p268, %p269
      %p271 = scmp.ne.s32.totalorder %s260, %s261
      %p272 = scmp.eq.s32.totalorder %s28, 0
      %p273 = por %p271, %p272
      %p274 = scmp.ne.s32.totalorder %s260, %s261
      %p275 = scmp.eq.s32.totalorder %s29, 1
      %p276 = por %p274, %p275
      %p278 = scmp.ne.s32.totalorder %s261, %s277
      %p279 = scmp.eq.s32.totalorder %s29, 0
      %p280 = por %p278, %p279
      %s281 = ssub.s32 %s23, %s30
      %p282 = scmp.eq.s32.totalorder %s281, 0
      %s284 = sadd.s32 %s283, 1
      %s285 = scalar_select %p282, %s283, %s284
      %p288 = pneg %p282
      %p289 = scmp.eq.s32.totalorder %s23, 1
      %p290 = por %p288, %p289
      %p291 = scmp.ne.s32.totalorder %s283, %s286
      %p292 = scmp.eq.s32.totalorder %s23, 0
      %p293 = por %p291, %p292
      %p294 = scmp.ne.s32.totalorder %s283, %s286
      %p295 = scmp.eq.s32.totalorder %s28, 1
      %p296 = por %p294, %p295
      %p297 = scmp.ne.s32.totalorder %s286, %s287
      %p298 = scmp.eq.s32.totalorder %s28, 0
      %p299 = por %p297, %p298
      %p300 = scmp.ne.s32.totalorder %s286, %s287
      %p301 = scmp.eq.s32.totalorder %s29, 1
      %p302 = por %p300, %p301
      %p304 = scmp.ne.s32.totalorder %s287, %s303
      %p305 = scmp.eq.s32.totalorder %s29, 0
      %p306 = por %p304, %p305
      %s307 = ssub.s32 %s23, %s30
      %p308 = scmp.eq.s32.totalorder %s307, 0
      %s310 = sadd.s32 %s309, 1
      %s311 = scalar_select %p308, %s309, %s310
      %p314 = pneg %p308
      %p315 = scmp.eq.s32.totalorder %s23, 1
      %p316 = por %p314, %p315
      %p317 = scmp.ne.s32.totalorder %s309, %s312
      %p318 = scmp.eq.s32.totalorder %s23, 0
      %p319 = por %p317, %p318
      %p320 = scmp.ne.s32.totalorder %s309, %s312
      %p321 = scmp.eq.s32.totalorder %s28, 1
      %p322 = por %p320, %p321
      %p323 = scmp.ne.s32.totalorder %s312, %s313
      %p324 = scmp.eq.s32.totalorder %s28, 0
      %p325 = por %p323, %p324
      %p326 = scmp.ne.s32.totalorder %s312, %s313
      %p327 = scmp.eq.s32.totalorder %s29, 1
      %p328 = por %p326, %p327
      %p330 = scmp.ne.s32.totalorder %s313, %s329
      %p331 = scmp.eq.s32.totalorder %s29, 0
      %p332 = por %p330, %p331
      %s333 = ssub.s32 %s23, %s30
      %p334 = scmp.eq.s32.totalorder %s333, 0
      %s336 = sadd.s32 %s335, 1
      %s337 = scalar_select %p334, %s335, %s336
      %p340 = pneg %p334
      %p341 = scmp.eq.s32.totalorder %s23, 1
      %p342 = por %p340, %p341
      %p343 = scmp.ne.s32.totalorder %s335, %s338
      %p344 = scmp.eq.s32.totalorder %s23, 0
      %p345 = por %p343, %p344
      %p346 = scmp.ne.s32.totalorder %s335, %s338
      %p347 = scmp.eq.s32.totalorder %s28, 1
      %p348 = por %p346, %p347
      %p349 = scmp.ne.s32.totalorder %s338, %s339
      %p350 = scmp.eq.s32.totalorder %s28, 0
      %p351 = por %p349, %p350
      %p352 = scmp.ne.s32.totalorder %s338, %s339
      %p353 = scmp.eq.s32.totalorder %s29, 1
      %p354 = por %p352, %p353
      %p356 = scmp.ne.s32.totalorder %s339, %s355
      %p357 = scmp.eq.s32.totalorder %s29, 0
      %p358 = por %p356, %p357
      %s359 = ssub.s32 %s23, %s30
      %p360 = scmp.eq.s32.totalorder %s359, 0
      %s362 = sadd.s32 %s361, 1
      %s363 = scalar_select %p360, %s361, %s362
      %p366 = pneg %p360
      %p367 = scmp.eq.s32.totalorder %s23, 1
      %p368 = por %p366, %p367
      %p369 = scmp.ne.s32.totalorder %s361, %s364
      %p370 = scmp.eq.s32.totalorder %s23, 0
      %p371 = por %p369, %p370
      %p372 = scmp.ne.s32.totalorder %s361, %s364
      %p373 = scmp.eq.s32.totalorder %s28, 1
      %p374 = por %p372, %p373
      %p375 = scmp.ne.s32.totalorder %s364, %s365
      %p376 = scmp.eq.s32.totalorder %s28, 0
      %p377 = por %p375, %p376
      %p378 = scmp.ne.s32.totalorder %s364, %s365
      %p379 = scmp.eq.s32.totalorder %s29, 1
      %p380 = por %p378, %p379
      %p382 = scmp.ne.s32.totalorder %s365, %s381
      %p383 = scmp.eq.s32.totalorder %s29, 0
      %p384 = por %p382, %p383
      %s386 = sadd.s32 %s385, 1
      %p389 = scmp.eq.s32.totalorder %s23, 1
      %p390 = scmp.ne.s32.totalorder %s385, %s387
      %p391 = scmp.eq.s32.totalorder %s23, 0
      %p392 = por %p390, %p391
      %p393 = scmp.ne.s32.totalorder %s385, %s387
      %p394 = scmp.eq.s32.totalorder %s28, 1
      %p395 = por %p393, %p394
      %p396 = scmp.ne.s32.totalorder %s387, %s388
      %p397 = scmp.eq.s32.totalorder %s28, 0
      %p398 = por %p396, %p397
      %p399 = scmp.ne.s32.totalorder %s387, %s388
      %p400 = scmp.eq.s32.totalorder %s29, 1
      %p401 = por %p399, %p400
      %p403 = scmp.ne.s32.totalorder %s388, %s402
      %p404 = scmp.eq.s32.totalorder %s29, 0
      %p405 = por %p403, %p404
      %s407 = sadd.s32 %s406, 1
      %p410 = scmp.eq.s32.totalorder %s23, 1
      %p411 = scmp.ne.s32.totalorder %s406, %s408
      %p412 = scmp.eq.s32.totalorder %s23, 0
      %p413 = por %p411, %p412
      %p414 = scmp.ne.s32.totalorder %s406, %s408
      %p415 = scmp.eq.s32.totalorder %s28, 1
      %p416 = por %p414, %p415
      %p417 = scmp.ne.s32.totalorder %s408, %s409
      %p418 = scmp.eq.s32.totalorder %s28, 0
      %p419 = por %p417, %p418
      %p420 = scmp.ne.s32.totalorder %s408, %s409
      %p421 = scmp.eq.s32.totalorder %s29, 1
      %p422 = por %p420, %p421
      %p424 = scmp.ne.s32.totalorder %s409, %s423
      %p425 = scmp.eq.s32.totalorder %s29, 0
      %p426 = por %p424, %p425
      %s428 = sadd.s32 %s427, 1
      %p431 = scmp.eq.s32.totalorder %s23, 1
      %p432 = scmp.ne.s32.totalorder %s427, %s429
      %p433 = scmp.eq.s32.totalorder %s23, 0
      %p434 = por %p432, %p433
      %p435 = scmp.ne.s32.totalorder %s427, %s429
      %p436 = scmp.eq.s32.totalorder %s28, 1
      %p437 = por %p435, %p436
      %p438 = scmp.ne.s32.totalorder %s429, %s430
      %p439 = scmp.eq.s32.totalorder %s28, 0
      %p440 = por %p438, %p439
      %p441 = scmp.ne.s32.totalorder %s429, %s430
      %p442 = scmp.eq.s32.totalorder %s29, 1
      %p443 = por %p441, %p442
      %p445 = scmp.ne.s32.totalorder %s430, %s444
      %p446 = scmp.eq.s32.totalorder %s29, 0
      %p447 = por %p445, %p446
      %p448 = scmp.le.s32.totalorder 1, %s23
      %p449 = scmp.lt.s32.totalorder %s23, 3
      %p450 = pnand %p448, %p449
      %p451 = pneg %p450
      // Predicated region
      $region9: #{bart_foreign_encoder_forward.1} parent=5 // pred_check
        _
      $region10: #{bart_foreign_encoder_forward.1} parent=5 // pred_check_branch
        %453 = sbr.rel (%p450) target = $region12
      $region11: #{bart_foreign_encoder_forward.1} parent=5 // pred_region
        %s454 = ssub.s32 %s23, 1
        // Predicated region
        $region13: #{bart_foreign_encoder_forward.1} parent=11 // pred_check
          %p455 = pneg %p44
        $region14: #{bart_foreign_encoder_forward.1} parent=11 // pred_check_branch
          %457 = sbr.rel (%p455) target = $region16
        $region15: #{bart_foreign_encoder_forward.1} parent=11 // pred_region
          _
        $region16: #{bart_foreign_encoder_forward.1} parent=11 // pred_fallthru
          _
        // Predicated region
        $region17: #{bart_foreign_encoder_forward.1} parent=11 // pred_check
          %p458 = pneg %p65
        $region18: #{bart_foreign_encoder_forward.1} parent=11 // pred_check_branch
          %460 = sbr.rel (%p458) target = $region20
        $region19: #{bart_foreign_encoder_forward.1} parent=11 // pred_region
          _
        $region20: #{bart_foreign_encoder_forward.1} parent=11 // pred_fallthru
          _
        // Predicated region
        $region21: #{bart_foreign_encoder_forward.1} parent=11 // pred_check
          %p461 = pneg %p398
        $region22: #{bart_foreign_encoder_forward.1} parent=11 // pred_check_branch
          %463 = sbr.rel (%p461) target = $region24
        $region23: #{bart_foreign_encoder_forward.1} parent=11 // pred_region
          _
        $region24: #{bart_foreign_encoder_forward.1} parent=11 // pred_fallthru
          _
        // Predicated region
        $region25: #{bart_foreign_encoder_forward.1} parent=11 // pred_check
          %p464 = pneg %p419
        $region26: #{bart_foreign_encoder_forward.1} parent=11 // pred_check_branch
          %466 = sbr.rel (%p464) target = $region28
        $region27: #{bart_foreign_encoder_forward.1} parent=11 // pred_region
          _
        $region28: #{bart_foreign_encoder_forward.1} parent=11 // pred_fallthru
          _
      $region12: #{bart_foreign_encoder_forward.1} parent=5 // pred_fallthru
        _
      %p467 = scmp.lt.s32.totalorder %s23, 2
      // Predicated region
      $region29: #{bart_foreign_encoder_forward.1} parent=5 // pred_check
        %p468 = pneg %p467
      $region30: #{bart_foreign_encoder_forward.1} parent=5 // pred_check_branch
        %470 = sbr.rel (%p468) target = $region32
      $region31: #{bart_foreign_encoder_forward.1} parent=5 // pred_region
        // Predicated region
        $region33: #{bart_foreign_encoder_forward.1} parent=31 // pred_check
          %p471 = pneg %p85
        $region34: #{bart_foreign_encoder_forward.1} parent=31 // pred_check_branch
          %473 = sbr.rel (%p471) target = $region36
        $region35: #{bart_foreign_encoder_forward.1} parent=31 // pred_region
          %p474 = scmp.lt.s32.totalorder %s23, 1
          %s475 = scalar_select %p474, %s23, 1
          %s476 = smul.addr %s475, 4
          %s477 = smul.addr %s476, 4
          %s478 = scalar_lea.vmem %s2, %s477
        $region36: #{bart_foreign_encoder_forward.1} parent=31 // pred_fallthru
          _
        // Predicated region
        $region37: #{bart_foreign_encoder_forward.1} parent=31 // pred_check
          %p479 = pneg %p111
        $region38: #{bart_foreign_encoder_forward.1} parent=31 // pred_check_branch
          %481 = sbr.rel (%p479) target = $region40
        $region39: #{bart_foreign_encoder_forward.1} parent=31 // pred_region
          %p482 = scmp.lt.s32.totalorder %s23, 1
          %s483 = scalar_select %p482, %s23, 1
          %s484 = scalar_lea.vmem %s3, %s483
        $region40: #{bart_foreign_encoder_forward.1} parent=31 // pred_fallthru
          _
        // Predicated region
        $region41: #{bart_foreign_encoder_forward.1} parent=31 // pred_check
          %p485 = pneg %p137
        $region42: #{bart_foreign_encoder_forward.1} parent=31 // pred_check_branch
          %487 = sbr.rel (%p485) target = $region44
        $region43: #{bart_foreign_encoder_forward.1} parent=31 // pred_region
          %p488 = scmp.lt.s32.totalorder %s23, 1
          %s489 = scalar_select %p488, %s23, 1
          %s490 = smul.addr %s489, 4
          %s491 = smul.addr %s490, 4
          %s492 = scalar_lea.vmem %s4, %s491
        $region44: #{bart_foreign_encoder_forward.1} parent=31 // pred_fallthru
          _
        // Predicated region
        $region45: #{bart_foreign_encoder_forward.1} parent=31 // pred_check
          %p493 = pneg %p163
        $region46: #{bart_foreign_encoder_forward.1} parent=31 // pred_check_branch
          %495 = sbr.rel (%p493) target = $region48
        $region47: #{bart_foreign_encoder_forward.1} parent=31 // pred_region
          %p496 = scmp.lt.s32.totalorder %s23, 1
          %s497 = scalar_select %p496, %s23, 1
          %s498 = scalar_lea.vmem %s5, %s497
        $region48: #{bart_foreign_encoder_forward.1} parent=31 // pred_fallthru
          _
        // Predicated region
        $region49: #{bart_foreign_encoder_forward.1} parent=31 // pred_check
          %p499 = pneg %p189
        $region50: #{bart_foreign_encoder_forward.1} parent=31 // pred_check_branch
          %501 = sbr.rel (%p499) target = $region52
        $region51: #{bart_foreign_encoder_forward.1} parent=31 // pred_region
          %p502 = scmp.lt.s32.totalorder %s23, 1
          %s503 = scalar_select %p502, %s23, 1
          %s504 = scalar_lea.vmem %s6, %s503
        $region52: #{bart_foreign_encoder_forward.1} parent=31 // pred_fallthru
          _
        // Predicated region
        $region53: #{bart_foreign_encoder_forward.1} parent=31 // pred_check
          %p505 = pneg %p215
        $region54: #{bart_foreign_encoder_forward.1} parent=31 // pred_check_branch
          %507 = sbr.rel (%p505) target = $region56
        $region55: #{bart_foreign_encoder_forward.1} parent=31 // pred_region
          %p508 = scmp.lt.s32.totalorder %s23, 1
          %s509 = scalar_select %p508, %s23, 1
          %s510 = scalar_lea.vmem %s7, %s509
        $region56: #{bart_foreign_encoder_forward.1} parent=31 // pred_fallthru
          _
        // Predicated region
        $region57: #{bart_foreign_encoder_forward.1} parent=31 // pred_check
          %p511 = pneg %p241
        $region58: #{bart_foreign_encoder_forward.1} parent=31 // pred_check_branch
          %513 = sbr.rel (%p511) target = $region60
        $region59: #{bart_foreign_encoder_forward.1} parent=31 // pred_region
          %p514 = scmp.lt.s32.totalorder %s23, 1
          %s515 = scalar_select %p514, %s23, 1
          %s516 = smul.addr %s515, 4
          %s517 = smul.addr %s516, 4
          %s518 = scalar_lea.vmem %s8, %s517
        $region60: #{bart_foreign_encoder_forward.1} parent=31 // pred_fallthru
          _
        // Predicated region
        $region61: #{bart_foreign_encoder_forward.1} parent=31 // pred_check
          %p519 = pneg %p267
        $region62: #{bart_foreign_encoder_forward.1} parent=31 // pred_check_branch
          %521 = sbr.rel (%p519) target = $region64
        $region63: #{bart_foreign_encoder_forward.1} parent=31 // pred_region
          %p522 = scmp.lt.s32.totalorder %s23, 1
          %s523 = scalar_select %p522, %s23, 1
          %s524 = scalar_lea.vmem %s9, %s523
        $region64: #{bart_foreign_encoder_forward.1} parent=31 // pred_fallthru
          _
        // Predicated region
        $region65: #{bart_foreign_encoder_forward.1} parent=31 // pred_check
          %p525 = pneg %p293
        $region66: #{bart_foreign_encoder_forward.1} parent=31 // pred_check_branch
          %527 = sbr.rel (%p525) target = $region68
        $region67: #{bart_foreign_encoder_forward.1} parent=31 // pred_region
          %p528 = scmp.lt.s32.totalorder %s23, 1
          %s529 = scalar_select %p528, %s23, 1
          %s530 = smul.addr %s529, 8
          %s531 = smul.addr %s530, 4
          %s532 = scalar_lea.vmem %s10, %s531
        $region68: #{bart_foreign_encoder_forward.1} parent=31 // pred_fallthru
          _
        // Predicated region
        $region69: #{bart_foreign_encoder_forward.1} parent=31 // pred_check
          %p533 = pneg %p319
        $region70: #{bart_foreign_encoder_forward.1} parent=31 // pred_check_branch
          %535 = sbr.rel (%p533) target = $region72
        $region71: #{bart_foreign_encoder_forward.1} parent=31 // pred_region
          %p536 = scmp.lt.s32.totalorder %s23, 1
          %s537 = scalar_select %p536, %s23, 1
          %s538 = scalar_lea.vmem %s11, %s537
        $region72: #{bart_foreign_encoder_forward.1} parent=31 // pred_fallthru
          _
        // Predicated region
        $region73: #{bart_foreign_encoder_forward.1} parent=31 // pred_check
          %p539 = pneg %p345
        $region74: #{bart_foreign_encoder_forward.1} parent=31 // pred_check_branch
          %541 = sbr.rel (%p539) target = $region76
        $region75: #{bart_foreign_encoder_forward.1} parent=31 // pred_region
          %p542 = scmp.lt.s32.totalorder %s23, 1
          %s543 = scalar_select %p542, %s23, 1
          %s544 = scalar_lea.vmem %s12, %s543
        $region76: #{bart_foreign_encoder_forward.1} parent=31 // pred_fallthru
          _
        // Predicated region
        $region77: #{bart_foreign_encoder_forward.1} parent=31 // pred_check
          %p545 = pneg %p371
        $region78: #{bart_foreign_encoder_forward.1} parent=31 // pred_check_branch
          %547 = sbr.rel (%p545) target = $region80
        $region79: #{bart_foreign_encoder_forward.1} parent=31 // pred_region
          %p548 = scmp.lt.s32.totalorder %s23, 1
          %s549 = scalar_select %p548, %s23, 1
          %s550 = scalar_lea.vmem %s13, %s549
        $region80: #{bart_foreign_encoder_forward.1} parent=31 // pred_fallthru
          _
      $region32: #{bart_foreign_encoder_forward.1} parent=5 // pred_fallthru
        _
      %p551 = scmp.le.s32.totalorder 1, %s23
      %p552 = scmp.lt.s32.totalorder %s23, 3
      %p553 = pnand %p551, %p552
      %p554 = pneg %p553
      // Predicated region
      $region81: #{bart_foreign_encoder_forward.1} parent=5 // pred_check
        _
      $region82: #{bart_foreign_encoder_forward.1} parent=5 // pred_check_branch
        %556 = sbr.rel (%p553) target = $region84
      $region83: #{bart_foreign_encoder_forward.1} parent=5 // pred_region
        %s557 = ssub.s32 %s23, 1
        %p558 = pneg %p44
        %p559 = pneg %p41
        %p560 = pneg %p65
        %p561 = pneg %p62
        %p562 = scmp.lt.s32.totalorder %s28, 1
        %s563 = scalar_select %p562, %s28, 1
        %s564 = smul.addr %s563, 4
        %s565 = smul.addr %s564, 4
        %s566 = scalar_lea.vmem %s2, %s565
        %p567 = pneg %p91
        %p568 = pneg %p88
        %p569 = scmp.lt.s32.totalorder %s28, 1
        %s570 = scalar_select %p569, %s28, 1
        %s571 = scalar_lea.vmem %s3, %s570
        %p572 = pneg %p117
        %p573 = pneg %p114
        %p574 = scmp.lt.s32.totalorder %s28, 1
        %s575 = scalar_select %p574, %s28, 1
        %s576 = smul.addr %s575, 4
        %s577 = smul.addr %s576, 4
        %s578 = scalar_lea.vmem %s4, %s577
        %p579 = pneg %p143
        %p580 = pneg %p140
        %p581 = scmp.lt.s32.totalorder %s28, 1
        %s582 = scalar_select %p581, %s28, 1
        %s583 = scalar_lea.vmem %s5, %s582
        %p584 = pneg %p169
        %p585 = pneg %p166
        %p586 = scmp.lt.s32.totalorder %s28, 1
        %s587 = scalar_select %p586, %s28, 1
        %s588 = scalar_lea.vmem %s6, %s587
        %p589 = pneg %p195
        %p590 = pneg %p192
        %p591 = scmp.lt.s32.totalorder %s28, 1
        %s592 = scalar_select %p591, %s28, 1
        %s593 = scalar_lea.vmem %s7, %s592
        %p594 = pneg %p221
        %p595 = pneg %p218
        %p596 = scmp.lt.s32.totalorder %s28, 1
        %s597 = scalar_select %p596, %s28, 1
        %s598 = smul.addr %s597, 4
        %s599 = smul.addr %s598, 4
        %s600 = scalar_lea.vmem %s8, %s599
        %p601 = pneg %p247
        %p602 = pneg %p244
        %p603 = scmp.lt.s32.totalorder %s28, 1
        %s604 = scalar_select %p603, %s28, 1
        %s605 = scalar_lea.vmem %s9, %s604
        %p606 = pneg %p273
        %p607 = pneg %p270
        %p608 = scmp.lt.s32.totalorder %s28, 1
        %s609 = scalar_select %p608, %s28, 1
        %s610 = smul.addr %s609, 8
        %s611 = smul.addr %s610, 4
        %s612 = scalar_lea.vmem %s10, %s611
        %p613 = pneg %p299
        %p614 = pneg %p296
        %p615 = scmp.lt.s32.totalorder %s28, 1
        %s616 = scalar_select %p615, %s28, 1
        %s617 = scalar_lea.vmem %s11, %s616
        %p618 = pneg %p325
        %p619 = pneg %p322
        %p620 = scmp.lt.s32.totalorder %s28, 1
        %s621 = scalar_select %p620, %s28, 1
        %s622 = scalar_lea.vmem %s12, %s621
        %p623 = pneg %p351
        %p624 = pneg %p348
        %p625 = scmp.lt.s32.totalorder %s28, 1
        %s626 = scalar_select %p625, %s28, 1
        %s627 = scalar_lea.vmem %s13, %s626
        %p628 = pneg %p377
        %p629 = pneg %p374
        %p630 = pneg %p398
        %p631 = pneg %p395
        %p632 = pneg %p419
        %p633 = pneg %p416
        %p634 = pneg %p440
        %p635 = pneg %p437
        %p636 = scmp.lt.s32.totalorder %s28, 1
        %s637 = scalar_select %p636, %s28, 1
        %s638 = smul.addr %s637, 4
        %s639 = smul.addr %s638, 4
        %s640 = scalar_lea.vmem %s2, %s639
        %p641 = scmp.lt.s32.totalorder %s28, 1
        %s642 = scalar_select %p641, %s28, 1
        %s643 = scalar_lea.vmem %s3, %s642
        %p644 = scmp.lt.s32.totalorder %s28, 1
        %s645 = scalar_select %p644, %s28, 1
        %s646 = smul.addr %s645, 4
        %s647 = smul.addr %s646, 4
        %s648 = scalar_lea.vmem %s4, %s647
        %p649 = scmp.lt.s32.totalorder %s28, 1
        %s650 = scalar_select %p649, %s28, 1
        %s651 = scalar_lea.vmem %s5, %s650
        %p652 = scmp.lt.s32.totalorder %s28, 1
        %s653 = scalar_select %p652, %s28, 1
        %s654 = scalar_lea.vmem %s6, %s653
        %p655 = scmp.lt.s32.totalorder %s28, 1
        %s656 = scalar_select %p655, %s28, 1
        %s657 = scalar_lea.vmem %s7, %s656
        %p658 = scmp.lt.s32.totalorder %s28, 1
        %s659 = scalar_select %p658, %s28, 1
        %s660 = smul.addr %s659, 4
        %s661 = smul.addr %s660, 4
        %s662 = scalar_lea.vmem %s8, %s661
        %p663 = scmp.lt.s32.totalorder %s28, 1
        %s664 = scalar_select %p663, %s28, 1
        %s665 = scalar_lea.vmem %s9, %s664
        %p666 = scmp.lt.s32.totalorder %s28, 1
        %s667 = scalar_select %p666, %s28, 1
        %s668 = smul.addr %s667, 8
        %s669 = smul.addr %s668, 4
        %s670 = scalar_lea.vmem %s10, %s669
        %p671 = scmp.lt.s32.totalorder %s28, 1
        %s672 = scalar_select %p671, %s28, 1
        %s673 = scalar_lea.vmem %s11, %s672
        %p674 = scmp.lt.s32.totalorder %s28, 1
        %s675 = scalar_select %p674, %s28, 1
        %s676 = scalar_lea.vmem %s12, %s675
        %p677 = scmp.lt.s32.totalorder %s28, 1
        %s678 = scalar_select %p677, %s28, 1
        %s679 = scalar_lea.vmem %s13, %s678
        %p681 = scmp.eq.s32.totalorder %s28, 0
        // Predicated region
        $region85: #{bart_foreign_encoder_forward.1} parent=83 // pred_check
          %p682 = pneg %p681
        $region86: #{bart_foreign_encoder_forward.1} parent=83 // pred_check_branch
          %684 = sbr.rel (%p682) target = $region88
        $region87: #{bart_foreign_encoder_forward.1} parent=83 // pred_region
          %v685 = vld [vmem:[%s0] sm:$0xff]
          %v686 = vld [vmem:[%s0 + $0x8] sm:$0xff]
          %v687 = vmul.f32 %v685, 5.656854
          %v688 = vmul.f32 %v686, 5.656854
          %v689 = vld [vmem:[%s1] sm:$0xff]
          %v690 = vadd.f32 %v687, %v689
          %v691 = vadd.f32 %v688, %v689
          %vm692 = vcmask 261120
          %693 = vst.msk [vmem:[#allocation2] sm:$0xff] %vm692, %v690
          %694 = vst.msk [vmem:[#allocation2 + $0x8] sm:$0xff] %vm692, %v691
        $region88: #{bart_foreign_encoder_forward.1} parent=83 // pred_fallthru
          _
        %v695 = vld [vmem:[#allocation2] sm:$0xff]
        %v696 = vld [vmem:[#allocation2 + $0x8] sm:$0xff]
        %v697 = vld [vmem:[%s654] sm:$0x1]
        %v698 = vld [vmem:[%s657] sm:$0x1]
        %vm699 = vcmask 261120
        %v700 = vsel %vm699, %v695, 0.0
        %701 = vadd.xlane.f32.xlu0 %v700
        %v702 = vpop.xlane.xlu0 %701
        %v703 = vsel %vm699, %v696, 0.0
        %704 = vadd.xlane.f32.xlu0 %v703
        %v705 = vpop.xlane.xlu0 %704
        %v706 = vrcp.pop 32.0
        %v707 = vmul.f32 %v702, %v706
        %v708 = vmul.f32 %v705, %v706
        %v709 = vsub.f32 %v695, %v707
        %v710 = vsub.f32 %v696, %v708
        %v711 = vmul.f32 %v709, %v709
        %v712 = vmul.f32 %v710, %v710
        %v713 = vsel %vm699, %v711, 0.0
        %714 = vadd.xlane.f32.xlu0 %v713
        %v715 = vpop.xlane.xlu0 %714
        %v716 = vsel %vm699, %v712, 0.0
        %717 = vadd.xlane.f32.xlu0 %v716
        %v718 = vpop.xlane.xlu0 %717
        %v719 = vmul.f32 %v715, %v706
        %v720 = vmul.f32 %v718, %v706
        %v721 = vadd.f32 %v719, 1e-05
        %v722 = vadd.f32 %v720, 1e-05
        %v723 = vrsqrt.pop %v721
        %v724 = vrsqrt.pop %v722
        %v725 = vmul.f32 %v709, %v723
        %v726 = vmul.f32 %v710, %v724
        %v728 = vlaneseq
        %v729 = vshrl.u32 %v728, 7
        %v730 = vsub.s32 0, %v729
        %v731 = vrot.slane %v697, %v730
        %v733 = vmul.f32 %v725, %v731
        %v734 = vmul.f32 %v726, %v731
        %v736 = vlaneseq
        %v737 = vshrl.u32 %v736, 7
        %v738 = vsub.s32 0, %v737
        %v739 = vrot.slane %v698, %v738
        %v741 = vadd.f32 %v733, %v739
        %v742 = vadd.f32 %v734, %v739
        %v743 = vpack.c.bf16 %v742, %v741
        %v744 = vld [vmem:[%s640] sm:$0xf]
        %v745 = vld [vmem:[%s640 + $0x4] sm:$0xf]
        %v746 = vld [vmem:[%s640 + $0x8] sm:$0xf]
        %v747 = vld [vmem:[%s640 + $0xc] sm:$0xf]
        %v748 = vld [vmem:[%s643] sm:$0x1]
        %v750 = vlaneseq
        %v751 = vshrl.u32 %v750, 7
        %v752 = vsub.s32 0, %v751
        %v753 = vrot.slane %v748, %v752
        %v759 = vunpack.c.l.b16 %v744
        %v760 = vunpack.c.l.b16 %v745
        %v761 = vunpack.c.l.b16 %v746
        %v762 = vunpack.c.l.b16 %v747
        %v763 = vpack.c.b16 %v760, %v759
        %v764 = vpack.c.b16 %v762, %v761
        %v768 = vsel %vm699, %v743, 0
        %770 = vmatprep.subr.bf16.mxu0 0
        %771 = vmatpush1.bf16.msra.mxu0 %v763
        %772 = vmatprep.subr.bf16.mxu0 0
        %773 = vmatpush1.bf16.msra.mxu0 %v764
        %774 = vmatprep.subr.bf16.mxu0 0
        %775 = vmatpush1.bf16.msra.mxu0 0
        %776 = vmatprep.subr.bf16.mxu0 0
        %777 = vmatpush1.bf16.msra.mxu0 0
        %778 = vmatprep.subr.bf16.mxu0 0
        %779 = vmatpush1.bf16.msra.mxu0 0
        %780 = vmatprep.subr.bf16.mxu0 0
        %781 = vmatpush1.bf16.msra.mxu0 0
        %782 = vmatprep.subr.bf16.mxu0 0
        %783 = vmatpush1.bf16.msra.mxu0 0
        %784 = vmatprep.subr.bf16.mxu0 0
        %785 = vmatpush1.bf16.msra.mxu0 0
        %786 = vmatprep.subr.bf16.mxu0 0
        %787 = vmatpush1.bf16.msra.mxu0 0
        %788 = vmatprep.subr.bf16.mxu0 0
        %789 = vmatpush1.bf16.msra.mxu0 0
        %790 = vmatprep.subr.bf16.mxu0 0
        %791 = vmatpush1.bf16.msra.mxu0 0
        %792 = vmatprep.subr.bf16.mxu0 0
        %793 = vmatpush1.bf16.msra.mxu0 0
        %794 = vmatprep.subr.bf16.mxu0 0
        %795 = vmatpush1.bf16.msra.mxu0 0
        %796 = vmatprep.subr.bf16.mxu0 0
        %797 = vmatpush1.bf16.msra.mxu0 0
        %798 = vmatprep.subr.bf16.mxu0 0
        %799 = vmatpush1.bf16.msra.mxu0 0
        %800 = vmatprep.subr.bf16.mxu0 0
        %801 = vmatpush1.bf16.msra.mxu0 0
        %802 = vmatprep.mubr.bf16.mxu0 0
        %803 = vmatmul.mubr.bf16.gmra.mrb[0].mxu0 %v768
        %v804 = vpop.f32.mrb[0].mxu0
        %v805 = vadd.f32 %v753, %v804
        %v806 = vpop.f32.mrb[0].mxu0
        %v807 = vpop.f32.mrb[0].mxu0
        %v808 = vadd.f32 %v753, %v807
        %v809 = vpop.f32.mrb[0].mxu0
        %810 = vdwg.mxu0
        %812 = vrot.lane.b32.xlu0 %v805, 96
        %v813 = vpop.permute.xlu0 %812
        %vm814 = vcmask 31744
        %v815 = vsel %vm814, %v805, 0
        %v817 = vsel %vm814, %v813, 0
        %819 = vmatprep.subr.mxu0 0.0
        %820 = vmatpush1.xpose.msra.mxu0 %v817
        %821 = vmatprep.subr.mxu0 0.0
        %822 = vmatpush1.xpose.msra.mxu0 0.0
        %823 = vmatprep.subr.mxu0 0.0
        %824 = vmatpush1.xpose.msra.mxu0 0.0
        %825 = vmatprep.subr.mxu0 0.0
        %826 = vmatpush1.xpose.msra.mxu0 0.0
        %827 = vmatprep.subr.mxu0 0.0
        %828 = vmatpush1.xpose.msra.mxu0 0.0
        %829 = vmatprep.subr.mxu0 0.0
        %830 = vmatpush1.xpose.msra.mxu0 0.0
        %831 = vmatprep.subr.mxu0 0.0
        %832 = vmatpush1.xpose.msra.mxu0 0.0
        %833 = vmatprep.subr.mxu0 0.0
        %834 = vmatpush1.xpose.msra.mxu0 0.0
        %835 = vmatprep.subr.mxu0 0.0
        %836 = vmatpush1.xpose.msra.mxu0 0.0
        %837 = vmatprep.subr.mxu0 0.0
        %838 = vmatpush1.xpose.msra.mxu0 0.0
        %839 = vmatprep.subr.mxu0 0.0
        %840 = vmatpush1.xpose.msra.mxu0 0.0
        %841 = vmatprep.subr.mxu0 0.0
        %842 = vmatpush1.xpose.msra.mxu0 0.0
        %843 = vmatprep.subr.mxu0 0.0
        %844 = vmatpush1.xpose.msra.mxu0 0.0
        %845 = vmatprep.subr.mxu0 0.0
        %846 = vmatpush1.xpose.msra.mxu0 0.0
        %847 = vmatprep.subr.mxu0 0.0
        %848 = vmatpush1.xpose.msra.mxu0 0.0
        %849 = vmatprep.subr.mxu0 0.0
        %850 = vmatpush1.xpose.msra.mxu0 0.0
        %851 = vmatprep.subr.mxu0 0.0
        %852 = vmatpush1.xpose.msra.mxu0 0.0
        %853 = vmatprep.subr.mxu0 0.0
        %854 = vmatpush1.xpose.msra.mxu0 0.0
        %855 = vmatprep.subr.mxu0 0.0
        %856 = vmatpush1.xpose.msra.mxu0 0.0
        %857 = vmatprep.subr.mxu0 0.0
        %858 = vmatpush1.xpose.msra.mxu0 0.0
        %859 = vmatprep.subr.mxu0 0.0
        %860 = vmatpush1.xpose.msra.mxu0 0.0
        %861 = vmatprep.subr.mxu0 0.0
        %862 = vmatpush1.xpose.msra.mxu0 0.0
        %863 = vmatprep.subr.mxu0 0.0
        %864 = vmatpush1.xpose.msra.mxu0 0.0
        %865 = vmatprep.subr.mxu0 0.0
        %866 = vmatpush1.xpose.msra.mxu0 0.0
        %867 = vmatprep.subr.mxu0 0.0
        %868 = vmatpush1.xpose.msra.mxu0 0.0
        %869 = vmatprep.subr.mxu0 0.0
        %870 = vmatpush1.xpose.msra.mxu0 0.0
        %871 = vmatprep.subr.mxu0 0.0
        %872 = vmatpush1.xpose.msra.mxu0 0.0
        %873 = vmatprep.subr.mxu0 0.0
        %874 = vmatpush1.xpose.msra.mxu0 0.0
        %875 = vmatprep.subr.mxu0 0.0
        %876 = vmatpush1.xpose.msra.mxu0 0.0
        %877 = vmatprep.subr.mxu0 0.0
        %878 = vmatpush1.xpose.msra.mxu0 0.0
        %879 = vmatprep.subr.mxu0 0.0
        %880 = vmatpush1.xpose.msra.mxu0 0.0
        %881 = vmatprep.subr.mxu0 0.0
        %882 = vmatpush1.xpose.msra.mxu0 0.0
        %883 = vmatprep.mubr.f32.mxu0 0.0
        %884 = vmatmul.mubr.f32.gmra.mrb[0].mxu0 %v815
        %v885 = vpop.f32.mrb[0].mxu0
        %v886 = vadd.f32 0.0, %v885
        %v887 = vpop.f32.mrb[0].mxu0
        %888 = vdwg.mxu0
        %890 = vrot.lane.b32.xlu0 %v808, 96
        %v891 = vpop.permute.xlu0 %890
        %v892 = vsel %vm814, %v808, 0
        %v894 = vsel %vm814, %v891, 0
        %896 = vmatprep.subr.mxu0 0.0
        %897 = vmatpush1.xpose.msra.mxu0 %v894
        %898 = vmatprep.subr.mxu0 0.0
        %899 = vmatpush1.xpose.msra.mxu0 0.0
        %900 = vmatprep.subr.mxu0 0.0
        %901 = vmatpush1.xpose.msra.mxu0 0.0
        %902 = vmatprep.subr.mxu0 0.0
        %903 = vmatpush1.xpose.msra.mxu0 0.0
        %904 = vmatprep.subr.mxu0 0.0
        %905 = vmatpush1.xpose.msra.mxu0 0.0
        %906 = vmatprep.subr.mxu0 0.0
        %907 = vmatpush1.xpose.msra.mxu0 0.0
        %908 = vmatprep.subr.mxu0 0.0
        %909 = vmatpush1.xpose.msra.mxu0 0.0
        %910 = vmatprep.subr.mxu0 0.0
        %911 = vmatpush1.xpose.msra.mxu0 0.0
        %912 = vmatprep.subr.mxu0 0.0
        %913 = vmatpush1.xpose.msra.mxu0 0.0
        %914 = vmatprep.subr.mxu0 0.0
        %915 = vmatpush1.xpose.msra.mxu0 0.0
        %916 = vmatprep.subr.mxu0 0.0
        %917 = vmatpush1.xpose.msra.mxu0 0.0
        %918 = vmatprep.subr.mxu0 0.0
        %919 = vmatpush1.xpose.msra.mxu0 0.0
        %920 = vmatprep.subr.mxu0 0.0
        %921 = vmatpush1.xpose.msra.mxu0 0.0
        %922 = vmatprep.subr.mxu0 0.0
        %923 = vmatpush1.xpose.msra.mxu0 0.0
        %924 = vmatprep.subr.mxu0 0.0
        %925 = vmatpush1.xpose.msra.mxu0 0.0
        %926 = vmatprep.subr.mxu0 0.0
        %927 = vmatpush1.xpose.msra.mxu0 0.0
        %928 = vmatprep.subr.mxu0 0.0
        %929 = vmatpush1.xpose.msra.mxu0 0.0
        %930 = vmatprep.subr.mxu0 0.0
        %931 = vmatpush1.xpose.msra.mxu0 0.0
        %932 = vmatprep.subr.mxu0 0.0
        %933 = vmatpush1.xpose.msra.mxu0 0.0
        %934 = vmatprep.subr.mxu0 0.0
        %935 = vmatpush1.xpose.msra.mxu0 0.0
        %936 = vmatprep.subr.mxu0 0.0
        %937 = vmatpush1.xpose.msra.mxu0 0.0
        %938 = vmatprep.subr.mxu0 0.0
        %939 = vmatpush1.xpose.msra.mxu0 0.0
        %940 = vmatprep.subr.mxu0 0.0
        %941 = vmatpush1.xpose.msra.mxu0 0.0
        %942 = vmatprep.subr.mxu0 0.0
        %943 = vmatpush1.xpose.msra.mxu0 0.0
        %944 = vmatprep.subr.mxu0 0.0
        %945 = vmatpush1.xpose.msra.mxu0 0.0
        %946 = vmatprep.subr.mxu0 0.0
        %947 = vmatpush1.xpose.msra.mxu0 0.0
        %948 = vmatprep.subr.mxu0 0.0
        %949 = vmatpush1.xpose.msra.mxu0 0.0
        %950 = vmatprep.subr.mxu0 0.0
        %951 = vmatpush1.xpose.msra.mxu0 0.0
        %952 = vmatprep.subr.mxu0 0.0
        %953 = vmatpush1.xpose.msra.mxu0 0.0
        %954 = vmatprep.subr.mxu0 0.0
        %955 = vmatpush1.xpose.msra.mxu0 0.0
        %956 = vmatprep.subr.mxu0 0.0
        %957 = vmatpush1.xpose.msra.mxu0 0.0
        %958 = vmatprep.subr.mxu0 0.0
        %959 = vmatpush1.xpose.msra.mxu0 0.0
        %960 = vmatprep.mubr.f32.mxu0 0.0
        %961 = vmatmul.mubr.f32.gmra.mrb[0].mxu0 %v892
        %v962 = vpop.f32.mrb[0].mxu0
        %v963 = vadd.f32 0.0, %v962
        %v964 = vpop.f32.mrb[0].mxu0
        %965 = vdwg.mxu0
        %vm966 = vcmask 64512
        %v967 = vsel %vm966, %v886, -inf
        %968 = vmax.xlane.f32.xlu0 %v967
        %v969 = vpop.xlane.xlu0 %968
        %v970 = vsel %vm966, %v963, -inf
        %971 = vmax.xlane.f32.xlu0 %v970
        %v972 = vpop.xlane.xlu0 %971
        %v973 = vsub.f32 %v886, %v969
        %v974 = vsub.f32 %v963, %v972
        %v975 = vmul.f32 %v973, 1.442695
        %v976 = vpow.pop %v975
        %v977 = vmul.f32 %v974, 1.442695
        %v978 = vpow.pop %v977
        %v979 = vsel %vm966, %v976, 0.0
        %980 = vadd.xlane.f32.xlu0 %v979
        %v981 = vpop.xlane.xlu0 %980
        %v982 = vsel %vm966, %v978, 0.0
        %983 = vadd.xlane.f32.xlu0 %v982
        %v984 = vpop.xlane.xlu0 %983
        %v985 = vrcp.pop %v981
        %v986 = vrcp.pop %v984
        %v987 = vmul.f32 %v976, %v985
        %v988 = vmul.f32 %v978, %v986
        %989 = vrot.lane.b32.xlu0 %v805, 64
        %v990 = vpop.permute.xlu0 %989
        %v993 = vsel %vm966, %v987, 0
        %995 = vmatprep.subr.mxu0 0.0
        %996 = vmatpush1.msra.mxu0 %v990
        %997 = vmatprep.subr.mxu0 0.0
        %998 = vmatpush1.msra.mxu0 0.0
        %999 = vmatprep.subr.mxu0 0.0
        %1000 = vmatpush1.msra.mxu0 0.0
        %1001 = vmatprep.subr.mxu0 0.0
        %1002 = vmatpush1.msra.mxu0 0.0
        %1003 = vmatprep.subr.mxu0 0.0
        %1004 = vmatpush1.msra.mxu0 0.0
        %1005 = vmatprep.subr.mxu0 0.0
        %1006 = vmatpush1.msra.mxu0 0.0
        %1007 = vmatprep.subr.mxu0 0.0
        %1008 = vmatpush1.msra.mxu0 0.0
        %1009 = vmatprep.subr.mxu0 0.0
        %1010 = vmatpush1.msra.mxu0 0.0
        %1011 = vmatprep.subr.mxu0 0.0
        %1012 = vmatpush1.msra.mxu0 0.0
        %1013 = vmatprep.subr.mxu0 0.0
        %1014 = vmatpush1.msra.mxu0 0.0
        %1015 = vmatprep.subr.mxu0 0.0
        %1016 = vmatpush1.msra.mxu0 0.0
        %1017 = vmatprep.subr.mxu0 0.0
        %1018 = vmatpush1.msra.mxu0 0.0
        %1019 = vmatprep.subr.mxu0 0.0
        %1020 = vmatpush1.msra.mxu0 0.0
        %1021 = vmatprep.subr.mxu0 0.0
        %1022 = vmatpush1.msra.mxu0 0.0
        %1023 = vmatprep.subr.mxu0 0.0
        %1024 = vmatpush1.msra.mxu0 0.0
        %1025 = vmatprep.subr.mxu0 0.0
        %1026 = vmatpush1.msra.mxu0 0.0
        %1027 = vmatprep.subr.mxu0 0.0
        %1028 = vmatpush1.msra.mxu0 0.0
        %1029 = vmatprep.subr.mxu0 0.0
        %1030 = vmatpush1.msra.mxu0 0.0
        %1031 = vmatprep.subr.mxu0 0.0
        %1032 = vmatpush1.msra.mxu0 0.0
        %1033 = vmatprep.subr.mxu0 0.0
        %1034 = vmatpush1.msra.mxu0 0.0
        %1035 = vmatprep.subr.mxu0 0.0
        %1036 = vmatpush1.msra.mxu0 0.0
        %1037 = vmatprep.subr.mxu0 0.0
        %1038 = vmatpush1.msra.mxu0 0.0
        %1039 = vmatprep.subr.mxu0 0.0
        %1040 = vmatpush1.msra.mxu0 0.0
        %1041 = vmatprep.subr.mxu0 0.0
        %1042 = vmatpush1.msra.mxu0 0.0
        %1043 = vmatprep.subr.mxu0 0.0
        %1044 = vmatpush1.msra.mxu0 0.0
        %1045 = vmatprep.subr.mxu0 0.0
        %1046 = vmatpush1.msra.mxu0 0.0
        %1047 = vmatprep.subr.mxu0 0.0
        %1048 = vmatpush1.msra.mxu0 0.0
        %1049 = vmatprep.subr.mxu0 0.0
        %1050 = vmatpush1.msra.mxu0 0.0
        %1051 = vmatprep.subr.mxu0 0.0
        %1052 = vmatpush1.msra.mxu0 0.0
        %1053 = vmatprep.subr.mxu0 0.0
        %1054 = vmatpush1.msra.mxu0 0.0
        %1055 = vmatprep.subr.mxu0 0.0
        %1056 = vmatpush1.msra.mxu0 0.0
        %1057 = vmatprep.subr.mxu0 0.0
        %1058 = vmatpush1.msra.mxu0 0.0
        %1059 = vmatprep.mubr.f32.mxu0 0.0
        %1060 = vmatmul.mubr.f32.gmra.mrb[0].mxu0 %v993
        %v1061 = vpop.f32.mrb[0].mxu0
        %v1062 = vadd.f32 0.0, %v1061
        %v1063 = vpop.f32.mrb[0].mxu0
        %1064 = vdwg.mxu0
        %1065 = vrot.lane.b32.xlu0 %v808, 64
        %v1066 = vpop.permute.xlu0 %1065
        %v1069 = vsel %vm966, %v988, 0
        %1071 = vmatprep.subr.mxu0 0.0
        %1072 = vmatpush1.msra.mxu0 %v1066
        %1073 = vmatprep.subr.mxu0 0.0
        %1074 = vmatpush1.msra.mxu0 0.0
        %1075 = vmatprep.subr.mxu0 0.0
        %1076 = vmatpush1.msra.mxu0 0.0
        %1077 = vmatprep.subr.mxu0 0.0
        %1078 = vmatpush1.msra.mxu0 0.0
        %1079 = vmatprep.subr.mxu0 0.0
        %1080 = vmatpush1.msra.mxu0 0.0
        %1081 = vmatprep.subr.mxu0 0.0
        %1082 = vmatpush1.msra.mxu0 0.0
        %1083 = vmatprep.subr.mxu0 0.0
        %1084 = vmatpush1.msra.mxu0 0.0
        %1085 = vmatprep.subr.mxu0 0.0
        %1086 = vmatpush1.msra.mxu0 0.0
        %1087 = vmatprep.subr.mxu0 0.0
        %1088 = vmatpush1.msra.mxu0 0.0
        %1089 = vmatprep.subr.mxu0 0.0
        %1090 = vmatpush1.msra.mxu0 0.0
        %1091 = vmatprep.subr.mxu0 0.0
        %1092 = vmatpush1.msra.mxu0 0.0
        %1093 = vmatprep.subr.mxu0 0.0
        %1094 = vmatpush1.msra.mxu0 0.0
        %1095 = vmatprep.subr.mxu0 0.0
        %1096 = vmatpush1.msra.mxu0 0.0
        %1097 = vmatprep.subr.mxu0 0.0
        %1098 = vmatpush1.msra.mxu0 0.0
        %1099 = vmatprep.subr.mxu0 0.0
        %1100 = vmatpush1.msra.mxu0 0.0
        %1101 = vmatprep.subr.mxu0 0.0
        %1102 = vmatpush1.msra.mxu0 0.0
        %1103 = vmatprep.subr.mxu0 0.0
        %1104 = vmatpush1.msra.mxu0 0.0
        %1105 = vmatprep.subr.mxu0 0.0
        %1106 = vmatpush1.msra.mxu0 0.0
        %1107 = vmatprep.subr.mxu0 0.0
        %1108 = vmatpush1.msra.mxu0 0.0
        %1109 = vmatprep.subr.mxu0 0.0
        %1110 = vmatpush1.msra.mxu0 0.0
        %1111 = vmatprep.subr.mxu0 0.0
        %1112 = vmatpush1.msra.mxu0 0.0
        %1113 = vmatprep.subr.mxu0 0.0
        %1114 = vmatpush1.msra.mxu0 0.0
        %1115 = vmatprep.subr.mxu0 0.0
        %1116 = vmatpush1.msra.mxu0 0.0
        %1117 = vmatprep.subr.mxu0 0.0
        %1118 = vmatpush1.msra.mxu0 0.0
        %1119 = vmatprep.subr.mxu0 0.0
        %1120 = vmatpush1.msra.mxu0 0.0
        %1121 = vmatprep.subr.mxu0 0.0
        %1122 = vmatpush1.msra.mxu0 0.0
        %1123 = vmatprep.subr.mxu0 0.0
        %1124 = vmatpush1.msra.mxu0 0.0
        %1125 = vmatprep.subr.mxu0 0.0
        %1126 = vmatpush1.msra.mxu0 0.0
        %1127 = vmatprep.subr.mxu0 0.0
        %1128 = vmatpush1.msra.mxu0 0.0
        %1129 = vmatprep.subr.mxu0 0.0
        %1130 = vmatpush1.msra.mxu0 0.0
        %1131 = vmatprep.subr.mxu0 0.0
        %1132 = vmatpush1.msra.mxu0 0.0
        %1133 = vmatprep.subr.mxu0 0.0
        %1134 = vmatpush1.msra.mxu0 0.0
        %1135 = vmatprep.mubr.f32.mxu0 0.0
        %1136 = vmatmul.mubr.f32.gmra.mrb[0].mxu0 %v1069
        %v1137 = vpop.f32.mrb[0].mxu0
        %v1138 = vadd.f32 0.0, %v1137
        %v1139 = vpop.f32.mrb[0].mxu0
        %1140 = vdwg.mxu0
        %1141 = vrot.lane.b32.xlu0 %v805, 124
        %v1142 = vpop.permute.xlu0 %1141
        %1143 = vrot.lane.b32.xlu0 %v805, 92
        %v1144 = vpop.permute.xlu0 %1143
        %v1145 = vsel %vm814, %v1142, 0
        %v1147 = vsel %vm814, %v1144, 0
        %1149 = vmatprep.subr.mxu0 0.0
        %1150 = vmatpush1.xpose.msra.mxu0 %v1147
        %1151 = vmatprep.subr.mxu0 0.0
        %1152 = vmatpush1.xpose.msra.mxu0 0.0
        %1153 = vmatprep.subr.mxu0 0.0
        %1154 = vmatpush1.xpose.msra.mxu0 0.0
        %1155 = vmatprep.subr.mxu0 0.0
        %1156 = vmatpush1.xpose.msra.mxu0 0.0
        %1157 = vmatprep.subr.mxu0 0.0
        %1158 = vmatpush1.xpose.msra.mxu0 0.0
        %1159 = vmatprep.subr.mxu0 0.0
        %1160 = vmatpush1.xpose.msra.mxu0 0.0
        %1161 = vmatprep.subr.mxu0 0.0
        %1162 = vmatpush1.xpose.msra.mxu0 0.0
        %1163 = vmatprep.subr.mxu0 0.0
        %1164 = vmatpush1.xpose.msra.mxu0 0.0
        %1165 = vmatprep.subr.mxu0 0.0
        %1166 = vmatpush1.xpose.msra.mxu0 0.0
        %1167 = vmatprep.subr.mxu0 0.0
        %1168 = vmatpush1.xpose.msra.mxu0 0.0
        %1169 = vmatprep.subr.mxu0 0.0
        %1170 = vmatpush1.xpose.msra.mxu0 0.0
        %1171 = vmatprep.subr.mxu0 0.0
        %1172 = vmatpush1.xpose.msra.mxu0 0.0
        %1173 = vmatprep.subr.mxu0 0.0
        %1174 = vmatpush1.xpose.msra.mxu0 0.0
        %1175 = vmatprep.subr.mxu0 0.0
        %1176 = vmatpush1.xpose.msra.mxu0 0.0
        %1177 = vmatprep.subr.mxu0 0.0
        %1178 = vmatpush1.xpose.msra.mxu0 0.0
        %1179 = vmatprep.subr.mxu0 0.0
        %1180 = vmatpush1.xpose.msra.mxu0 0.0
        %1181 = vmatprep.subr.mxu0 0.0
        %1182 = vmatpush1.xpose.msra.mxu0 0.0
        %1183 = vmatprep.subr.mxu0 0.0
        %1184 = vmatpush1.xpose.msra.mxu0 0.0
        %1185 = vmatprep.subr.mxu0 0.0
        %1186 = vmatpush1.xpose.msra.mxu0 0.0
        %1187 = vmatprep.subr.mxu0 0.0
        %1188 = vmatpush1.xpose.msra.mxu0 0.0
        %1189 = vmatprep.subr.mxu0 0.0
        %1190 = vmatpush1.xpose.msra.mxu0 0.0
        %1191 = vmatprep.subr.mxu0 0.0
        %1192 = vmatpush1.xpose.msra.mxu0 0.0
        %1193 = vmatprep.subr.mxu0 0.0
        %1194 = vmatpush1.xpose.msra.mxu0 0.0
        %1195 = vmatprep.subr.mxu0 0.0
        %1196 = vmatpush1.xpose.msra.mxu0 0.0
        %1197 = vmatprep.subr.mxu0 0.0
        %1198 = vmatpush1.xpose.msra.mxu0 0.0
        %1199 = vmatprep.subr.mxu0 0.0
        %1200 = vmatpush1.xpose.msra.mxu0 0.0
        %1201 = vmatprep.subr.mxu0 0.0
        %1202 = vmatpush1.xpose.msra.mxu0 0.0
        %1203 = vmatprep.subr.mxu0 0.0
        %1204 = vmatpush1.xpose.msra.mxu0 0.0
        %1205 = vmatprep.subr.mxu0 0.0
        %1206 = vmatpush1.xpose.msra.mxu0 0.0
        %1207 = vmatprep.subr.mxu0 0.0
        %1208 = vmatpush1.xpose.msra.mxu0 0.0
        %1209 = vmatprep.subr.mxu0 0.0
        %1210 = vmatpush1.xpose.msra.mxu0 0.0
        %1211 = vmatprep.subr.mxu0 0.0
        %1212 = vmatpush1.xpose.msra.mxu0 0.0
        %1213 = vmatprep.mubr.f32.mxu0 0.0
        %1214 = vmatmul.mubr.f32.gmra.mrb[0].mxu0 %v1145
        %v1215 = vpop.f32.mrb[0].mxu0
        %v1216 = vadd.f32 0.0, %v1215
        %v1217 = vpop.f32.mrb[0].mxu0
        %1218 = vdwg.mxu0
        %1219 = vrot.lane.b32.xlu0 %v808, 124
        %v1220 = vpop.permute.xlu0 %1219
        %1221 = vrot.lane.b32.xlu0 %v808, 92
        %v1222 = vpop.permute.xlu0 %1221
        %v1223 = vsel %vm814, %v1220, 0
        %v1225 = vsel %vm814, %v1222, 0
        %1227 = vmatprep.subr.mxu0 0.0
        %1228 = vmatpush1.xpose.msra.mxu0 %v1225
        %1229 = vmatprep.subr.mxu0 0.0
        %1230 = vmatpush1.xpose.msra.mxu0 0.0
        %1231 = vmatprep.subr.mxu0 0.0
        %1232 = vmatpush1.xpose.msra.mxu0 0.0
        %1233 = vmatprep.subr.mxu0 0.0
        %1234 = vmatpush1.xpose.msra.mxu0 0.0
        %1235 = vmatprep.subr.mxu0 0.0
        %1236 = vmatpush1.xpose.msra.mxu0 0.0
        %1237 = vmatprep.subr.mxu0 0.0
        %1238 = vmatpush1.xpose.msra.mxu0 0.0
        %1239 = vmatprep.subr.mxu0 0.0
        %1240 = vmatpush1.xpose.msra.mxu0 0.0
        %1241 = vmatprep.subr.mxu0 0.0
        %1242 = vmatpush1.xpose.msra.mxu0 0.0
        %1243 = vmatprep.subr.mxu0 0.0
        %1244 = vmatpush1.xpose.msra.mxu0 0.0
        %1245 = vmatprep.subr.mxu0 0.0
        %1246 = vmatpush1.xpose.msra.mxu0 0.0
        %1247 = vmatprep.subr.mxu0 0.0
        %1248 = vmatpush1.xpose.msra.mxu0 0.0
        %1249 = vmatprep.subr.mxu0 0.0
        %1250 = vmatpush1.xpose.msra.mxu0 0.0
        %1251 = vmatprep.subr.mxu0 0.0
        %1252 = vmatpush1.xpose.msra.mxu0 0.0
        %1253 = vmatprep.subr.mxu0 0.0
        %1254 = vmatpush1.xpose.msra.mxu0 0.0
        %1255 = vmatprep.subr.mxu0 0.0
        %1256 = vmatpush1.xpose.msra.mxu0 0.0
        %1257 = vmatprep.subr.mxu0 0.0
        %1258 = vmatpush1.xpose.msra.mxu0 0.0
        %1259 = vmatprep.subr.mxu0 0.0
        %1260 = vmatpush1.xpose.msra.mxu0 0.0
        %1261 = vmatprep.subr.mxu0 0.0
        %1262 = vmatpush1.xpose.msra.mxu0 0.0
        %1263 = vmatprep.subr.mxu0 0.0
        %1264 = vmatpush1.xpose.msra.mxu0 0.0
        %1265 = vmatprep.subr.mxu0 0.0
        %1266 = vmatpush1.xpose.msra.mxu0 0.0
        %1267 = vmatprep.subr.mxu0 0.0
        %1268 = vmatpush1.xpose.msra.mxu0 0.0
        %1269 = vmatprep.subr.mxu0 0.0
        %1270 = vmatpush1.xpose.msra.mxu0 0.0
        %1271 = vmatprep.subr.mxu0 0.0
        %1272 = vmatpush1.xpose.msra.mxu0 0.0
        %1273 = vmatprep.subr.mxu0 0.0
        %1274 = vmatpush1.xpose.msra.mxu0 0.0
        %1275 = vmatprep.subr.mxu0 0.0
        %1276 = vmatpush1.xpose.msra.mxu0 0.0
        %1277 = vmatprep.subr.mxu0 0.0
        %1278 = vmatpush1.xpose.msra.mxu0 0.0
        %1279 = vmatprep.subr.mxu0 0.0
        %1280 = vmatpush1.xpose.msra.mxu0 0.0
        %1281 = vmatprep.subr.mxu0 0.0
        %1282 = vmatpush1.xpose.msra.mxu0 0.0
        %1283 = vmatprep.subr.mxu0 0.0
        %1284 = vmatpush1.xpose.msra.mxu0 0.0
        %1285 = vmatprep.subr.mxu0 0.0
        %1286 = vmatpush1.xpose.msra.mxu0 0.0
        %1287 = vmatprep.subr.mxu0 0.0
        %1288 = vmatpush1.xpose.msra.mxu0 0.0
        %1289 = vmatprep.subr.mxu0 0.0
        %1290 = vmatpush1.xpose.msra.mxu0 0.0
        %1291 = vmatprep.mubr.f32.mxu0 0.0
        %1292 = vmatmul.mubr.f32.gmra.mrb[0].mxu0 %v1223
        %v1293 = vpop.f32.mrb[0].mxu0
        %v1294 = vadd.f32 0.0, %v1293
        %v1295 = vpop.f32.mrb[0].mxu0
        %1296 = vdwg.mxu0
        %v1297 = vsel %vm966, %v1216, -inf
        %1298 = vmax.xlane.f32.xlu0 %v1297
        %v1299 = vpop.xlane.xlu0 %1298
        %v1300 = vsel %vm966, %v1294, -inf
        %1301 = vmax.xlane.f32.xlu0 %v1300
        %v1302 = vpop.xlane.xlu0 %1301
        %v1303 = vsub.f32 %v1216, %v1299
        %v1304 = vsub.f32 %v1294, %v1302
        %v1305 = vmul.f32 %v1303, 1.442695
        %v1306 = vpow.pop %v1305
        %v1307 = vmul.f32 %v1304, 1.442695
        %v1308 = vpow.pop %v1307
        %v1309 = vsel %vm966, %v1306, 0.0
        %1310 = vadd.xlane.f32.xlu0 %v1309
        %v1311 = vpop.xlane.xlu0 %1310
        %v1312 = vsel %vm966, %v1308, 0.0
        %1313 = vadd.xlane.f32.xlu0 %v1312
        %v1314 = vpop.xlane.xlu0 %1313
        %v1315 = vrcp.pop %v1311
        %v1316 = vrcp.pop %v1314
        %v1317 = vmul.f32 %v1306, %v1315
        %v1318 = vmul.f32 %v1308, %v1316
        %1319 = vrot.lane.b32.xlu0 %v805, 60
        %v1320 = vpop.permute.xlu0 %1319
        %v1323 = vsel %vm966, %v1317, 0
        %1325 = vmatprep.subr.mxu0 0.0
        %1326 = vmatpush1.msra.mxu0 %v1320
        %1327 = vmatprep.subr.mxu0 0.0
        %1328 = vmatpush1.msra.mxu0 0.0
        %1329 = vmatprep.subr.mxu0 0.0
        %1330 = vmatpush1.msra.mxu0 0.0
        %1331 = vmatprep.subr.mxu0 0.0
        %1332 = vmatpush1.msra.mxu0 0.0
        %1333 = vmatprep.subr.mxu0 0.0
        %1334 = vmatpush1.msra.mxu0 0.0
        %1335 = vmatprep.subr.mxu0 0.0
        %1336 = vmatpush1.msra.mxu0 0.0
        %1337 = vmatprep.subr.mxu0 0.0
        %1338 = vmatpush1.msra.mxu0 0.0
        %1339 = vmatprep.subr.mxu0 0.0
        %1340 = vmatpush1.msra.mxu0 0.0
        %1341 = vmatprep.subr.mxu0 0.0
        %1342 = vmatpush1.msra.mxu0 0.0
        %1343 = vmatprep.subr.mxu0 0.0
        %1344 = vmatpush1.msra.mxu0 0.0
        %1345 = vmatprep.subr.mxu0 0.0
        %1346 = vmatpush1.msra.mxu0 0.0
        %1347 = vmatprep.subr.mxu0 0.0
        %1348 = vmatpush1.msra.mxu0 0.0
        %1349 = vmatprep.subr.mxu0 0.0
        %1350 = vmatpush1.msra.mxu0 0.0
        %1351 = vmatprep.subr.mxu0 0.0
        %1352 = vmatpush1.msra.mxu0 0.0
        %1353 = vmatprep.subr.mxu0 0.0
        %1354 = vmatpush1.msra.mxu0 0.0
        %1355 = vmatprep.subr.mxu0 0.0
        %1356 = vmatpush1.msra.mxu0 0.0
        %1357 = vmatprep.subr.mxu0 0.0
        %1358 = vmatpush1.msra.mxu0 0.0
        %1359 = vmatprep.subr.mxu0 0.0
        %1360 = vmatpush1.msra.mxu0 0.0
        %1361 = vmatprep.subr.mxu0 0.0
        %1362 = vmatpush1.msra.mxu0 0.0
        %1363 = vmatprep.subr.mxu0 0.0
        %1364 = vmatpush1.msra.mxu0 0.0
        %1365 = vmatprep.subr.mxu0 0.0
        %1366 = vmatpush1.msra.mxu0 0.0
        %1367 = vmatprep.subr.mxu0 0.0
        %1368 = vmatpush1.msra.mxu0 0.0
        %1369 = vmatprep.subr.mxu0 0.0
        %1370 = vmatpush1.msra.mxu0 0.0
        %1371 = vmatprep.subr.mxu0 0.0
        %1372 = vmatpush1.msra.mxu0 0.0
        %1373 = vmatprep.subr.mxu0 0.0
        %1374 = vmatpush1.msra.mxu0 0.0
        %1375 = vmatprep.subr.mxu0 0.0
        %1376 = vmatpush1.msra.mxu0 0.0
        %1377 = vmatprep.subr.mxu0 0.0
        %1378 = vmatpush1.msra.mxu0 0.0
        %1379 = vmatprep.subr.mxu0 0.0
        %1380 = vmatpush1.msra.mxu0 0.0
        %1381 = vmatprep.subr.mxu0 0.0
        %1382 = vmatpush1.msra.mxu0 0.0
        %1383 = vmatprep.subr.mxu0 0.0
        %1384 = vmatpush1.msra.mxu0 0.0
        %1385 = vmatprep.subr.mxu0 0.0
        %1386 = vmatpush1.msra.mxu0 0.0
        %1387 = vmatprep.subr.mxu0 0.0
        %1388 = vmatpush1.msra.mxu0 0.0
        %1389 = vmatprep.mubr.f32.mxu0 0.0
        %1390 = vmatmul.mubr.f32.gmra.mrb[0].mxu0 %v1323
        %v1391 = vpop.f32.mrb[0].mxu0
        %v1392 = vadd.f32 0.0, %v1391
        %v1393 = vpop.f32.mrb[0].mxu0
        %1394 = vdwg.mxu0
        %1395 = vrot.lane.b32.xlu0 %v808, 60
        %v1396 = vpop.permute.xlu0 %1395
        %v1399 = vsel %vm966, %v1318, 0
        %1401 = vmatprep.subr.mxu0 0.0
        %1402 = vmatpush1.msra.mxu0 %v1396
        %1403 = vmatprep.subr.mxu0 0.0
        %1404 = vmatpush1.msra.mxu0 0.0
        %1405 = vmatprep.subr.mxu0 0.0
        %1406 = vmatpush1.msra.mxu0 0.0
        %1407 = vmatprep.subr.mxu0 0.0
        %1408 = vmatpush1.msra.mxu0 0.0
        %1409 = vmatprep.subr.mxu0 0.0
        %1410 = vmatpush1.msra.mxu0 0.0
        %1411 = vmatprep.subr.mxu0 0.0
        %1412 = vmatpush1.msra.mxu0 0.0
        %1413 = vmatprep.subr.mxu0 0.0
        %1414 = vmatpush1.msra.mxu0 0.0
        %1415 = vmatprep.subr.mxu0 0.0
        %1416 = vmatpush1.msra.mxu0 0.0
        %1417 = vmatprep.subr.mxu0 0.0
        %1418 = vmatpush1.msra.mxu0 0.0
        %1419 = vmatprep.subr.mxu0 0.0
        %1420 = vmatpush1.msra.mxu0 0.0
        %1421 = vmatprep.subr.mxu0 0.0
        %1422 = vmatpush1.msra.mxu0 0.0
        %1423 = vmatprep.subr.mxu0 0.0
        %1424 = vmatpush1.msra.mxu0 0.0
        %1425 = vmatprep.subr.mxu0 0.0
        %1426 = vmatpush1.msra.mxu0 0.0
        %1427 = vmatprep.subr.mxu0 0.0
        %1428 = vmatpush1.msra.mxu0 0.0
        %1429 = vmatprep.subr.mxu0 0.0
        %1430 = vmatpush1.msra.mxu0 0.0
        %1431 = vmatprep.subr.mxu0 0.0
        %1432 = vmatpush1.msra.mxu0 0.0
        %1433 = vmatprep.subr.mxu0 0.0
        %1434 = vmatpush1.msra.mxu0 0.0
        %1435 = vmatprep.subr.mxu0 0.0
        %1436 = vmatpush1.msra.mxu0 0.0
        %1437 = vmatprep.subr.mxu0 0.0
        %1438 = vmatpush1.msra.mxu0 0.0
        %1439 = vmatprep.subr.mxu0 0.0
        %1440 = vmatpush1.msra.mxu0 0.0
        %1441 = vmatprep.subr.mxu0 0.0
        %1442 = vmatpush1.msra.mxu0 0.0
        %1443 = vmatprep.subr.mxu0 0.0
        %1444 = vmatpush1.msra.mxu0 0.0
        %1445 = vmatprep.subr.mxu0 0.0
        %1446 = vmatpush1.msra.mxu0 0.0
        %1447 = vmatprep.subr.mxu0 0.0
        %1448 = vmatpush1.msra.mxu0 0.0
        %1449 = vmatprep.subr.mxu0 0.0
        %1450 = vmatpush1.msra.mxu0 0.0
        %1451 = vmatprep.subr.mxu0 0.0
        %1452 = vmatpush1.msra.mxu0 0.0
        %1453 = vmatprep.subr.mxu0 0.0
        %1454 = vmatpush1.msra.mxu0 0.0
        %1455 = vmatprep.subr.mxu0 0.0
        %1456 = vmatpush1.msra.mxu0 0.0
        %1457 = vmatprep.subr.mxu0 0.0
        %1458 = vmatpush1.msra.mxu0 0.0
        %1459 = vmatprep.subr.mxu0 0.0
        %1460 = vmatpush1.msra.mxu0 0.0
        %1461 = vmatprep.subr.mxu0 0.0
        %1462 = vmatpush1.msra.mxu0 0.0
        %1463 = vmatprep.subr.mxu0 0.0
        %1464 = vmatpush1.msra.mxu0 0.0
        %1465 = vmatprep.mubr.f32.mxu0 0.0
        %1466 = vmatmul.mubr.f32.gmra.mrb[0].mxu0 %v1399
        %v1467 = vpop.f32.mrb[0].mxu0
        %v1468 = vadd.f32 0.0, %v1467
        %v1469 = vpop.f32.mrb[0].mxu0
        %1470 = vdwg.mxu0
        %1471 = vrot.lane.b32.xlu0 %v805, 120
        %v1472 = vpop.permute.xlu0 %1471
        %1473 = vrot.lane.b32.xlu0 %v805, 88
        %v1474 = vpop.permute.xlu0 %1473
        %v1475 = vsel %vm814, %v1472, 0
        %v1477 = vsel %vm814, %v1474, 0
        %1479 = vmatprep.subr.mxu0 0.0
        %1480 = vmatpush1.xpose.msra.mxu0 %v1477
        %1481 = vmatprep.subr.mxu0 0.0
        %1482 = vmatpush1.xpose.msra.mxu0 0.0
        %1483 = vmatprep.subr.mxu0 0.0
        %1484 = vmatpush1.xpose.msra.mxu0 0.0
        %1485 = vmatprep.subr.mxu0 0.0
        %1486 = vmatpush1.xpose.msra.mxu0 0.0
        %1487 = vmatprep.subr.mxu0 0.0
        %1488 = vmatpush1.xpose.msra.mxu0 0.0
        %1489 = vmatprep.subr.mxu0 0.0
        %1490 = vmatpush1.xpose.msra.mxu0 0.0
        %1491 = vmatprep.subr.mxu0 0.0
        %1492 = vmatpush1.xpose.msra.mxu0 0.0
        %1493 = vmatprep.subr.mxu0 0.0
        %1494 = vmatpush1.xpose.msra.mxu0 0.0
        %1495 = vmatprep.subr.mxu0 0.0
        %1496 = vmatpush1.xpose.msra.mxu0 0.0
        %1497 = vmatprep.subr.mxu0 0.0
        %1498 = vmatpush1.xpose.msra.mxu0 0.0
        %1499 = vmatprep.subr.mxu0 0.0
        %1500 = vmatpush1.xpose.msra.mxu0 0.0
        %1501 = vmatprep.subr.mxu0 0.0
        %1502 = vmatpush1.xpose.msra.mxu0 0.0
        %1503 = vmatprep.subr.mxu0 0.0
        %1504 = vmatpush1.xpose.msra.mxu0 0.0
        %1505 = vmatprep.subr.mxu0 0.0
        %1506 = vmatpush1.xpose.msra.mxu0 0.0
        %1507 = vmatprep.subr.mxu0 0.0
        %1508 = vmatpush1.xpose.msra.mxu0 0.0
        %1509 = vmatprep.subr.mxu0 0.0
        %1510 = vmatpush1.xpose.msra.mxu0 0.0
        %1511 = vmatprep.subr.mxu0 0.0
        %1512 = vmatpush1.xpose.msra.mxu0 0.0
        %1513 = vmatprep.subr.mxu0 0.0
        %1514 = vmatpush1.xpose.msra.mxu0 0.0
        %1515 = vmatprep.subr.mxu0 0.0
        %1516 = vmatpush1.xpose.msra.mxu0 0.0
        %1517 = vmatprep.subr.mxu0 0.0
        %1518 = vmatpush1.xpose.msra.mxu0 0.0
        %1519 = vmatprep.subr.mxu0 0.0
        %1520 = vmatpush1.xpose.msra.mxu0 0.0
        %1521 = vmatprep.subr.mxu0 0.0
        %1522 = vmatpush1.xpose.msra.mxu0 0.0
        %1523 = vmatprep.subr.mxu0 0.0
        %1524 = vmatpush1.xpose.msra.mxu0 0.0
        %1525 = vmatprep.subr.mxu0 0.0
        %1526 = vmatpush1.xpose.msra.mxu0 0.0
        %1527 = vmatprep.subr.mxu0 0.0
        %1528 = vmatpush1.xpose.msra.mxu0 0.0
        %1529 = vmatprep.subr.mxu0 0.0
        %1530 = vmatpush1.xpose.msra.mxu0 0.0
        %1531 = vmatprep.subr.mxu0 0.0
        %1532 = vmatpush1.xpose.msra.mxu0 0.0
        %1533 = vmatprep.subr.mxu0 0.0
        %1534 = vmatpush1.xpose.msra.mxu0 0.0
        %1535 = vmatprep.subr.mxu0 0.0
        %1536 = vmatpush1.xpose.msra.mxu0 0.0
        %1537 = vmatprep.subr.mxu0 0.0
        %1538 = vmatpush1.xpose.msra.mxu0 0.0
        %1539 = vmatprep.subr.mxu0 0.0
        %1540 = vmatpush1.xpose.msra.mxu0 0.0
        %1541 = vmatprep.subr.mxu0 0.0
        %1542 = vmatpush1.xpose.msra.mxu0 0.0
        %1543 = vmatprep.mubr.f32.mxu0 0.0
        %1544 = vmatmul.mubr.f32.gmra.mrb[0].mxu0 %v1475
        %v1545 = vpop.f32.mrb[0].mxu0
        %v1546 = vadd.f32 0.0, %v1545
        %v1547 = vpop.f32.mrb[0].mxu0
        %1548 = vdwg.mxu0
        %1549 = vrot.lane.b32.xlu0 %v808, 120
        %v1550 = vpop.permute.xlu0 %1549
        %1551 = vrot.lane.b32.xlu0 %v808, 88
        %v1552 = vpop.permute.xlu0 %1551
        %v1553 = vsel %vm814, %v1550, 0
        %v1555 = vsel %vm814, %v1552, 0
        %1557 = vmatprep.subr.mxu0 0.0
        %1558 = vmatpush1.xpose.msra.mxu0 %v1555
        %1559 = vmatprep.subr.mxu0 0.0
        %1560 = vmatpush1.xpose.msra.mxu0 0.0
        %1561 = vmatprep.subr.mxu0 0.0
        %1562 = vmatpush1.xpose.msra.mxu0 0.0
        %1563 = vmatprep.subr.mxu0 0.0
        %1564 = vmatpush1.xpose.msra.mxu0 0.0
        %1565 = vmatprep.subr.mxu0 0.0
        %1566 = vmatpush1.xpose.msra.mxu0 0.0
        %1567 = vmatprep.subr.mxu0 0.0
        %1568 = vmatpush1.xpose.msra.mxu0 0.0
        %1569 = vmatprep.subr.mxu0 0.0
        %1570 = vmatpush1.xpose.msra.mxu0 0.0
        %1571 = vmatprep.subr.mxu0 0.0
        %1572 = vmatpush1.xpose.msra.mxu0 0.0
        %1573 = vmatprep.subr.mxu0 0.0
        %1574 = vmatpush1.xpose.msra.mxu0 0.0
        %1575 = vmatprep.subr.mxu0 0.0
        %1576 = vmatpush1.xpose.msra.mxu0 0.0
        %1577 = vmatprep.subr.mxu0 0.0
        %1578 = vmatpush1.xpose.msra.mxu0 0.0
        %1579 = vmatprep.subr.mxu0 0.0
        %1580 = vmatpush1.xpose.msra.mxu0 0.0
        %1581 = vmatprep.subr.mxu0 0.0
        %1582 = vmatpush1.xpose.msra.mxu0 0.0
        %1583 = vmatprep.subr.mxu0 0.0
        %1584 = vmatpush1.xpose.msra.mxu0 0.0
        %1585 = vmatprep.subr.mxu0 0.0
        %1586 = vmatpush1.xpose.msra.mxu0 0.0
        %1587 = vmatprep.subr.mxu0 0.0
        %1588 = vmatpush1.xpose.msra.mxu0 0.0
        %1589 = vmatprep.subr.mxu0 0.0
        %1590 = vmatpush1.xpose.msra.mxu0 0.0
        %1591 = vmatprep.subr.mxu0 0.0
        %1592 = vmatpush1.xpose.msra.mxu0 0.0
        %1593 = vmatprep.subr.mxu0 0.0
        %1594 = vmatpush1.xpose.msra.mxu0 0.0
        %1595 = vmatprep.subr.mxu0 0.0
        %1596 = vmatpush1.xpose.msra.mxu0 0.0
        %1597 = vmatprep.subr.mxu0 0.0
        %1598 = vmatpush1.xpose.msra.mxu0 0.0
        %1599 = vmatprep.subr.mxu0 0.0
        %1600 = vmatpush1.xpose.msra.mxu0 0.0
        %1601 = vmatprep.subr.mxu0 0.0
        %1602 = vmatpush1.xpose.msra.mxu0 0.0
        %1603 = vmatprep.subr.mxu0 0.0
        %1604 = vmatpush1.xpose.msra.mxu0 0.0
        %1605 = vmatprep.subr.mxu0 0.0
        %1606 = vmatpush1.xpose.msra.mxu0 0.0
        %1607 = vmatprep.subr.mxu0 0.0
        %1608 = vmatpush1.xpose.msra.mxu0 0.0
        %1609 = vmatprep.subr.mxu0 0.0
        %1610 = vmatpush1.xpose.msra.mxu0 0.0
        %1611 = vmatprep.subr.mxu0 0.0
        %1612 = vmatpush1.xpose.msra.mxu0 0.0
        %1613 = vmatprep.subr.mxu0 0.0
        %1614 = vmatpush1.xpose.msra.mxu0 0.0
        %1615 = vmatprep.subr.mxu0 0.0
        %1616 = vmatpush1.xpose.msra.mxu0 0.0
        %1617 = vmatprep.subr.mxu0 0.0
        %1618 = vmatpush1.xpose.msra.mxu0 0.0
        %1619 = vmatprep.subr.mxu0 0.0
        %1620 = vmatpush1.xpose.msra.mxu0 0.0
        %1621 = vmatprep.mubr.f32.mxu0 0.0
        %1622 = vmatmul.mubr.f32.gmra.mrb[0].mxu0 %v1553
        %v1623 = vpop.f32.mrb[0].mxu0
        %v1624 = vadd.f32 0.0, %v1623
        %v1625 = vpop.f32.mrb[0].mxu0
        %1626 = vdwg.mxu0
        %v1627 = vsel %vm966, %v1546, -inf
        %1628 = vmax.xlane.f32.xlu0 %v1627
        %v1629 = vpop.xlane.xlu0 %1628
        %v1630 = vsel %vm966, %v1624, -inf
        %1631 = vmax.xlane.f32.xlu0 %v1630
        %v1632 = vpop.xlane.xlu0 %1631
        %v1633 = vsub.f32 %v1546, %v1629
        %v1634 = vsub.f32 %v1624, %v1632
        %v1635 = vmul.f32 %v1633, 1.442695
        %v1636 = vpow.pop %v1635
        %v1637 = vmul.f32 %v1634, 1.442695
        %v1638 = vpow.pop %v1637
        %v1639 = vsel %vm966, %v1636, 0.0
        %1640 = vadd.xlane.f32.xlu0 %v1639
        %v1641 = vpop.xlane.xlu0 %1640
        %v1642 = vsel %vm966, %v1638, 0.0
        %1643 = vadd.xlane.f32.xlu0 %v1642
        %v1644 = vpop.xlane.xlu0 %1643
        %v1645 = vrcp.pop %v1641
        %v1646 = vrcp.pop %v1644
        %v1647 = vmul.f32 %v1636, %v1645
        %v1648 = vmul.f32 %v1638, %v1646
        %1649 = vrot.lane.b32.xlu0 %v805, 56
        %v1650 = vpop.permute.xlu0 %1649
        %v1653 = vsel %vm966, %v1647, 0
        %1655 = vmatprep.subr.mxu0 0.0
        %1656 = vmatpush1.msra.mxu0 %v1650
        %1657 = vmatprep.subr.mxu0 0.0
        %1658 = vmatpush1.msra.mxu0 0.0
        %1659 = vmatprep.subr.mxu0 0.0
        %1660 = vmatpush1.msra.mxu0 0.0
        %1661 = vmatprep.subr.mxu0 0.0
        %1662 = vmatpush1.msra.mxu0 0.0
        %1663 = vmatprep.subr.mxu0 0.0
        %1664 = vmatpush1.msra.mxu0 0.0
        %1665 = vmatprep.subr.mxu0 0.0
        %1666 = vmatpush1.msra.mxu0 0.0
        %1667 = vmatprep.subr.mxu0 0.0
        %1668 = vmatpush1.msra.mxu0 0.0
        %1669 = vmatprep.subr.mxu0 0.0
        %1670 = vmatpush1.msra.mxu0 0.0
        %1671 = vmatprep.subr.mxu0 0.0
        %1672 = vmatpush1.msra.mxu0 0.0
        %1673 = vmatprep.subr.mxu0 0.0
        %1674 = vmatpush1.msra.mxu0 0.0
        %1675 = vmatprep.subr.mxu0 0.0
        %1676 = vmatpush1.msra.mxu0 0.0
        %1677 = vmatprep.subr.mxu0 0.0
        %1678 = vmatpush1.msra.mxu0 0.0
        %1679 = vmatprep.subr.mxu0 0.0
        %1680 = vmatpush1.msra.mxu0 0.0
        %1681 = vmatprep.subr.mxu0 0.0
        %1682 = vmatpush1.msra.mxu0 0.0
        %1683 = vmatprep.subr.mxu0 0.0
        %1684 = vmatpush1.msra.mxu0 0.0
        %1685 = vmatprep.subr.mxu0 0.0
        %1686 = vmatpush1.msra.mxu0 0.0
        %1687 = vmatprep.subr.mxu0 0.0
        %1688 = vmatpush1.msra.mxu0 0.0
        %1689 = vmatprep.subr.mxu0 0.0
        %1690 = vmatpush1.msra.mxu0 0.0
        %1691 = vmatprep.subr.mxu0 0.0
        %1692 = vmatpush1.msra.mxu0 0.0
        %1693 = vmatprep.subr.mxu0 0.0
        %1694 = vmatpush1.msra.mxu0 0.0
        %1695 = vmatprep.subr.mxu0 0.0
        %1696 = vmatpush1.msra.mxu0 0.0
        %1697 = vmatprep.subr.mxu0 0.0
        %1698 = vmatpush1.msra.mxu0 0.0
        %1699 = vmatprep.subr.mxu0 0.0
        %1700 = vmatpush1.msra.mxu0 0.0
        %1701 = vmatprep.subr.mxu0 0.0
        %1702 = vmatpush1.msra.mxu0 0.0
        %1703 = vmatprep.subr.mxu0 0.0
        %1704 = vmatpush1.msra.mxu0 0.0
        %1705 = vmatprep.subr.mxu0 0.0
        %1706 = vmatpush1.msra.mxu0 0.0
        %1707 = vmatprep.subr.mxu0 0.0
        %1708 = vmatpush1.msra.mxu0 0.0
        %1709 = vmatprep.subr.mxu0 0.0
        %1710 = vmatpush1.msra.mxu0 0.0
        %1711 = vmatprep.subr.mxu0 0.0
        %1712 = vmatpush1.msra.mxu0 0.0
        %1713 = vmatprep.subr.mxu0 0.0
        %1714 = vmatpush1.msra.mxu0 0.0
        %1715 = vmatprep.subr.mxu0 0.0
        %1716 = vmatpush1.msra.mxu0 0.0
        %1717 = vmatprep.subr.mxu0 0.0
        %1718 = vmatpush1.msra.mxu0 0.0
        %1719 = vmatprep.mubr.f32.mxu0 0.0
        %1720 = vmatmul.mubr.f32.gmra.mrb[0].mxu0 %v1653
        %v1721 = vpop.f32.mrb[0].mxu0
        %v1722 = vadd.f32 0.0, %v1721
        %v1723 = vpop.f32.mrb[0].mxu0
        %1724 = vdwg.mxu0
        %1725 = vrot.lane.b32.xlu0 %v808, 56
        %v1726 = vpop.permute.xlu0 %1725
        %v1729 = vsel %vm966, %v1648, 0
        %1731 = vmatprep.subr.mxu0 0.0
        %1732 = vmatpush1.msra.mxu0 %v1726
        %1733 = vmatprep.subr.mxu0 0.0
        %1734 = vmatpush1.msra.mxu0 0.0
        %1735 = vmatprep.subr.mxu0 0.0
        %1736 = vmatpush1.msra.mxu0 0.0
        %1737 = vmatprep.subr.mxu0 0.0
        %1738 = vmatpush1.msra.mxu0 0.0
        %1739 = vmatprep.subr.mxu0 0.0
        %1740 = vmatpush1.msra.mxu0 0.0
        %1741 = vmatprep.subr.mxu0 0.0
        %1742 = vmatpush1.msra.mxu0 0.0
        %1743 = vmatprep.subr.mxu0 0.0
        %1744 = vmatpush1.msra.mxu0 0.0
        %1745 = vmatprep.subr.mxu0 0.0
        %1746 = vmatpush1.msra.mxu0 0.0
        %1747 = vmatprep.subr.mxu0 0.0
        %1748 = vmatpush1.msra.mxu0 0.0
        %1749 = vmatprep.subr.mxu0 0.0
        %1750 = vmatpush1.msra.mxu0 0.0
        %1751 = vmatprep.subr.mxu0 0.0
        %1752 = vmatpush1.msra.mxu0 0.0
        %1753 = vmatprep.subr.mxu0 0.0
        %1754 = vmatpush1.msra.mxu0 0.0
        %1755 = vmatprep.subr.mxu0 0.0
        %1756 = vmatpush1.msra.mxu0 0.0
        %1757 = vmatprep.subr.mxu0 0.0
        %1758 = vmatpush1.msra.mxu0 0.0
        %1759 = vmatprep.subr.mxu0 0.0
        %1760 = vmatpush1.msra.mxu0 0.0
        %1761 = vmatprep.subr.mxu0 0.0
        %1762 = vmatpush1.msra.mxu0 0.0
        %1763 = vmatprep.subr.mxu0 0.0
        %1764 = vmatpush1.msra.mxu0 0.0
        %1765 = vmatprep.subr.mxu0 0.0
        %1766 = vmatpush1.msra.mxu0 0.0
        %1767 = vmatprep.subr.mxu0 0.0
        %1768 = vmatpush1.msra.mxu0 0.0
        %1769 = vmatprep.subr.mxu0 0.0
        %1770 = vmatpush1.msra.mxu0 0.0
        %1771 = vmatprep.subr.mxu0 0.0
        %1772 = vmatpush1.msra.mxu0 0.0
        %1773 = vmatprep.subr.mxu0 0.0
        %1774 = vmatpush1.msra.mxu0 0.0
        %1775 = vmatprep.subr.mxu0 0.0
        %1776 = vmatpush1.msra.mxu0 0.0
        %1777 = vmatprep.subr.mxu0 0.0
        %1778 = vmatpush1.msra.mxu0 0.0
        %1779 = vmatprep.subr.mxu0 0.0
        %1780 = vmatpush1.msra.mxu0 0.0
        %1781 = vmatprep.subr.mxu0 0.0
        %1782 = vmatpush1.msra.mxu0 0.0
        %1783 = vmatprep.subr.mxu0 0.0
        %1784 = vmatpush1.msra.mxu0 0.0
        %1785 = vmatprep.subr.mxu0 0.0
        %1786 = vmatpush1.msra.mxu0 0.0
        %1787 = vmatprep.subr.mxu0 0.0
        %1788 = vmatpush1.msra.mxu0 0.0
        %1789 = vmatprep.subr.mxu0 0.0
        %1790 = vmatpush1.msra.mxu0 0.0
        %1791 = vmatprep.subr.mxu0 0.0
        %1792 = vmatpush1.msra.mxu0 0.0
        %1793 = vmatprep.subr.mxu0 0.0
        %1794 = vmatpush1.msra.mxu0 0.0
        %1795 = vmatprep.mubr.f32.mxu0 0.0
        %1796 = vmatmul.mubr.f32.gmra.mrb[0].mxu0 %v1729
        %v1797 = vpop.f32.mrb[0].mxu0
        %v1798 = vadd.f32 0.0, %v1797
        %v1799 = vpop.f32.mrb[0].mxu0
        %1800 = vdwg.mxu0
        %1801 = vrot.lane.b32.xlu0 %v805, 116
        %v1802 = vpop.permute.xlu0 %1801
        %1803 = vrot.lane.b32.xlu0 %v805, 84
        %v1804 = vpop.permute.xlu0 %1803
        %v1805 = vsel %vm814, %v1802, 0
        %v1807 = vsel %vm814, %v1804, 0
        %1809 = vmatprep.subr.mxu0 0.0
        %1810 = vmatpush1.xpose.msra.mxu0 %v1807
        %1811 = vmatprep.subr.mxu0 0.0
        %1812 = vmatpush1.xpose.msra.mxu0 0.0
        %1813 = vmatprep.subr.mxu0 0.0
        %1814 = vmatpush1.xpose.msra.mxu0 0.0
        %1815 = vmatprep.subr.mxu0 0.0
        %1816 = vmatpush1.xpose.msra.mxu0 0.0
        %1817 = vmatprep.subr.mxu0 0.0
        %1818 = vmatpush1.xpose.msra.mxu0 0.0
        %1819 = vmatprep.subr.mxu0 0.0
        %1820 = vmatpush1.xpose.msra.mxu0 0.0
        %1821 = vmatprep.subr.mxu0 0.0
        %1822 = vmatpush1.xpose.msra.mxu0 0.0
        %1823 = vmatprep.subr.mxu0 0.0
        %1824 = vmatpush1.xpose.msra.mxu0 0.0
        %1825 = vmatprep.subr.mxu0 0.0
        %1826 = vmatpush1.xpose.msra.mxu0 0.0
        %1827 = vmatprep.subr.mxu0 0.0
        %1828 = vmatpush1.xpose.msra.mxu0 0.0
        %1829 = vmatprep.subr.mxu0 0.0
        %1830 = vmatpush1.xpose.msra.mxu0 0.0
        %1831 = vmatprep.subr.mxu0 0.0
        %1832 = vmatpush1.xpose.msra.mxu0 0.0
        %1833 = vmatprep.subr.mxu0 0.0
        %1834 = vmatpush1.xpose.msra.mxu0 0.0
        %1835 = vmatprep.subr.mxu0 0.0
        %1836 = vmatpush1.xpose.msra.mxu0 0.0
        %1837 = vmatprep.subr.mxu0 0.0
        %1838 = vmatpush1.xpose.msra.mxu0 0.0
        %1839 = vmatprep.subr.mxu0 0.0
        %1840 = vmatpush1.xpose.msra.mxu0 0.0
        %1841 = vmatprep.subr.mxu0 0.0
        %1842 = vmatpush1.xpose.msra.mxu0 0.0
        %1843 = vmatprep.subr.mxu0 0.0
        %1844 = vmatpush1.xpose.msra.mxu0 0.0
        %1845 = vmatprep.subr.mxu0 0.0
        %1846 = vmatpush1.xpose.msra.mxu0 0.0
        %1847 = vmatprep.subr.mxu0 0.0
        %1848 = vmatpush1.xpose.msra.mxu0 0.0
        %1849 = vmatprep.subr.mxu0 0.0
        %1850 = vmatpush1.xpose.msra.mxu0 0.0
        %1851 = vmatprep.subr.mxu0 0.0
        %1852 = vmatpush1.xpose.msra.mxu0 0.0
        %1853 = vmatprep.subr.mxu0 0.0
        %1854 = vmatpush1.xpose.msra.mxu0 0.0
        %1855 = vmatprep.subr.mxu0 0.0
        %1856 = vmatpush1.xpose.msra.mxu0 0.0
        %1857 = vmatprep.subr.mxu0 0.0
        %1858 = vmatpush1.xpose.msra.mxu0 0.0
        %1859 = vmatprep.subr.mxu0 0.0
        %1860 = vmatpush1.xpose.msra.mxu0 0.0
        %1861 = vmatprep.subr.mxu0 0.0
        %1862 = vmatpush1.xpose.msra.mxu0 0.0
        %1863 = vmatprep.subr.mxu0 0.0
        %1864 = vmatpush1.xpose.msra.mxu0 0.0
        %1865 = vmatprep.subr.mxu0 0.0
        %1866 = vmatpush1.xpose.msra.mxu0 0.0
        %1867 = vmatprep.subr.mxu0 0.0
        %1868 = vmatpush1.xpose.msra.mxu0 0.0
        %1869 = vmatprep.subr.mxu0 0.0
        %1870 = vmatpush1.xpose.msra.mxu0 0.0
        %1871 = vmatprep.subr.mxu0 0.0
        %1872 = vmatpush1.xpose.msra.mxu0 0.0
        %1873 = vmatprep.mubr.f32.mxu0 0.0
        %1874 = vmatmul.mubr.f32.gmra.mrb[0].mxu0 %v1805
        %v1875 = vpop.f32.mrb[0].mxu0
        %v1876 = vadd.f32 0.0, %v1875
        %v1877 = vpop.f32.mrb[0].mxu0
        %1878 = vdwg.mxu0
        %1879 = vrot.lane.b32.xlu0 %v808, 116
        %v1880 = vpop.permute.xlu0 %1879
        %1881 = vrot.lane.b32.xlu0 %v808, 84
        %v1882 = vpop.permute.xlu0 %1881
        %v1883 = vsel %vm814, %v1880, 0
        %v1885 = vsel %vm814, %v1882, 0
        %1887 = vmatprep.subr.mxu0 0.0
        %1888 = vmatpush1.xpose.msra.mxu0 %v1885
        %1889 = vmatprep.subr.mxu0 0.0
        %1890 = vmatpush1.xpose.msra.mxu0 0.0
        %1891 = vmatprep.subr.mxu0 0.0
        %1892 = vmatpush1.xpose.msra.mxu0 0.0
        %1893 = vmatprep.subr.mxu0 0.0
        %1894 = vmatpush1.xpose.msra.mxu0 0.0
        %1895 = vmatprep.subr.mxu0 0.0
        %1896 = vmatpush1.xpose.msra.mxu0 0.0
        %1897 = vmatprep.subr.mxu0 0.0
        %1898 = vmatpush1.xpose.msra.mxu0 0.0
        %1899 = vmatprep.subr.mxu0 0.0
        %1900 = vmatpush1.xpose.msra.mxu0 0.0
        %1901 = vmatprep.subr.mxu0 0.0
        %1902 = vmatpush1.xpose.msra.mxu0 0.0
        %1903 = vmatprep.subr.mxu0 0.0
        %1904 = vmatpush1.xpose.msra.mxu0 0.0
        %1905 = vmatprep.subr.mxu0 0.0
        %1906 = vmatpush1.xpose.msra.mxu0 0.0
        %1907 = vmatprep.subr.mxu0 0.0
        %1908 = vmatpush1.xpose.msra.mxu0 0.0
        %1909 = vmatprep.subr.mxu0 0.0
        %1910 = vmatpush1.xpose.msra.mxu0 0.0
        %1911 = vmatprep.subr.mxu0 0.0
        %1912 = vmatpush1.xpose.msra.mxu0 0.0
        %1913 = vmatprep.subr.mxu0 0.0
        %1914 = vmatpush1.xpose.msra.mxu0 0.0
        %1915 = vmatprep.subr.mxu0 0.0
        %1916 = vmatpush1.xpose.msra.mxu0 0.0
        %1917 = vmatprep.subr.mxu0 0.0
        %1918 = vmatpush1.xpose.msra.mxu0 0.0
        %1919 = vmatprep.subr.mxu0 0.0
        %1920 = vmatpush1.xpose.msra.mxu0 0.0
        %1921 = vmatprep.subr.mxu0 0.0
        %1922 = vmatpush1.xpose.msra.mxu0 0.0
        %1923 = vmatprep.subr.mxu0 0.0
        %1924 = vmatpush1.xpose.msra.mxu0 0.0
        %1925 = vmatprep.subr.mxu0 0.0
        %1926 = vmatpush1.xpose.msra.mxu0 0.0
        %1927 = vmatprep.subr.mxu0 0.0
        %1928 = vmatpush1.xpose.msra.mxu0 0.0
        %1929 = vmatprep.subr.mxu0 0.0
        %1930 = vmatpush1.xpose.msra.mxu0 0.0
        %1931 = vmatprep.subr.mxu0 0.0
        %1932 = vmatpush1.xpose.msra.mxu0 0.0
        %1933 = vmatprep.subr.mxu0 0.0
        %1934 = vmatpush1.xpose.msra.mxu0 0.0
        %1935 = vmatprep.subr.mxu0 0.0
        %1936 = vmatpush1.xpose.msra.mxu0 0.0
        %1937 = vmatprep.subr.mxu0 0.0
        %1938 = vmatpush1.xpose.msra.mxu0 0.0
        %1939 = vmatprep.subr.mxu0 0.0
        %1940 = vmatpush1.xpose.msra.mxu0 0.0
        %1941 = vmatprep.subr.mxu0 0.0
        %1942 = vmatpush1.xpose.msra.mxu0 0.0
        %1943 = vmatprep.subr.mxu0 0.0
        %1944 = vmatpush1.xpose.msra.mxu0 0.0
        %1945 = vmatprep.subr.mxu0 0.0
        %1946 = vmatpush1.xpose.msra.mxu0 0.0
        %1947 = vmatprep.subr.mxu0 0.0
        %1948 = vmatpush1.xpose.msra.mxu0 0.0
        %1949 = vmatprep.subr.mxu0 0.0
        %1950 = vmatpush1.xpose.msra.mxu0 0.0
        %1951 = vmatprep.mubr.f32.mxu0 0.0
        %1952 = vmatmul.mubr.f32.gmra.mrb[0].mxu0 %v1883
        %v1953 = vpop.f32.mrb[0].mxu0
        %v1954 = vadd.f32 0.0, %v1953
        %v1955 = vpop.f32.mrb[0].mxu0
        %1956 = vdwg.mxu0
        %v1957 = vsel %vm966, %v1876, -inf
        %1958 = vmax.xlane.f32.xlu0 %v1957
        %v1959 = vpop.xlane.xlu0 %1958
        %v1960 = vsel %vm966, %v1954, -inf
        %1961 = vmax.xlane.f32.xlu0 %v1960
        %v1962 = vpop.xlane.xlu0 %1961
        %v1963 = vsub.f32 %v1876, %v1959
        %v1964 = vsub.f32 %v1954, %v1962
        %v1965 = vmul.f32 %v1963, 1.442695
        %v1966 = vpow.pop %v1965
        %v1967 = vmul.f32 %v1964, 1.442695
        %v1968 = vpow.pop %v1967
        %v1969 = vsel %vm966, %v1966, 0.0
        %1970 = vadd.xlane.f32.xlu0 %v1969
        %v1971 = vpop.xlane.xlu0 %1970
        %v1972 = vsel %vm966, %v1968, 0.0
        %1973 = vadd.xlane.f32.xlu0 %v1972
        %v1974 = vpop.xlane.xlu0 %1973
        %v1975 = vrcp.pop %v1971
        %v1976 = vrcp.pop %v1974
        %v1977 = vmul.f32 %v1966, %v1975
        %v1978 = vmul.f32 %v1968, %v1976
        %1979 = vrot.lane.b32.xlu0 %v805, 52
        %v1980 = vpop.permute.xlu0 %1979
        %v1983 = vsel %vm966, %v1977, 0
        %1985 = vmatprep.subr.mxu0 0.0
        %1986 = vmatpush1.msra.mxu0 %v1980
        %1987 = vmatprep.subr.mxu0 0.0
        %1988 = vmatpush1.msra.mxu0 0.0
        %1989 = vmatprep.subr.mxu0 0.0
        %1990 = vmatpush1.msra.mxu0 0.0
        %1991 = vmatprep.subr.mxu0 0.0
        %1992 = vmatpush1.msra.mxu0 0.0
        %1993 = vmatprep.subr.mxu0 0.0
        %1994 = vmatpush1.msra.mxu0 0.0
        %1995 = vmatprep.subr.mxu0 0.0
        %1996 = vmatpush1.msra.mxu0 0.0
        %1997 = vmatprep.subr.mxu0 0.0
        %1998 = vmatpush1.msra.mxu0 0.0
        %1999 = vmatprep.subr.mxu0 0.0
        %2000 = vmatpush1.msra.mxu0 0.0
        %2001 = vmatprep.subr.mxu0 0.0
        %2002 = vmatpush1.msra.mxu0 0.0
        %2003 = vmatprep.subr.mxu0 0.0
        %2004 = vmatpush1.msra.mxu0 0.0
        %2005 = vmatprep.subr.mxu0 0.0
        %2006 = vmatpush1.msra.mxu0 0.0
        %2007 = vmatprep.subr.mxu0 0.0
        %2008 = vmatpush1.msra.mxu0 0.0
        %2009 = vmatprep.subr.mxu0 0.0
        %2010 = vmatpush1.msra.mxu0 0.0
        %2011 = vmatprep.subr.mxu0 0.0
        %2012 = vmatpush1.msra.mxu0 0.0
        %2013 = vmatprep.subr.mxu0 0.0
        %2014 = vmatpush1.msra.mxu0 0.0
        %2015 = vmatprep.subr.mxu0 0.0
        %2016 = vmatpush1.msra.mxu0 0.0
        %2017 = vmatprep.subr.mxu0 0.0
        %2018 = vmatpush1.msra.mxu0 0.0
        %2019 = vmatprep.subr.mxu0 0.0
        %2020 = vmatpush1.msra.mxu0 0.0
        %2021 = vmatprep.subr.mxu0 0.0
        %2022 = vmatpush1.msra.mxu0 0.0
        %2023 = vmatprep.subr.mxu0 0.0
        %2024 = vmatpush1.msra.mxu0 0.0
        %2025 = vmatprep.subr.mxu0 0.0
        %2026 = vmatpush1.msra.mxu0 0.0
        %2027 = vmatprep.subr.mxu0 0.0
        %2028 = vmatpush1.msra.mxu0 0.0
        %2029 = vmatprep.subr.mxu0 0.0
        %2030 = vmatpush1.msra.mxu0 0.0
        %2031 = vmatprep.subr.mxu0 0.0
        %2032 = vmatpush1.msra.mxu0 0.0
        %2033 = vmatprep.subr.mxu0 0.0
        %2034 = vmatpush1.msra.mxu0 0.0
        %2035 = vmatprep.subr.mxu0 0.0
        %2036 = vmatpush1.msra.mxu0 0.0
        %2037 = vmatprep.subr.mxu0 0.0
        %2038 = vmatpush1.msra.mxu0 0.0
        %2039 = vmatprep.subr.mxu0 0.0
        %2040 = vmatpush1.msra.mxu0 0.0
        %2041 = vmatprep.subr.mxu0 0.0
        %2042 = vmatpush1.msra.mxu0 0.0
        %2043 = vmatprep.subr.mxu0 0.0
        %2044 = vmatpush1.msra.mxu0 0.0
        %2045 = vmatprep.subr.mxu0 0.0
        %2046 = vmatpush1.msra.mxu0 0.0
        %2047 = vmatprep.subr.mxu0 0.0
        %2048 = vmatpush1.msra.mxu0 0.0
        %2049 = vmatprep.mubr.f32.mxu0 0.0
        %2050 = vmatmul.mubr.f32.gmra.mrb[0].mxu0 %v1983
        %v2051 = vpop.f32.mrb[0].mxu0
        %v2052 = vadd.f32 0.0, %v2051
        %v2053 = vpop.f32.mrb[0].mxu0
        %2054 = vdwg.mxu0
        %2055 = vrot.lane.b32.xlu0 %v808, 52
        %v2056 = vpop.permute.xlu0 %2055
        %v2059 = vsel %vm966, %v1978, 0
        %2061 = vmatprep.subr.mxu0 0.0
        %2062 = vmatpush1.msra.mxu0 %v2056
        %2063 = vmatprep.subr.mxu0 0.0
        %2064 = vmatpush1.msra.mxu0 0.0
        %2065 = vmatprep.subr.mxu0 0.0
        %2066 = vmatpush1.msra.mxu0 0.0
        %2067 = vmatprep.subr.mxu0 0.0
        %2068 = vmatpush1.msra.mxu0 0.0
        %2069 = vmatprep.subr.mxu0 0.0
        %2070 = vmatpush1.msra.mxu0 0.0
        %2071 = vmatprep.subr.mxu0 0.0
        %2072 = vmatpush1.msra.mxu0 0.0
        %2073 = vmatprep.subr.mxu0 0.0
        %2074 = vmatpush1.msra.mxu0 0.0
        %2075 = vmatprep.subr.mxu0 0.0
        %2076 = vmatpush1.msra.mxu0 0.0
        %2077 = vmatprep.subr.mxu0 0.0
        %2078 = vmatpush1.msra.mxu0 0.0
        %2079 = vmatprep.subr.mxu0 0.0
        %2080 = vmatpush1.msra.mxu0 0.0
        %2081 = vmatprep.subr.mxu0 0.0
        %2082 = vmatpush1.msra.mxu0 0.0
        %2083 = vmatprep.subr.mxu0 0.0
        %2084 = vmatpush1.msra.mxu0 0.0
        %2085 = vmatprep.subr.mxu0 0.0
        %2086 = vmatpush1.msra.mxu0 0.0
        %2087 = vmatprep.subr.mxu0 0.0
        %2088 = vmatpush1.msra.mxu0 0.0
        %2089 = vmatprep.subr.mxu0 0.0
        %2090 = vmatpush1.msra.mxu0 0.0
        %2091 = vmatprep.subr.mxu0 0.0
        %2092 = vmatpush1.msra.mxu0 0.0
        %2093 = vmatprep.subr.mxu0 0.0
        %2094 = vmatpush1.msra.mxu0 0.0
        %2095 = vmatprep.subr.mxu0 0.0
        %2096 = vmatpush1.msra.mxu0 0.0
        %2097 = vmatprep.subr.mxu0 0.0
        %2098 = vmatpush1.msra.mxu0 0.0
        %2099 = vmatprep.subr.mxu0 0.0
        %2100 = vmatpush1.msra.mxu0 0.0
        %2101 = vmatprep.subr.mxu0 0.0
        %2102 = vmatpush1.msra.mxu0 0.0
        %2103 = vmatprep.subr.mxu0 0.0
        %2104 = vmatpush1.msra.mxu0 0.0
        %2105 = vmatprep.subr.mxu0 0.0
        %2106 = vmatpush1.msra.mxu0 0.0
        %2107 = vmatprep.subr.mxu0 0.0
        %2108 = vmatpush1.msra.mxu0 0.0
        %2109 = vmatprep.subr.mxu0 0.0
        %2110 = vmatpush1.msra.mxu0 0.0
        %2111 = vmatprep.subr.mxu0 0.0
        %2112 = vmatpush1.msra.mxu0 0.0
        %2113 = vmatprep.subr.mxu0 0.0
        %2114 = vmatpush1.msra.mxu0 0.0
        %2115 = vmatprep.subr.mxu0 0.0
        %2116 = vmatpush1.msra.mxu0 0.0
        %2117 = vmatprep.subr.mxu0 0.0
        %2118 = vmatpush1.msra.mxu0 0.0
        %2119 = vmatprep.subr.mxu0 0.0
        %2120 = vmatpush1.msra.mxu0 0.0
        %2121 = vmatprep.subr.mxu0 0.0
        %2122 = vmatpush1.msra.mxu0 0.0
        %2123 = vmatprep.subr.mxu0 0.0
        %2124 = vmatpush1.msra.mxu0 0.0
        %2125 = vmatprep.mubr.f32.mxu0 0.0
        %2126 = vmatmul.mubr.f32.gmra.mrb[0].mxu0 %v2059
        %v2127 = vpop.f32.mrb[0].mxu0
        %v2128 = vadd.f32 0.0, %v2127
        %v2129 = vpop.f32.mrb[0].mxu0
        %2130 = vdwg.mxu0
        %2131 = vrot.lane.b32.xlu0 %v805, 112
        %v2132 = vpop.permute.xlu0 %2131
        %2133 = vrot.lane.b32.xlu0 %v805, 80
        %v2134 = vpop.permute.xlu0 %2133
        %v2135 = vsel %vm814, %v2132, 0
        %v2137 = vsel %vm814, %v2134, 0
        %2139 = vmatprep.subr.mxu0 0.0
        %2140 = vmatpush1.xpose.msra.mxu0 %v2137
        %2141 = vmatprep.subr.mxu0 0.0
        %2142 = vmatpush1.xpose.msra.mxu0 0.0
        %2143 = vmatprep.subr.mxu0 0.0
        %2144 = vmatpush1.xpose.msra.mxu0 0.0
        %2145 = vmatprep.subr.mxu0 0.0
        %2146 = vmatpush1.xpose.msra.mxu0 0.0
        %2147 = vmatprep.subr.mxu0 0.0
        %2148 = vmatpush1.xpose.msra.mxu0 0.0
        %2149 = vmatprep.subr.mxu0 0.0
        %2150 = vmatpush1.xpose.msra.mxu0 0.0
        %2151 = vmatprep.subr.mxu0 0.0
        %2152 = vmatpush1.xpose.msra.mxu0 0.0
        %2153 = vmatprep.subr.mxu0 0.0
        %2154 = vmatpush1.xpose.msra.mxu0 0.0
        %2155 = vmatprep.subr.mxu0 0.0
        %2156 = vmatpush1.xpose.msra.mxu0 0.0
        %2157 = vmatprep.subr.mxu0 0.0
        %2158 = vmatpush1.xpose.msra.mxu0 0.0
        %2159 = vmatprep.subr.mxu0 0.0
        %2160 = vmatpush1.xpose.msra.mxu0 0.0
        %2161 = vmatprep.subr.mxu0 0.0
        %2162 = vmatpush1.xpose.msra.mxu0 0.0
        %2163 = vmatprep.subr.mxu0 0.0
        %2164 = vmatpush1.xpose.msra.mxu0 0.0
        %2165 = vmatprep.subr.mxu0 0.0
        %2166 = vmatpush1.xpose.msra.mxu0 0.0
        %2167 = vmatprep.subr.mxu0 0.0
        %2168 = vmatpush1.xpose.msra.mxu0 0.0
        %2169 = vmatprep.subr.mxu0 0.0
        %2170 = vmatpush1.xpose.msra.mxu0 0.0
        %2171 = vmatprep.subr.mxu0 0.0
        %2172 = vmatpush1.xpose.msra.mxu0 0.0
        %2173 = vmatprep.subr.mxu0 0.0
        %2174 = vmatpush1.xpose.msra.mxu0 0.0
        %2175 = vmatprep.subr.mxu0 0.0
        %2176 = vmatpush1.xpose.msra.mxu0 0.0
        %2177 = vmatprep.subr.mxu0 0.0
        %2178 = vmatpush1.xpose.msra.mxu0 0.0
        %2179 = vmatprep.subr.mxu0 0.0
        %2180 = vmatpush1.xpose.msra.mxu0 0.0
        %2181 = vmatprep.subr.mxu0 0.0
        %2182 = vmatpush1.xpose.msra.mxu0 0.0
        %2183 = vmatprep.subr.mxu0 0.0
        %2184 = vmatpush1.xpose.msra.mxu0 0.0
        %2185 = vmatprep.subr.mxu0 0.0
        %2186 = vmatpush1.xpose.msra.mxu0 0.0
        %2187 = vmatprep.subr.mxu0 0.0
        %2188 = vmatpush1.xpose.msra.mxu0 0.0
        %2189 = vmatprep.subr.mxu0 0.0
        %2190 = vmatpush1.xpose.msra.mxu0 0.0
        %2191 = vmatprep.subr.mxu0 0.0
        %2192 = vmatpush1.xpose.msra.mxu0 0.0
        %2193 = vmatprep.subr.mxu0 0.0
        %2194 = vmatpush1.xpose.msra.mxu0 0.0
        %2195 = vmatprep.subr.mxu0 0.0
        %2196 = vmatpush1.xpose.msra.mxu0 0.0
        %2197 = vmatprep.subr.mxu0 0.0
        %2198 = vmatpush1.xpose.msra.mxu0 0.0
        %2199 = vmatprep.subr.mxu0 0.0
        %2200 = vmatpush1.xpose.msra.mxu0 0.0
        %2201 = vmatprep.subr.mxu0 0.0
        %2202 = vmatpush1.xpose.msra.mxu0 0.0
        %2203 = vmatprep.mubr.f32.mxu0 0.0
        %2204 = vmatmul.mubr.f32.gmra.mrb[0].mxu0 %v2135
        %v2205 = vpop.f32.mrb[0].mxu0
        %v2206 = vadd.f32 0.0, %v2205
        %v2207 = vpop.f32.mrb[0].mxu0
        %2208 = vdwg.mxu0
        %2209 = vrot.lane.b32.xlu0 %v808, 112
        %v2210 = vpop.permute.xlu0 %2209
        %2211 = vrot.lane.b32.xlu0 %v808, 80
        %v2212 = vpop.permute.xlu0 %2211
        %v2213 = vsel %vm814, %v2210, 0
        %v2215 = vsel %vm814, %v2212, 0
        %2217 = vmatprep.subr.mxu0 0.0
        %2218 = vmatpush1.xpose.msra.mxu0 %v2215
        %2219 = vmatprep.subr.mxu0 0.0
        %2220 = vmatpush1.xpose.msra.mxu0 0.0
        %2221 = vmatprep.subr.mxu0 0.0
        %2222 = vmatpush1.xpose.msra.mxu0 0.0
        %2223 = vmatprep.subr.mxu0 0.0
        %2224 = vmatpush1.xpose.msra.mxu0 0.0
        %2225 = vmatprep.subr.mxu0 0.0
        %2226 = vmatpush1.xpose.msra.mxu0 0.0
        %2227 = vmatprep.subr.mxu0 0.0
        %2228 = vmatpush1.xpose.msra.mxu0 0.0
        %2229 = vmatprep.subr.mxu0 0.0
        %2230 = vmatpush1.xpose.msra.mxu0 0.0
        %2231 = vmatprep.subr.mxu0 0.0
        %2232 = vmatpush1.xpose.msra.mxu0 0.0
        %2233 = vmatprep.subr.mxu0 0.0
        %2234 = vmatpush1.xpose.msra.mxu0 0.0
        %2235 = vmatprep.subr.mxu0 0.0
        %2236 = vmatpush1.xpose.msra.mxu0 0.0
        %2237 = vmatprep.subr.mxu0 0.0
        %2238 = vmatpush1.xpose.msra.mxu0 0.0
        %2239 = vmatprep.subr.mxu0 0.0
        %2240 = vmatpush1.xpose.msra.mxu0 0.0
        %2241 = vmatprep.subr.mxu0 0.0
        %2242 = vmatpush1.xpose.msra.mxu0 0.0
        %2243 = vmatprep.subr.mxu0 0.0
        %2244 = vmatpush1.xpose.msra.mxu0 0.0
        %2245 = vmatprep.subr.mxu0 0.0
        %2246 = vmatpush1.xpose.msra.mxu0 0.0
        %2247 = vmatprep.subr.mxu0 0.0
        %2248 = vmatpush1.xpose.msra.mxu0 0.0
        %2249 = vmatprep.subr.mxu0 0.0
        %2250 = vmatpush1.xpose.msra.mxu0 0.0
        %2251 = vmatprep.subr.mxu0 0.0
        %2252 = vmatpush1.xpose.msra.mxu0 0.0
        %2253 = vmatprep.subr.mxu0 0.0
        %2254 = vmatpush1.xpose.msra.mxu0 0.0
        %2255 = vmatprep.subr.mxu0 0.0
        %2256 = vmatpush1.xpose.msra.mxu0 0.0
        %2257 = vmatprep.subr.mxu0 0.0
        %2258 = vmatpush1.xpose.msra.mxu0 0.0
        %2259 = vmatprep.subr.mxu0 0.0
        %2260 = vmatpush1.xpose.msra.mxu0 0.0
        %2261 = vmatprep.subr.mxu0 0.0
        %2262 = vmatpush1.xpose.msra.mxu0 0.0
        %2263 = vmatprep.subr.mxu0 0.0
        %2264 = vmatpush1.xpose.msra.mxu0 0.0
        %2265 = vmatprep.subr.mxu0 0.0
        %2266 = vmatpush1.xpose.msra.mxu0 0.0
        %2267 = vmatprep.subr.mxu0 0.0
        %2268 = vmatpush1.xpose.msra.mxu0 0.0
        %2269 = vmatprep.subr.mxu0 0.0
        %2270 = vmatpush1.xpose.msra.mxu0 0.0
        %2271 = vmatprep.subr.mxu0 0.0
        %2272 = vmatpush1.xpose.msra.mxu0 0.0
        %2273 = vmatprep.subr.mxu0 0.0
        %2274 = vmatpush1.xpose.msra.mxu0 0.0
        %2275 = vmatprep.subr.mxu0 0.0
        %2276 = vmatpush1.xpose.msra.mxu0 0.0
        %2277 = vmatprep.subr.mxu0 0.0
        %2278 = vmatpush1.xpose.msra.mxu0 0.0
        %2279 = vmatprep.subr.mxu0 0.0
        %2280 = vmatpush1.xpose.msra.mxu0 0.0
        %2281 = vmatprep.mubr.f32.mxu0 0.0
        %2282 = vmatmul.mubr.f32.gmra.mrb[0].mxu0 %v2213
        %v2283 = vpop.f32.mrb[0].mxu0
        %v2284 = vadd.f32 0.0, %v2283
        %v2285 = vpop.f32.mrb[0].mxu0
        %2286 = vdwg.mxu0
        %v2287 = vsel %vm966, %v2206, -inf
        %2288 = vmax.xlane.f32.xlu0 %v2287
        %v2289 = vpop.xlane.xlu0 %2288
        %v2290 = vsel %vm966, %v2284, -inf
        %2291 = vmax.xlane.f32.xlu0 %v2290
        %v2292 = vpop.xlane.xlu0 %2291
        %v2293 = vsub.f32 %v2206, %v2289
        %v2294 = vsub.f32 %v2284, %v2292
        %v2295 = vmul.f32 %v2293, 1.442695
        %v2296 = vpow.pop %v2295
        %v2297 = vmul.f32 %v2294, 1.442695
        %v2298 = vpow.pop %v2297
        %v2299 = vsel %vm966, %v2296, 0.0
        %2300 = vadd.xlane.f32.xlu0 %v2299
        %v2301 = vpop.xlane.xlu0 %2300
        %v2302 = vsel %vm966, %v2298, 0.0
        %2303 = vadd.xlane.f32.xlu0 %v2302
        %v2304 = vpop.xlane.xlu0 %2303
        %v2305 = vrcp.pop %v2301
        %v2306 = vrcp.pop %v2304
        %v2307 = vmul.f32 %v2296, %v2305
        %v2308 = vmul.f32 %v2298, %v2306
        %2309 = vrot.lane.b32.xlu0 %v805, 48
        %v2310 = vpop.permute.xlu0 %2309
        %v2313 = vsel %vm966, %v2307, 0
        %2315 = vmatprep.subr.mxu0 0.0
        %2316 = vmatpush1.msra.mxu0 %v2310
        %2317 = vmatprep.subr.mxu0 0.0
        %2318 = vmatpush1.msra.mxu0 0.0
        %2319 = vmatprep.subr.mxu0 0.0
        %2320 = vmatpush1.msra.mxu0 0.0
        %2321 = vmatprep.subr.mxu0 0.0
        %2322 = vmatpush1.msra.mxu0 0.0
        %2323 = vmatprep.subr.mxu0 0.0
        %2324 = vmatpush1.msra.mxu0 0.0
        %2325 = vmatprep.subr.mxu0 0.0
        %2326 = vmatpush1.msra.mxu0 0.0
        %2327 = vmatprep.subr.mxu0 0.0
        %2328 = vmatpush1.msra.mxu0 0.0
        %2329 = vmatprep.subr.mxu0 0.0
        %2330 = vmatpush1.msra.mxu0 0.0
        %2331 = vmatprep.subr.mxu0 0.0
        %2332 = vmatpush1.msra.mxu0 0.0
        %2333 = vmatprep.subr.mxu0 0.0
        %2334 = vmatpush1.msra.mxu0 0.0
        %2335 = vmatprep.subr.mxu0 0.0
        %2336 = vmatpush1.msra.mxu0 0.0
        %2337 = vmatprep.subr.mxu0 0.0
        %2338 = vmatpush1.msra.mxu0 0.0
        %2339 = vmatprep.subr.mxu0 0.0
        %2340 = vmatpush1.msra.mxu0 0.0
        %2341 = vmatprep.subr.mxu0 0.0
        %2342 = vmatpush1.msra.mxu0 0.0
        %2343 = vmatprep.subr.mxu0 0.0
        %2344 = vmatpush1.msra.mxu0 0.0
        %2345 = vmatprep.subr.mxu0 0.0
        %2346 = vmatpush1.msra.mxu0 0.0
        %2347 = vmatprep.subr.mxu0 0.0
        %2348 = vmatpush1.msra.mxu0 0.0
        %2349 = vmatprep.subr.mxu0 0.0
        %2350 = vmatpush1.msra.mxu0 0.0
        %2351 = vmatprep.subr.mxu0 0.0
        %2352 = vmatpush1.msra.mxu0 0.0
        %2353 = vmatprep.subr.mxu0 0.0
        %2354 = vmatpush1.msra.mxu0 0.0
        %2355 = vmatprep.subr.mxu0 0.0
        %2356 = vmatpush1.msra.mxu0 0.0
        %2357 = vmatprep.subr.mxu0 0.0
        %2358 = vmatpush1.msra.mxu0 0.0
        %2359 = vmatprep.subr.mxu0 0.0
        %2360 = vmatpush1.msra.mxu0 0.0
        %2361 = vmatprep.subr.mxu0 0.0
        %2362 = vmatpush1.msra.mxu0 0.0
        %2363 = vmatprep.subr.mxu0 0.0
        %2364 = vmatpush1.msra.mxu0 0.0
        %2365 = vmatprep.subr.mxu0 0.0
        %2366 = vmatpush1.msra.mxu0 0.0
        %2367 = vmatprep.subr.mxu0 0.0
        %2368 = vmatpush1.msra.mxu0 0.0
        %2369 = vmatprep.subr.mxu0 0.0
        %2370 = vmatpush1.msra.mxu0 0.0
        %2371 = vmatprep.subr.mxu0 0.0
        %2372 = vmatpush1.msra.mxu0 0.0
        %2373 = vmatprep.subr.mxu0 0.0
        %2374 = vmatpush1.msra.mxu0 0.0
        %2375 = vmatprep.subr.mxu0 0.0
        %2376 = vmatpush1.msra.mxu0 0.0
        %2377 = vmatprep.subr.mxu0 0.0
        %2378 = vmatpush1.msra.mxu0 0.0
        %2379 = vmatprep.mubr.f32.mxu0 0.0
        %2380 = vmatmul.mubr.f32.gmra.mrb[0].mxu0 %v2313
        %v2381 = vpop.f32.mrb[0].mxu0
        %v2382 = vadd.f32 0.0, %v2381
        %v2383 = vpop.f32.mrb[0].mxu0
        %2384 = vdwg.mxu0
        %2385 = vrot.lane.b32.xlu0 %v808, 48
        %v2386 = vpop.permute.xlu0 %2385
        %v2389 = vsel %vm966, %v2308, 0
        %2391 = vmatprep.subr.mxu0 0.0
        %2392 = vmatpush1.msra.mxu0 %v2386
        %2393 = vmatprep.subr.mxu0 0.0
        %2394 = vmatpush1.msra.mxu0 0.0
        %2395 = vmatprep.subr.mxu0 0.0
        %2396 = vmatpush1.msra.mxu0 0.0
        %2397 = vmatprep.subr.mxu0 0.0
        %2398 = vmatpush1.msra.mxu0 0.0
        %2399 = vmatprep.subr.mxu0 0.0
        %2400 = vmatpush1.msra.mxu0 0.0
        %2401 = vmatprep.subr.mxu0 0.0
        %2402 = vmatpush1.msra.mxu0 0.0
        %2403 = vmatprep.subr.mxu0 0.0
        %2404 = vmatpush1.msra.mxu0 0.0
        %2405 = vmatprep.subr.mxu0 0.0
        %2406 = vmatpush1.msra.mxu0 0.0
        %2407 = vmatprep.subr.mxu0 0.0
        %2408 = vmatpush1.msra.mxu0 0.0
        %2409 = vmatprep.subr.mxu0 0.0
        %2410 = vmatpush1.msra.mxu0 0.0
        %2411 = vmatprep.subr.mxu0 0.0
        %2412 = vmatpush1.msra.mxu0 0.0
        %2413 = vmatprep.subr.mxu0 0.0
        %2414 = vmatpush1.msra.mxu0 0.0
        %2415 = vmatprep.subr.mxu0 0.0
        %2416 = vmatpush1.msra.mxu0 0.0
        %2417 = vmatprep.subr.mxu0 0.0
        %2418 = vmatpush1.msra.mxu0 0.0
        %2419 = vmatprep.subr.mxu0 0.0
        %2420 = vmatpush1.msra.mxu0 0.0
        %2421 = vmatprep.subr.mxu0 0.0
        %2422 = vmatpush1.msra.mxu0 0.0
        %2423 = vmatprep.subr.mxu0 0.0
        %2424 = vmatpush1.msra.mxu0 0.0
        %2425 = vmatprep.subr.mxu0 0.0
        %2426 = vmatpush1.msra.mxu0 0.0
        %2427 = vmatprep.subr.mxu0 0.0
        %2428 = vmatpush1.msra.mxu0 0.0
        %2429 = vmatprep.subr.mxu0 0.0
        %2430 = vmatpush1.msra.mxu0 0.0
        %2431 = vmatprep.subr.mxu0 0.0
        %2432 = vmatpush1.msra.mxu0 0.0
        %2433 = vmatprep.subr.mxu0 0.0
        %2434 = vmatpush1.msra.mxu0 0.0
        %2435 = vmatprep.subr.mxu0 0.0
        %2436 = vmatpush1.msra.mxu0 0.0
        %2437 = vmatprep.subr.mxu0 0.0
        %2438 = vmatpush1.msra.mxu0 0.0
        %2439 = vmatprep.subr.mxu0 0.0
        %2440 = vmatpush1.msra.mxu0 0.0
        %2441 = vmatprep.subr.mxu0 0.0
        %2442 = vmatpush1.msra.mxu0 0.0
        %2443 = vmatprep.subr.mxu0 0.0
        %2444 = vmatpush1.msra.mxu0 0.0
        %2445 = vmatprep.subr.mxu0 0.0
        %2446 = vmatpush1.msra.mxu0 0.0
        %2447 = vmatprep.subr.mxu0 0.0
        %2448 = vmatpush1.msra.mxu0 0.0
        %2449 = vmatprep.subr.mxu0 0.0
        %2450 = vmatpush1.msra.mxu0 0.0
        %2451 = vmatprep.subr.mxu0 0.0
        %2452 = vmatpush1.msra.mxu0 0.0
        %2453 = vmatprep.subr.mxu0 0.0
        %2454 = vmatpush1.msra.mxu0 0.0
        %2455 = vmatprep.mubr.f32.mxu0 0.0
        %2456 = vmatmul.mubr.f32.gmra.mrb[0].mxu0 %v2389
        %v2457 = vpop.f32.mrb[0].mxu0
        %v2458 = vadd.f32 0.0, %v2457
        %v2459 = vpop.f32.mrb[0].mxu0
        %2460 = vdwg.mxu0
        %2461 = vrot.lane.b32.xlu0 %v805, 108
        %v2462 = vpop.permute.xlu0 %2461
        %2463 = vrot.lane.b32.xlu0 %v805, 76
        %v2464 = vpop.permute.xlu0 %2463
        %v2465 = vsel %vm814, %v2462, 0
        %v2467 = vsel %vm814, %v2464, 0
        %2469 = vmatprep.subr.mxu0 0.0
        %2470 = vmatpush1.xpose.msra.mxu0 %v2467
        %2471 = vmatprep.subr.mxu0 0.0
        %2472 = vmatpush1.xpose.msra.mxu0 0.0
        %2473 = vmatprep.subr.mxu0 0.0
        %2474 = vmatpush1.xpose.msra.mxu0 0.0
        %2475 = vmatprep.subr.mxu0 0.0
        %2476 = vmatpush1.xpose.msra.mxu0 0.0
        %2477 = vmatprep.subr.mxu0 0.0
        %2478 = vmatpush1.xpose.msra.mxu0 0.0
        %2479 = vmatprep.subr.mxu0 0.0
        %2480 = vmatpush1.xpose.msra.mxu0 0.0
        %2481 = vmatprep.subr.mxu0 0.0
        %2482 = vmatpush1.xpose.msra.mxu0 0.0
        %2483 = vmatprep.subr.mxu0 0.0
        %2484 = vmatpush1.xpose.msra.mxu0 0.0
        %2485 = vmatprep.subr.mxu0 0.0
        %2486 = vmatpush1.xpose.msra.mxu0 0.0
        %2487 = vmatprep.subr.mxu0 0.0
        %2488 = vmatpush1.xpose.msra.mxu0 0.0
        %2489 = vmatprep.subr.mxu0 0.0
        %2490 = vmatpush1.xpose.msra.mxu0 0.0
        %2491 = vmatprep.subr.mxu0 0.0
        %2492 = vmatpush1.xpose.msra.mxu0 0.0
        %2493 = vmatprep.subr.mxu0 0.0
        %2494 = vmatpush1.xpose.msra.mxu0 0.0
        %2495 = vmatprep.subr.mxu0 0.0
        %2496 = vmatpush1.xpose.msra.mxu0 0.0
        %2497 = vmatprep.subr.mxu0 0.0
        %2498 = vmatpush1.xpose.msra.mxu0 0.0
        %2499 = vmatprep.subr.mxu0 0.0
        %2500 = vmatpush1.xpose.msra.mxu0 0.0
        %2501 = vmatprep.subr.mxu0 0.0
        %2502 = vmatpush1.xpose.msra.mxu0 0.0
        %2503 = vmatprep.subr.mxu0 0.0
        %2504 = vmatpush1.xpose.msra.mxu0 0.0
        %2505 = vmatprep.subr.mxu0 0.0
        %2506 = vmatpush1.xpose.msra.mxu0 0.0
        %2507 = vmatprep.subr.mxu0 0.0
        %2508 = vmatpush1.xpose.msra.mxu0 0.0
        %2509 = vmatprep.subr.mxu0 0.0
        %2510 = vmatpush1.xpose.msra.mxu0 0.0
        %2511 = vmatprep.subr.mxu0 0.0
        %2512 = vmatpush1.xpose.msra.mxu0 0.0
        %2513 = vmatprep.subr.mxu0 0.0
        %2514 = vmatpush1.xpose.msra.mxu0 0.0
        %2515 = vmatprep.subr.mxu0 0.0
        %2516 = vmatpush1.xpose.msra.mxu0 0.0
        %2517 = vmatprep.subr.mxu0 0.0
        %2518 = vmatpush1.xpose.msra.mxu0 0.0
        %2519 = vmatprep.subr.mxu0 0.0
        %2520 = vmatpush1.xpose.msra.mxu0 0.0
        %2521 = vmatprep.subr.mxu0 0.0
        %2522 = vmatpush1.xpose.msra.mxu0 0.0
        %2523 = vmatprep.subr.mxu0 0.0
        %2524 = vmatpush1.xpose.msra.mxu0 0.0
        %2525 = vmatprep.subr.mxu0 0.0
        %2526 = vmatpush1.xpose.msra.mxu0 0.0
        %2527 = vmatprep.subr.mxu0 0.0
        %2528 = vmatpush1.xpose.msra.mxu0 0.0
        %2529 = vmatprep.subr.mxu0 0.0
        %2530 = vmatpush1.xpose.msra.mxu0 0.0
        %2531 = vmatprep.subr.mxu0 0.0
        %2532 = vmatpush1.xpose.msra.mxu0 0.0
        %2533 = vmatprep.mubr.f32.mxu0 0.0
        %2534 = vmatmul.mubr.f32.gmra.mrb[0].mxu0 %v2465
        %v2535 = vpop.f32.mrb[0].mxu0
        %v2536 = vadd.f32 0.0, %v2535
        %v2537 = vpop.f32.mrb[0].mxu0
        %2538 = vdwg.mxu0
        %2539 = vrot.lane.b32.xlu0 %v808, 108
        %v2540 = vpop.permute.xlu0 %2539
        %2541 = vrot.lane.b32.xlu0 %v808, 76
        %v2542 = vpop.permute.xlu0 %2541
        %v2543 = vsel %vm814, %v2540, 0
        %v2545 = vsel %vm814, %v2542, 0
        %2547 = vmatprep.subr.mxu0 0.0
        %2548 = vmatpush1.xpose.msra.mxu0 %v2545
        %2549 = vmatprep.subr.mxu0 0.0
        %2550 = vmatpush1.xpose.msra.mxu0 0.0
        %2551 = vmatprep.subr.mxu0 0.0
        %2552 = vmatpush1.xpose.msra.mxu0 0.0
        %2553 = vmatprep.subr.mxu0 0.0
        %2554 = vmatpush1.xpose.msra.mxu0 0.0
        %2555 = vmatprep.subr.mxu0 0.0
        %2556 = vmatpush1.xpose.msra.mxu0 0.0
        %2557 = vmatprep.subr.mxu0 0.0
        %2558 = vmatpush1.xpose.msra.mxu0 0.0
        %2559 = vmatprep.subr.mxu0 0.0
        %2560 = vmatpush1.xpose.msra.mxu0 0.0
        %2561 = vmatprep.subr.mxu0 0.0
        %2562 = vmatpush1.xpose.msra.mxu0 0.0
        %2563 = vmatprep.subr.mxu0 0.0
        %2564 = vmatpush1.xpose.msra.mxu0 0.0
        %2565 = vmatprep.subr.mxu0 0.0
        %2566 = vmatpush1.xpose.msra.mxu0 0.0
        %2567 = vmatprep.subr.mxu0 0.0
        %2568 = vmatpush1.xpose.msra.mxu0 0.0
        %2569 = vmatprep.subr.mxu0 0.0
        %2570 = vmatpush1.xpose.msra.mxu0 0.0
        %2571 = vmatprep.subr.mxu0 0.0
        %2572 = vmatpush1.xpose.msra.mxu0 0.0
        %2573 = vmatprep.subr.mxu0 0.0
        %2574 = vmatpush1.xpose.msra.mxu0 0.0
        %2575 = vmatprep.subr.mxu0 0.0
        %2576 = vmatpush1.xpose.msra.mxu0 0.0
        %2577 = vmatprep.subr.mxu0 0.0
        %2578 = vmatpush1.xpose.msra.mxu0 0.0
        %2579 = vmatprep.subr.mxu0 0.0
        %2580 = vmatpush1.xpose.msra.mxu0 0.0
        %2581 = vmatprep.subr.mxu0 0.0
        %2582 = vmatpush1.xpose.msra.mxu0 0.0
        %2583 = vmatprep.subr.mxu0 0.0
        %2584 = vmatpush1.xpose.msra.mxu0 0.0
        %2585 = vmatprep.subr.mxu0 0.0
        %2586 = vmatpush1.xpose.msra.mxu0 0.0
        %2587 = vmatprep.subr.mxu0 0.0
        %2588 = vmatpush1.xpose.msra.mxu0 0.0
        %2589 = vmatprep.subr.mxu0 0.0
        %2590 = vmatpush1.xpose.msra.mxu0 0.0
        %2591 = vmatprep.subr.mxu0 0.0
        %2592 = vmatpush1.xpose.msra.mxu0 0.0
        %2593 = vmatprep.subr.mxu0 0.0
        %2594 = vmatpush1.xpose.msra.mxu0 0.0
        %2595 = vmatprep.subr.mxu0 0.0
        %2596 = vmatpush1.xpose.msra.mxu0 0.0
        %2597 = vmatprep.subr.mxu0 0.0
        %2598 = vmatpush1.xpose.msra.mxu0 0.0
        %2599 = vmatprep.subr.mxu0 0.0
        %2600 = vmatpush1.xpose.msra.mxu0 0.0
        %2601 = vmatprep.subr.mxu0 0.0
        %2602 = vmatpush1.xpose.msra.mxu0 0.0
        %2603 = vmatprep.subr.mxu0 0.0
        %2604 = vmatpush1.xpose.msra.mxu0 0.0
        %2605 = vmatprep.subr.mxu0 0.0
        %2606 = vmatpush1.xpose.msra.mxu0 0.0
        %2607 = vmatprep.subr.mxu0 0.0
        %2608 = vmatpush1.xpose.msra.mxu0 0.0
        %2609 = vmatprep.subr.mxu0 0.0
        %2610 = vmatpush1.xpose.msra.mxu0 0.0
        %2611 = vmatprep.mubr.f32.mxu0 0.0
        %2612 = vmatmul.mubr.f32.gmra.mrb[0].mxu0 %v2543
        %v2613 = vpop.f32.mrb[0].mxu0
        %v2614 = vadd.f32 0.0, %v2613
        %v2615 = vpop.f32.mrb[0].mxu0
        %2616 = vdwg.mxu0
        %v2617 = vsel %vm966, %v2536, -inf
        %2618 = vmax.xlane.f32.xlu0 %v2617
        %v2619 = vpop.xlane.xlu0 %2618
        %v2620 = vsel %vm966, %v2614, -inf
        %2621 = vmax.xlane.f32.xlu0 %v2620
        %v2622 = vpop.xlane.xlu0 %2621
        %v2623 = vsub.f32 %v2536, %v2619
        %v2624 = vsub.f32 %v2614, %v2622
        %v2625 = vmul.f32 %v2623, 1.442695
        %v2626 = vpow.pop %v2625
        %v2627 = vmul.f32 %v2624, 1.442695
        %v2628 = vpow.pop %v2627
        %v2629 = vsel %vm966, %v2626, 0.0
        %2630 = vadd.xlane.f32.xlu0 %v2629
        %v2631 = vpop.xlane.xlu0 %2630
        %v2632 = vsel %vm966, %v2628, 0.0
        %2633 = vadd.xlane.f32.xlu0 %v2632
        %v2634 = vpop.xlane.xlu0 %2633
        %v2635 = vrcp.pop %v2631
        %v2636 = vrcp.pop %v2634
        %v2637 = vmul.f32 %v2626, %v2635
        %v2638 = vmul.f32 %v2628, %v2636
        %2639 = vrot.lane.b32.xlu0 %v805, 44
        %v2640 = vpop.permute.xlu0 %2639
        %v2643 = vsel %vm966, %v2637, 0
        %2645 = vmatprep.subr.mxu0 0.0
        %2646 = vmatpush1.msra.mxu0 %v2640
        %2647 = vmatprep.subr.mxu0 0.0
        %2648 = vmatpush1.msra.mxu0 0.0
        %2649 = vmatprep.subr.mxu0 0.0
        %2650 = vmatpush1.msra.mxu0 0.0
        %2651 = vmatprep.subr.mxu0 0.0
        %2652 = vmatpush1.msra.mxu0 0.0
        %2653 = vmatprep.subr.mxu0 0.0
        %2654 = vmatpush1.msra.mxu0 0.0
        %2655 = vmatprep.subr.mxu0 0.0
        %2656 = vmatpush1.msra.mxu0 0.0
        %2657 = vmatprep.subr.mxu0 0.0
        %2658 = vmatpush1.msra.mxu0 0.0
        %2659 = vmatprep.subr.mxu0 0.0
        %2660 = vmatpush1.msra.mxu0 0.0
        %2661 = vmatprep.subr.mxu0 0.0
        %2662 = vmatpush1.msra.mxu0 0.0
        %2663 = vmatprep.subr.mxu0 0.0
        %2664 = vmatpush1.msra.mxu0 0.0
        %2665 = vmatprep.subr.mxu0 0.0
        %2666 = vmatpush1.msra.mxu0 0.0
        %2667 = vmatprep.subr.mxu0 0.0
        %2668 = vmatpush1.msra.mxu0 0.0
        %2669 = vmatprep.subr.mxu0 0.0
        %2670 = vmatpush1.msra.mxu0 0.0
        %2671 = vmatprep.subr.mxu0 0.0
        %2672 = vmatpush1.msra.mxu0 0.0
        %2673 = vmatprep.subr.mxu0 0.0
        %2674 = vmatpush1.msra.mxu0 0.0
        %2675 = vmatprep.subr.mxu0 0.0
        %2676 = vmatpush1.msra.mxu0 0.0
        %2677 = vmatprep.subr.mxu0 0.0
        %2678 = vmatpush1.msra.mxu0 0.0
        %2679 = vmatprep.subr.mxu0 0.0
        %2680 = vmatpush1.msra.mxu0 0.0
        %2681 = vmatprep.subr.mxu0 0.0
        %2682 = vmatpush1.msra.mxu0 0.0
        %2683 = vmatprep.subr.mxu0 0.0
        %2684 = vmatpush1.msra.mxu0 0.0
        %2685 = vmatprep.subr.mxu0 0.0
        %2686 = vmatpush1.msra.mxu0 0.0
        %2687 = vmatprep.subr.mxu0 0.0
        %2688 = vmatpush1.msra.mxu0 0.0
        %2689 = vmatprep.subr.mxu0 0.0
        %2690 = vmatpush1.msra.mxu0 0.0
        %2691 = vmatprep.subr.mxu0 0.0
        %2692 = vmatpush1.msra.mxu0 0.0
        %2693 = vmatprep.subr.mxu0 0.0
        %2694 = vmatpush1.msra.mxu0 0.0
        %2695 = vmatprep.subr.mxu0 0.0
        %2696 = vmatpush1.msra.mxu0 0.0
        %2697 = vmatprep.subr.mxu0 0.0
        %2698 = vmatpush1.msra.mxu0 0.0
        %2699 = vmatprep.subr.mxu0 0.0
        %2700 = vmatpush1.msra.mxu0 0.0
        %2701 = vmatprep.subr.mxu0 0.0
        %2702 = vmatpush1.msra.mxu0 0.0
        %2703 = vmatprep.subr.mxu0 0.0
        %2704 = vmatpush1.msra.mxu0 0.0
        %2705 = vmatprep.subr.mxu0 0.0
        %2706 = vmatpush1.msra.mxu0 0.0
        %2707 = vmatprep.subr.mxu0 0.0
        %2708 = vmatpush1.msra.mxu0 0.0
        %2709 = vmatprep.mubr.f32.mxu0 0.0
        %2710 = vmatmul.mubr.f32.gmra.mrb[0].mxu0 %v2643
        %v2711 = vpop.f32.mrb[0].mxu0
        %v2712 = vadd.f32 0.0, %v2711
        %v2713 = vpop.f32.mrb[0].mxu0
        %2714 = vdwg.mxu0
        %2715 = vrot.lane.b32.xlu0 %v808, 44
        %v2716 = vpop.permute.xlu0 %2715
        %v2719 = vsel %vm966, %v2638, 0
        %2721 = vmatprep.subr.mxu0 0.0
        %2722 = vmatpush1.msra.mxu0 %v2716
        %2723 = vmatprep.subr.mxu0 0.0
        %2724 = vmatpush1.msra.mxu0 0.0
        %2725 = vmatprep.subr.mxu0 0.0
        %2726 = vmatpush1.msra.mxu0 0.0
        %2727 = vmatprep.subr.mxu0 0.0
        %2728 = vmatpush1.msra.mxu0 0.0
        %2729 = vmatprep.subr.mxu0 0.0
        %2730 = vmatpush1.msra.mxu0 0.0
        %2731 = vmatprep.subr.mxu0 0.0
        %2732 = vmatpush1.msra.mxu0 0.0
        %2733 = vmatprep.subr.mxu0 0.0
        %2734 = vmatpush1.msra.mxu0 0.0
        %2735 = vmatprep.subr.mxu0 0.0
        %2736 = vmatpush1.msra.mxu0 0.0
        %2737 = vmatprep.subr.mxu0 0.0
        %2738 = vmatpush1.msra.mxu0 0.0
        %2739 = vmatprep.subr.mxu0 0.0
        %2740 = vmatpush1.msra.mxu0 0.0
        %2741 = vmatprep.subr.mxu0 0.0
        %2742 = vmatpush1.msra.mxu0 0.0
        %2743 = vmatprep.subr.mxu0 0.0
        %2744 = vmatpush1.msra.mxu0 0.0
        %2745 = vmatprep.subr.mxu0 0.0
        %2746 = vmatpush1.msra.mxu0 0.0
        %2747 = vmatprep.subr.mxu0 0.0
        %2748 = vmatpush1.msra.mxu0 0.0
        %2749 = vmatprep.subr.mxu0 0.0
        %2750 = vmatpush1.msra.mxu0 0.0
        %2751 = vmatprep.subr.mxu0 0.0
        %2752 = vmatpush1.msra.mxu0 0.0
        %2753 = vmatprep.subr.mxu0 0.0
        %2754 = vmatpush1.msra.mxu0 0.0
        %2755 = vmatprep.subr.mxu0 0.0
        %2756 = vmatpush1.msra.mxu0 0.0
        %2757 = vmatprep.subr.mxu0 0.0
        %2758 = vmatpush1.msra.mxu0 0.0
        %2759 = vmatprep.subr.mxu0 0.0
        %2760 = vmatpush1.msra.mxu0 0.0
        %2761 = vmatprep.subr.mxu0 0.0
        %2762 = vmatpush1.msra.mxu0 0.0
        %2763 = vmatprep.subr.mxu0 0.0
        %2764 = vmatpush1.msra.mxu0 0.0
        %2765 = vmatprep.subr.mxu0 0.0
        %2766 = vmatpush1.msra.mxu0 0.0
        %2767 = vmatprep.subr.mxu0 0.0
        %2768 = vmatpush1.msra.mxu0 0.0
        %2769 = vmatprep.subr.mxu0 0.0
        %2770 = vmatpush1.msra.mxu0 0.0
        %2771 = vmatprep.subr.mxu0 0.0
        %2772 = vmatpush1.msra.mxu0 0.0
        %2773 = vmatprep.subr.mxu0 0.0
        %2774 = vmatpush1.msra.mxu0 0.0
        %2775 = vmatprep.subr.mxu0 0.0
        %2776 = vmatpush1.msra.mxu0 0.0
        %2777 = vmatprep.subr.mxu0 0.0
        %2778 = vmatpush1.msra.mxu0 0.0
        %2779 = vmatprep.subr.mxu0 0.0
        %2780 = vmatpush1.msra.mxu0 0.0
        %2781 = vmatprep.subr.mxu0 0.0
        %2782 = vmatpush1.msra.mxu0 0.0
        %2783 = vmatprep.subr.mxu0 0.0
        %2784 = vmatpush1.msra.mxu0 0.0
        %2785 = vmatprep.mubr.f32.mxu0 0.0
        %2786 = vmatmul.mubr.f32.gmra.mrb[0].mxu0 %v2719
        %v2787 = vpop.f32.mrb[0].mxu0
        %v2788 = vadd.f32 0.0, %v2787
        %v2789 = vpop.f32.mrb[0].mxu0
        %2790 = vdwg.mxu0
        %2791 = vrot.lane.b32.xlu0 %v805, 104
        %v2792 = vpop.permute.xlu0 %2791
        %2793 = vrot.lane.b32.xlu0 %v805, 72
        %v2794 = vpop.permute.xlu0 %2793
        %v2795 = vsel %vm814, %v2792, 0
        %v2797 = vsel %vm814, %v2794, 0
        %2799 = vmatprep.subr.mxu0 0.0
        %2800 = vmatpush1.xpose.msra.mxu0 %v2797
        %2801 = vmatprep.subr.mxu0 0.0
        %2802 = vmatpush1.xpose.msra.mxu0 0.0
        %2803 = vmatprep.subr.mxu0 0.0
        %2804 = vmatpush1.xpose.msra.mxu0 0.0
        %2805 = vmatprep.subr.mxu0 0.0
        %2806 = vmatpush1.xpose.msra.mxu0 0.0
        %2807 = vmatprep.subr.mxu0 0.0
        %2808 = vmatpush1.xpose.msra.mxu0 0.0
        %2809 = vmatprep.subr.mxu0 0.0
        %2810 = vmatpush1.xpose.msra.mxu0 0.0
        %2811 = vmatprep.subr.mxu0 0.0
        %2812 = vmatpush1.xpose.msra.mxu0 0.0
        %2813 = vmatprep.subr.mxu0 0.0
        %2814 = vmatpush1.xpose.msra.mxu0 0.0
        %2815 = vmatprep.subr.mxu0 0.0
        %2816 = vmatpush1.xpose.msra.mxu0 0.0
        %2817 = vmatprep.subr.mxu0 0.0
        %2818 = vmatpush1.xpose.msra.mxu0 0.0
        %2819 = vmatprep.subr.mxu0 0.0
        %2820 = vmatpush1.xpose.msra.mxu0 0.0
        %2821 = vmatprep.subr.mxu0 0.0
        %2822 = vmatpush1.xpose.msra.mxu0 0.0
        %2823 = vmatprep.subr.mxu0 0.0
        %2824 = vmatpush1.xpose.msra.mxu0 0.0
        %2825 = vmatprep.subr.mxu0 0.0
        %2826 = vmatpush1.xpose.msra.mxu0 0.0
        %2827 = vmatprep.subr.mxu0 0.0
        %2828 = vmatpush1.xpose.msra.mxu0 0.0
        %2829 = vmatprep.subr.mxu0 0.0
        %2830 = vmatpush1.xpose.msra.mxu0 0.0
        %2831 = vmatprep.subr.mxu0 0.0
        %2832 = vmatpush1.xpose.msra.mxu0 0.0
        %2833 = vmatprep.subr.mxu0 0.0
        %2834 = vmatpush1.xpose.msra.mxu0 0.0
        %2835 = vmatprep.subr.mxu0 0.0
        %2836 = vmatpush1.xpose.msra.mxu0 0.0
        %2837 = vmatprep.subr.mxu0 0.0
        %2838 = vmatpush1.xpose.msra.mxu0 0.0
        %2839 = vmatprep.subr.mxu0 0.0
        %2840 = vmatpush1.xpose.msra.mxu0 0.0
        %2841 = vmatprep.subr.mxu0 0.0
        %2842 = vmatpush1.xpose.msra.mxu0 0.0
        %2843 = vmatprep.subr.mxu0 0.0
        %2844 = vmatpush1.xpose.msra.mxu0 0.0
        %2845 = vmatprep.subr.mxu0 0.0
        %2846 = vmatpush1.xpose.msra.mxu0 0.0
        %2847 = vmatprep.subr.mxu0 0.0
        %2848 = vmatpush1.xpose.msra.mxu0 0.0
        %2849 = vmatprep.subr.mxu0 0.0
        %2850 = vmatpush1.xpose.msra.mxu0 0.0
        %2851 = vmatprep.subr.mxu0 0.0
        %2852 = vmatpush1.xpose.msra.mxu0 0.0
        %2853 = vmatprep.subr.mxu0 0.0
        %2854 = vmatpush1.xpose.msra.mxu0 0.0
        %2855 = vmatprep.subr.mxu0 0.0
        %2856 = vmatpush1.xpose.msra.mxu0 0.0
        %2857 = vmatprep.subr.mxu0 0.0
        %2858 = vmatpush1.xpose.msra.mxu0 0.0
        %2859 = vmatprep.subr.mxu0 0.0
        %2860 = vmatpush1.xpose.msra.mxu0 0.0
        %2861 = vmatprep.subr.mxu0 0.0
        %2862 = vmatpush1.xpose.msra.mxu0 0.0
        %2863 = vmatprep.mubr.f32.mxu0 0.0
        %2864 = vmatmul.mubr.f32.gmra.mrb[0].mxu0 %v2795
        %v2865 = vpop.f32.mrb[0].mxu0
        %v2866 = vadd.f32 0.0, %v2865
        %v2867 = vpop.f32.mrb[0].mxu0
        %2868 = vdwg.mxu0
        %2869 = vrot.lane.b32.xlu0 %v808, 104
        %v2870 = vpop.permute.xlu0 %2869
        %2871 = vrot.lane.b32.xlu0 %v808, 72
        %v2872 = vpop.permute.xlu0 %2871
        %v2873 = vsel %vm814, %v2870, 0
        %v2875 = vsel %vm814, %v2872, 0
        %2877 = vmatprep.subr.mxu0 0.0
        %2878 = vmatpush1.xpose.msra.mxu0 %v2875
        %2879 = vmatprep.subr.mxu0 0.0
        %2880 = vmatpush1.xpose.msra.mxu0 0.0
        %2881 = vmatprep.subr.mxu0 0.0
        %2882 = vmatpush1.xpose.msra.mxu0 0.0
        %2883 = vmatprep.subr.mxu0 0.0
        %2884 = vmatpush1.xpose.msra.mxu0 0.0
        %2885 = vmatprep.subr.mxu0 0.0
        %2886 = vmatpush1.xpose.msra.mxu0 0.0
        %2887 = vmatprep.subr.mxu0 0.0
        %2888 = vmatpush1.xpose.msra.mxu0 0.0
        %2889 = vmatprep.subr.mxu0 0.0
        %2890 = vmatpush1.xpose.msra.mxu0 0.0
        %2891 = vmatprep.subr.mxu0 0.0
        %2892 = vmatpush1.xpose.msra.mxu0 0.0
        %2893 = vmatprep.subr.mxu0 0.0
        %2894 = vmatpush1.xpose.msra.mxu0 0.0
        %2895 = vmatprep.subr.mxu0 0.0
        %2896 = vmatpush1.xpose.msra.mxu0 0.0
        %2897 = vmatprep.subr.mxu0 0.0
        %2898 = vmatpush1.xpose.msra.mxu0 0.0
        %2899 = vmatprep.subr.mxu0 0.0
        %2900 = vmatpush1.xpose.msra.mxu0 0.0
        %2901 = vmatprep.subr.mxu0 0.0
        %2902 = vmatpush1.xpose.msra.mxu0 0.0
        %2903 = vmatprep.subr.mxu0 0.0
        %2904 = vmatpush1.xpose.msra.mxu0 0.0
        %2905 = vmatprep.subr.mxu0 0.0
        %2906 = vmatpush1.xpose.msra.mxu0 0.0
        %2907 = vmatprep.subr.mxu0 0.0
        %2908 = vmatpush1.xpose.msra.mxu0 0.0
        %2909 = vmatprep.subr.mxu0 0.0
        %2910 = vmatpush1.xpose.msra.mxu0 0.0
        %2911 = vmatprep.subr.mxu0 0.0
        %2912 = vmatpush1.xpose.msra.mxu0 0.0
        %2913 = vmatprep.subr.mxu0 0.0
        %2914 = vmatpush1.xpose.msra.mxu0 0.0
        %2915 = vmatprep.subr.mxu0 0.0
        %2916 = vmatpush1.xpose.msra.mxu0 0.0
        %2917 = vmatprep.subr.mxu0 0.0
        %2918 = vmatpush1.xpose.msra.mxu0 0.0
        %2919 = vmatprep.subr.mxu0 0.0
        %2920 = vmatpush1.xpose.msra.mxu0 0.0
        %2921 = vmatprep.subr.mxu0 0.0
        %2922 = vmatpush1.xpose.msra.mxu0 0.0
        %2923 = vmatprep.subr.mxu0 0.0
        %2924 = vmatpush1.xpose.msra.mxu0 0.0
        %2925 = vmatprep.subr.mxu0 0.0
        %2926 = vmatpush1.xpose.msra.mxu0 0.0
        %2927 = vmatprep.subr.mxu0 0.0
        %2928 = vmatpush1.xpose.msra.mxu0 0.0
        %2929 = vmatprep.subr.mxu0 0.0
        %2930 = vmatpush1.xpose.msra.mxu0 0.0
        %2931 = vmatprep.subr.mxu0 0.0
        %2932 = vmatpush1.xpose.msra.mxu0 0.0
        %2933 = vmatprep.subr.mxu0 0.0
        %2934 = vmatpush1.xpose.msra.mxu0 0.0
        %2935 = vmatprep.subr.mxu0 0.0
        %2936 = vmatpush1.xpose.msra.mxu0 0.0
        %2937 = vmatprep.subr.mxu0 0.0
        %2938 = vmatpush1.xpose.msra.mxu0 0.0
        %2939 = vmatprep.subr.mxu0 0.0
        %2940 = vmatpush1.xpose.msra.mxu0 0.0
        %2941 = vmatprep.mubr.f32.mxu0 0.0
        %2942 = vmatmul.mubr.f32.gmra.mrb[0].mxu0 %v2873
        %v2943 = vpop.f32.mrb[0].mxu0
        %v2944 = vadd.f32 0.0, %v2943
        %v2945 = vpop.f32.mrb[0].mxu0
        %2946 = vdwg.mxu0
        %v2947 = vsel %vm966, %v2866, -inf
        %2948 = vmax.xlane.f32.xlu0 %v2947
        %v2949 = vpop.xlane.xlu0 %2948
        %v2950 = vsel %vm966, %v2944, -inf
        %2951 = vmax.xlane.f32.xlu0 %v2950
        %v2952 = vpop.xlane.xlu0 %2951
        %v2953 = vsub.f32 %v2866, %v2949
        %v2954 = vsub.f32 %v2944, %v2952
        %v2955 = vmul.f32 %v2953, 1.442695
        %v2956 = vpow.pop %v2955
        %v2957 = vmul.f32 %v2954, 1.442695
        %v2958 = vpow.pop %v2957
        %v2959 = vsel %vm966, %v2956, 0.0
        %2960 = vadd.xlane.f32.xlu0 %v2959
        %v2961 = vpop.xlane.xlu0 %2960
        %v2962 = vsel %vm966, %v2958, 0.0
        %2963 = vadd.xlane.f32.xlu0 %v2962
        %v2964 = vpop.xlane.xlu0 %2963
        %v2965 = vrcp.pop %v2961
        %v2966 = vrcp.pop %v2964
        %v2967 = vmul.f32 %v2956, %v2965
        %v2968 = vmul.f32 %v2958, %v2966
        %2969 = vrot.lane.b32.xlu0 %v805, 40
        %v2970 = vpop.permute.xlu0 %2969
        %v2973 = vsel %vm966, %v2967, 0
        %2975 = vmatprep.subr.mxu0 0.0
        %2976 = vmatpush1.msra.mxu0 %v2970
        %2977 = vmatprep.subr.mxu0 0.0
        %2978 = vmatpush1.msra.mxu0 0.0
        %2979 = vmatprep.subr.mxu0 0.0
        %2980 = vmatpush1.msra.mxu0 0.0
        %2981 = vmatprep.subr.mxu0 0.0
        %2982 = vmatpush1.msra.mxu0 0.0
        %2983 = vmatprep.subr.mxu0 0.0
        %2984 = vmatpush1.msra.mxu0 0.0
        %2985 = vmatprep.subr.mxu0 0.0
        %2986 = vmatpush1.msra.mxu0 0.0
        %2987 = vmatprep.subr.mxu0 0.0
        %2988 = vmatpush1.msra.mxu0 0.0
        %2989 = vmatprep.subr.mxu0 0.0
        %2990 = vmatpush1.msra.mxu0 0.0
        %2991 = vmatprep.subr.mxu0 0.0
        %2992 = vmatpush1.msra.mxu0 0.0
        %2993 = vmatprep.subr.mxu0 0.0
        %2994 = vmatpush1.msra.mxu0 0.0
        %2995 = vmatprep.subr.mxu0 0.0
        %2996 = vmatpush1.msra.mxu0 0.0
        %2997 = vmatprep.subr.mxu0 0.0
        %2998 = vmatpush1.msra.mxu0 0.0
        %2999 = vmatprep.subr.mxu0 0.0
        %3000 = vmatpush1.msra.mxu0 0.0
        %3001 = vmatprep.subr.mxu0 0.0
        %3002 = vmatpush1.msra.mxu0 0.0
        %3003 = vmatprep.subr.mxu0 0.0
        %3004 = vmatpush1.msra.mxu0 0.0
        %3005 = vmatprep.subr.mxu0 0.0
        %3006 = vmatpush1.msra.mxu0 0.0
        %3007 = vmatprep.subr.mxu0 0.0
        %3008 = vmatpush1.msra.mxu0 0.0
        %3009 = vmatprep.subr.mxu0 0.0
        %3010 = vmatpush1.msra.mxu0 0.0
        %3011 = vmatprep.subr.mxu0 0.0
        %3012 = vmatpush1.msra.mxu0 0.0
        %3013 = vmatprep.subr.mxu0 0.0
        %3014 = vmatpush1.msra.mxu0 0.0
        %3015 = vmatprep.subr.mxu0 0.0
        %3016 = vmatpush1.msra.mxu0 0.0
        %3017 = vmatprep.subr.mxu0 0.0
        %3018 = vmatpush1.msra.mxu0 0.0
        %3019 = vmatprep.subr.mxu0 0.0
        %3020 = vmatpush1.msra.mxu0 0.0
        %3021 = vmatprep.subr.mxu0 0.0
        %3022 = vmatpush1.msra.mxu0 0.0
        %3023 = vmatprep.subr.mxu0 0.0
        %3024 = vmatpush1.msra.mxu0 0.0
        %3025 = vmatprep.subr.mxu0 0.0
        %3026 = vmatpush1.msra.mxu0 0.0
        %3027 = vmatprep.subr.mxu0 0.0
        %3028 = vmatpush1.msra.mxu0 0.0
        %3029 = vmatprep.subr.mxu0 0.0
        %3030 = vmatpush1.msra.mxu0 0.0
        %3031 = vmatprep.subr.mxu0 0.0
        %3032 = vmatpush1.msra.mxu0 0.0
        %3033 = vmatprep.subr.mxu0 0.0
        %3034 = vmatpush1.msra.mxu0 0.0
        %3035 = vmatprep.subr.mxu0 0.0
        %3036 = vmatpush1.msra.mxu0 0.0
        %3037 = vmatprep.subr.mxu0 0.0
        %3038 = vmatpush1.msra.mxu0 0.0
        %3039 = vmatprep.mubr.f32.mxu0 0.0
        %3040 = vmatmul.mubr.f32.gmra.mrb[0].mxu0 %v2973
        %v3041 = vpop.f32.mrb[0].mxu0
        %v3042 = vadd.f32 0.0, %v3041
        %v3043 = vpop.f32.mrb[0].mxu0
        %3044 = vdwg.mxu0
        %3045 = vrot.lane.b32.xlu0 %v808, 40
        %v3046 = vpop.permute.xlu0 %3045
        %v3049 = vsel %vm966, %v2968, 0
        %3051 = vmatprep.subr.mxu0 0.0
        %3052 = vmatpush1.msra.mxu0 %v3046
        %3053 = vmatprep.subr.mxu0 0.0
        %3054 = vmatpush1.msra.mxu0 0.0
        %3055 = vmatprep.subr.mxu0 0.0
        %3056 = vmatpush1.msra.mxu0 0.0
        %3057 = vmatprep.subr.mxu0 0.0
        %3058 = vmatpush1.msra.mxu0 0.0
        %3059 = vmatprep.subr.mxu0 0.0
        %3060 = vmatpush1.msra.mxu0 0.0
        %3061 = vmatprep.subr.mxu0 0.0
        %3062 = vmatpush1.msra.mxu0 0.0
        %3063 = vmatprep.subr.mxu0 0.0
        %3064 = vmatpush1.msra.mxu0 0.0
        %3065 = vmatprep.subr.mxu0 0.0
        %3066 = vmatpush1.msra.mxu0 0.0
        %3067 = vmatprep.subr.mxu0 0.0
        %3068 = vmatpush1.msra.mxu0 0.0
        %3069 = vmatprep.subr.mxu0 0.0
        %3070 = vmatpush1.msra.mxu0 0.0
        %3071 = vmatprep.subr.mxu0 0.0
        %3072 = vmatpush1.msra.mxu0 0.0
        %3073 = vmatprep.subr.mxu0 0.0
        %3074 = vmatpush1.msra.mxu0 0.0
        %3075 = vmatprep.subr.mxu0 0.0
        %3076 = vmatpush1.msra.mxu0 0.0
        %3077 = vmatprep.subr.mxu0 0.0
        %3078 = vmatpush1.msra.mxu0 0.0
        %3079 = vmatprep.subr.mxu0 0.0
        %3080 = vmatpush1.msra.mxu0 0.0
        %3081 = vmatprep.subr.mxu0 0.0
        %3082 = vmatpush1.msra.mxu0 0.0
        %3083 = vmatprep.subr.mxu0 0.0
        %3084 = vmatpush1.msra.mxu0 0.0
        %3085 = vmatprep.subr.mxu0 0.0
        %3086 = vmatpush1.msra.mxu0 0.0
        %3087 = vmatprep.subr.mxu0 0.0
        %3088 = vmatpush1.msra.mxu0 0.0
        %3089 = vmatprep.subr.mxu0 0.0
        %3090 = vmatpush1.msra.mxu0 0.0
        %3091 = vmatprep.subr.mxu0 0.0
        %3092 = vmatpush1.msra.mxu0 0.0
        %3093 = vmatprep.subr.mxu0 0.0
        %3094 = vmatpush1.msra.mxu0 0.0
        %3095 = vmatprep.subr.mxu0 0.0
        %3096 = vmatpush1.msra.mxu0 0.0
        %3097 = vmatprep.subr.mxu0 0.0
        %3098 = vmatpush1.msra.mxu0 0.0
        %3099 = vmatprep.subr.mxu0 0.0
        %3100 = vmatpush1.msra.mxu0 0.0
        %3101 = vmatprep.subr.mxu0 0.0
        %3102 = vmatpush1.msra.mxu0 0.0
        %3103 = vmatprep.subr.mxu0 0.0
        %3104 = vmatpush1.msra.mxu0 0.0
        %3105 = vmatprep.subr.mxu0 0.0
        %3106 = vmatpush1.msra.mxu0 0.0
        %3107 = vmatprep.subr.mxu0 0.0
        %3108 = vmatpush1.msra.mxu0 0.0
        %3109 = vmatprep.subr.mxu0 0.0
        %3110 = vmatpush1.msra.mxu0 0.0
        %3111 = vmatprep.subr.mxu0 0.0
        %3112 = vmatpush1.msra.mxu0 0.0
        %3113 = vmatprep.subr.mxu0 0.0
        %3114 = vmatpush1.msra.mxu0 0.0
        %3115 = vmatprep.mubr.f32.mxu0 0.0
        %3116 = vmatmul.mubr.f32.gmra.mrb[0].mxu0 %v3049
        %v3117 = vpop.f32.mrb[0].mxu0
        %v3118 = vadd.f32 0.0, %v3117
        %v3119 = vpop.f32.mrb[0].mxu0
        %3120 = vdwg.mxu0
        %3121 = vrot.lane.b32.xlu0 %v805, 100
        %v3122 = vpop.permute.xlu0 %3121
        %3123 = vrot.lane.b32.xlu0 %v805, 68
        %v3124 = vpop.permute.xlu0 %3123
        %v3125 = vsel %vm814, %v3122, 0
        %v3127 = vsel %vm814, %v3124, 0
        %3129 = vmatprep.subr.mxu0 0.0
        %3130 = vmatpush1.xpose.msra.mxu0 %v3127
        %3131 = vmatprep.subr.mxu0 0.0
        %3132 = vmatpush1.xpose.msra.mxu0 0.0
        %3133 = vmatprep.subr.mxu0 0.0
        %3134 = vmatpush1.xpose.msra.mxu0 0.0
        %3135 = vmatprep.subr.mxu0 0.0
        %3136 = vmatpush1.xpose.msra.mxu0 0.0
        %3137 = vmatprep.subr.mxu0 0.0
        %3138 = vmatpush1.xpose.msra.mxu0 0.0
        %3139 = vmatprep.subr.mxu0 0.0
        %3140 = vmatpush1.xpose.msra.mxu0 0.0
        %3141 = vmatprep.subr.mxu0 0.0
        %3142 = vmatpush1.xpose.msra.mxu0 0.0
        %3143 = vmatprep.subr.mxu0 0.0
        %3144 = vmatpush1.xpose.msra.mxu0 0.0
        %3145 = vmatprep.subr.mxu0 0.0
        %3146 = vmatpush1.xpose.msra.mxu0 0.0
        %3147 = vmatprep.subr.mxu0 0.0
        %3148 = vmatpush1.xpose.msra.mxu0 0.0
        %3149 = vmatprep.subr.mxu0 0.0
        %3150 = vmatpush1.xpose.msra.mxu0 0.0
        %3151 = vmatprep.subr.mxu0 0.0
        %3152 = vmatpush1.xpose.msra.mxu0 0.0
        %3153 = vmatprep.subr.mxu0 0.0
        %3154 = vmatpush1.xpose.msra.mxu0 0.0
        %3155 = vmatprep.subr.mxu0 0.0
        %3156 = vmatpush1.xpose.msra.mxu0 0.0
        %3157 = vmatprep.subr.mxu0 0.0
        %3158 = vmatpush1.xpose.msra.mxu0 0.0
        %3159 = vmatprep.subr.mxu0 0.0
        %3160 = vmatpush1.xpose.msra.mxu0 0.0
        %3161 = vmatprep.subr.mxu0 0.0
        %3162 = vmatpush1.xpose.msra.mxu0 0.0
        %3163 = vmatprep.subr.mxu0 0.0
        %3164 = vmatpush1.xpose.msra.mxu0 0.0
        %3165 = vmatprep.subr.mxu0 0.0
        %3166 = vmatpush1.xpose.msra.mxu0 0.0
        %3167 = vmatprep.subr.mxu0 0.0
        %3168 = vmatpush1.xpose.msra.mxu0 0.0
        %3169 = vmatprep.subr.mxu0 0.0
        %3170 = vmatpush1.xpose.msra.mxu0 0.0
        %3171 = vmatprep.subr.mxu0 0.0
        %3172 = vmatpush1.xpose.msra.mxu0 0.0
        %3173 = vmatprep.subr.mxu0 0.0
        %3174 = vmatpush1.xpose.msra.mxu0 0.0
        %3175 = vmatprep.subr.mxu0 0.0
        %3176 = vmatpush1.xpose.msra.mxu0 0.0
        %3177 = vmatprep.subr.mxu0 0.0
        %3178 = vmatpush1.xpose.msra.mxu0 0.0
        %3179 = vmatprep.subr.mxu0 0.0
        %3180 = vmatpush1.xpose.msra.mxu0 0.0
        %3181 = vmatprep.subr.mxu0 0.0
        %3182 = vmatpush1.xpose.msra.mxu0 0.0
        %3183 = vmatprep.subr.mxu0 0.0
        %3184 = vmatpush1.xpose.msra.mxu0 0.0
        %3185 = vmatprep.subr.mxu0 0.0
        %3186 = vmatpush1.xpose.msra.mxu0 0.0
        %3187 = vmatprep.subr.mxu0 0.0
        %3188 = vmatpush1.xpose.msra.mxu0 0.0
        %3189 = vmatprep.subr.mxu0 0.0
        %3190 = vmatpush1.xpose.msra.mxu0 0.0
        %3191 = vmatprep.subr.mxu0 0.0
        %3192 = vmatpush1.xpose.msra.mxu0 0.0
        %3193 = vmatprep.mubr.f32.mxu0 0.0
        %3194 = vmatmul.mubr.f32.gmra.mrb[0].mxu0 %v3125
        %v3195 = vpop.f32.mrb[0].mxu0
        %v3196 = vadd.f32 0.0, %v3195
        %v3197 = vpop.f32.mrb[0].mxu0
        %3198 = vdwg.mxu0
        %3199 = vrot.lane.b32.xlu0 %v808, 100
        %v3200 = vpop.permute.xlu0 %3199
        %3201 = vrot.lane.b32.xlu0 %v808, 68
        %v3202 = vpop.permute.xlu0 %3201
        %v3203 = vsel %vm814, %v3200, 0
        %v3205 = vsel %vm814, %v3202, 0
        %3207 = vmatprep.subr.mxu0 0.0
        %3208 = vmatpush1.xpose.msra.mxu0 %v3205
        %3209 = vmatprep.subr.mxu0 0.0
        %3210 = vmatpush1.xpose.msra.mxu0 0.0
        %3211 = vmatprep.subr.mxu0 0.0
        %3212 = vmatpush1.xpose.msra.mxu0 0.0
        %3213 = vmatprep.subr.mxu0 0.0
        %3214 = vmatpush1.xpose.msra.mxu0 0.0
        %3215 = vmatprep.subr.mxu0 0.0
        %3216 = vmatpush1.xpose.msra.mxu0 0.0
        %3217 = vmatprep.subr.mxu0 0.0
        %3218 = vmatpush1.xpose.msra.mxu0 0.0
        %3219 = vmatprep.subr.mxu0 0.0
        %3220 = vmatpush1.xpose.msra.mxu0 0.0
        %3221 = vmatprep.subr.mxu0 0.0
        %3222 = vmatpush1.xpose.msra.mxu0 0.0
        %3223 = vmatprep.subr.mxu0 0.0
        %3224 = vmatpush1.xpose.msra.mxu0 0.0
        %3225 = vmatprep.subr.mxu0 0.0
        %3226 = vmatpush1.xpose.msra.mxu0 0.0
        %3227 = vmatprep.subr.mxu0 0.0
        %3228 = vmatpush1.xpose.msra.mxu0 0.0
        %3229 = vmatprep.subr.mxu0 0.0
        %3230 = vmatpush1.xpose.msra.mxu0 0.0
        %3231 = vmatprep.subr.mxu0 0.0
        %3232 = vmatpush1.xpose.msra.mxu0 0.0
        %3233 = vmatprep.subr.mxu0 0.0
        %3234 = vmatpush1.xpose.msra.mxu0 0.0
        %3235 = vmatprep.subr.mxu0 0.0
        %3236 = vmatpush1.xpose.msra.mxu0 0.0
        %3237 = vmatprep.subr.mxu0 0.0
        %3238 = vmatpush1.xpose.msra.mxu0 0.0
        %3239 = vmatprep.subr.mxu0 0.0
        %3240 = vmatpush1.xpose.msra.mxu0 0.0
        %3241 = vmatprep.subr.mxu0 0.0
        %3242 = vmatpush1.xpose.msra.mxu0 0.0
        %3243 = vmatprep.subr.mxu0 0.0
        %3244 = vmatpush1.xpose.msra.mxu0 0.0
        %3245 = vmatprep.subr.mxu0 0.0
        %3246 = vmatpush1.xpose.msra.mxu0 0.0
        %3247 = vmatprep.subr.mxu0 0.0
        %3248 = vmatpush1.xpose.msra.mxu0 0.0
        %3249 = vmatprep.subr.mxu0 0.0
        %3250 = vmatpush1.xpose.msra.mxu0 0.0
        %3251 = vmatprep.subr.mxu0 0.0
        %3252 = vmatpush1.xpose.msra.mxu0 0.0
        %3253 = vmatprep.subr.mxu0 0.0
        %3254 = vmatpush1.xpose.msra.mxu0 0.0
        %3255 = vmatprep.subr.mxu0 0.0
        %3256 = vmatpush1.xpose.msra.mxu0 0.0
        %3257 = vmatprep.subr.mxu0 0.0
        %3258 = vmatpush1.xpose.msra.mxu0 0.0
        %3259 = vmatprep.subr.mxu0 0.0
        %3260 = vmatpush1.xpose.msra.mxu0 0.0
        %3261 = vmatprep.subr.mxu0 0.0
        %3262 = vmatpush1.xpose.msra.mxu0 0.0
        %3263 = vmatprep.subr.mxu0 0.0
        %3264 = vmatpush1.xpose.msra.mxu0 0.0
        %3265 = vmatprep.subr.mxu0 0.0
        %3266 = vmatpush1.xpose.msra.mxu0 0.0
        %3267 = vmatprep.subr.mxu0 0.0
        %3268 = vmatpush1.xpose.msra.mxu0 0.0
        %3269 = vmatprep.subr.mxu0 0.0
        %3270 = vmatpush1.xpose.msra.mxu0 0.0
        %3271 = vmatprep.mubr.f32.mxu0 0.0
        %3272 = vmatmul.mubr.f32.gmra.mrb[0].mxu0 %v3203
        %v3273 = vpop.f32.mrb[0].mxu0
        %v3274 = vadd.f32 0.0, %v3273
        %v3275 = vpop.f32.mrb[0].mxu0
        %3276 = vdwg.mxu0
        %v3277 = vsel %vm966, %v3196, -inf
        %3278 = vmax.xlane.f32.xlu0 %v3277
        %v3279 = vpop.xlane.xlu0 %3278
        %v3280 = vsel %vm966, %v3274, -inf
        %3281 = vmax.xlane.f32.xlu0 %v3280
        %v3282 = vpop.xlane.xlu0 %3281
        %v3283 = vsub.f32 %v3196, %v3279
        %v3284 = vsub.f32 %v3274, %v3282
        %v3285 = vmul.f32 %v3283, 1.442695
        %v3286 = vpow.pop %v3285
        %v3287 = vmul.f32 %v3284, 1.442695
        %v3288 = vpow.pop %v3287
        %v3289 = vsel %vm966, %v3286, 0.0
        %3290 = vadd.xlane.f32.xlu0 %v3289
        %v3291 = vpop.xlane.xlu0 %3290
        %v3292 = vsel %vm966, %v3288, 0.0
        %3293 = vadd.xlane.f32.xlu0 %v3292
        %v3294 = vpop.xlane.xlu0 %3293
        %v3295 = vrcp.pop %v3291
        %v3296 = vrcp.pop %v3294
        %v3297 = vmul.f32 %v3286, %v3295
        %v3298 = vmul.f32 %v3288, %v3296
        %3299 = vrot.lane.b32.xlu0 %v805, 36
        %v3300 = vpop.permute.xlu0 %3299
        %v3303 = vsel %vm966, %v3297, 0
        %3305 = vmatprep.subr.mxu0 0.0
        %3306 = vmatpush1.msra.mxu0 %v3300
        %3307 = vmatprep.subr.mxu0 0.0
        %3308 = vmatpush1.msra.mxu0 0.0
        %3309 = vmatprep.subr.mxu0 0.0
        %3310 = vmatpush1.msra.mxu0 0.0
        %3311 = vmatprep.subr.mxu0 0.0
        %3312 = vmatpush1.msra.mxu0 0.0
        %3313 = vmatprep.subr.mxu0 0.0
        %3314 = vmatpush1.msra.mxu0 0.0
        %3315 = vmatprep.subr.mxu0 0.0
        %3316 = vmatpush1.msra.mxu0 0.0
        %3317 = vmatprep.subr.mxu0 0.0
        %3318 = vmatpush1.msra.mxu0 0.0
        %3319 = vmatprep.subr.mxu0 0.0
        %3320 = vmatpush1.msra.mxu0 0.0
        %3321 = vmatprep.subr.mxu0 0.0
        %3322 = vmatpush1.msra.mxu0 0.0
        %3323 = vmatprep.subr.mxu0 0.0
        %3324 = vmatpush1.msra.mxu0 0.0
        %3325 = vmatprep.subr.mxu0 0.0
        %3326 = vmatpush1.msra.mxu0 0.0
        %3327 = vmatprep.subr.mxu0 0.0
        %3328 = vmatpush1.msra.mxu0 0.0
        %3329 = vmatprep.subr.mxu0 0.0
        %3330 = vmatpush1.msra.mxu0 0.0
        %3331 = vmatprep.subr.mxu0 0.0
        %3332 = vmatpush1.msra.mxu0 0.0
        %3333 = vmatprep.subr.mxu0 0.0
        %3334 = vmatpush1.msra.mxu0 0.0
        %3335 = vmatprep.subr.mxu0 0.0
        %3336 = vmatpush1.msra.mxu0 0.0
        %3337 = vmatprep.subr.mxu0 0.0
        %3338 = vmatpush1.msra.mxu0 0.0
        %3339 = vmatprep.subr.mxu0 0.0
        %3340 = vmatpush1.msra.mxu0 0.0
        %3341 = vmatprep.subr.mxu0 0.0
        %3342 = vmatpush1.msra.mxu0 0.0
        %3343 = vmatprep.subr.mxu0 0.0
        %3344 = vmatpush1.msra.mxu0 0.0
        %3345 = vmatprep.subr.mxu0 0.0
        %3346 = vmatpush1.msra.mxu0 0.0
        %3347 = vmatprep.subr.mxu0 0.0
        %3348 = vmatpush1.msra.mxu0 0.0
        %3349 = vmatprep.subr.mxu0 0.0
        %3350 = vmatpush1.msra.mxu0 0.0
        %3351 = vmatprep.subr.mxu0 0.0
        %3352 = vmatpush1.msra.mxu0 0.0
        %3353 = vmatprep.subr.mxu0 0.0
        %3354 = vmatpush1.msra.mxu0 0.0
        %3355 = vmatprep.subr.mxu0 0.0
        %3356 = vmatpush1.msra.mxu0 0.0
        %3357 = vmatprep.subr.mxu0 0.0
        %3358 = vmatpush1.msra.mxu0 0.0
        %3359 = vmatprep.subr.mxu0 0.0
        %3360 = vmatpush1.msra.mxu0 0.0
        %3361 = vmatprep.subr.mxu0 0.0
        %3362 = vmatpush1.msra.mxu0 0.0
        %3363 = vmatprep.subr.mxu0 0.0
        %3364 = vmatpush1.msra.mxu0 0.0
        %3365 = vmatprep.subr.mxu0 0.0
        %3366 = vmatpush1.msra.mxu0 0.0
        %3367 = vmatprep.subr.mxu0 0.0
        %3368 = vmatpush1.msra.mxu0 0.0
        %3369 = vmatprep.mubr.f32.mxu0 0.0
        %3370 = vmatmul.mubr.f32.gmra.mrb[0].mxu0 %v3303
        %v3371 = vpop.f32.mrb[0].mxu0
        %v3372 = vadd.f32 0.0, %v3371
        %v3373 = vpop.f32.mrb[0].mxu0
        %3374 = vdwg.mxu0
        %3375 = vrot.lane.b32.xlu0 %v808, 36
        %v3376 = vpop.permute.xlu0 %3375
        %v3379 = vsel %vm966, %v3298, 0
        %3381 = vmatprep.subr.mxu0 0.0
        %3382 = vmatpush1.msra.mxu0 %v3376
        %3383 = vmatprep.subr.mxu0 0.0
        %3384 = vmatpush1.msra.mxu0 0.0
        %3385 = vmatprep.subr.mxu0 0.0
        %3386 = vmatpush1.msra.mxu0 0.0
        %3387 = vmatprep.subr.mxu0 0.0
        %3388 = vmatpush1.msra.mxu0 0.0
        %3389 = vmatprep.subr.mxu0 0.0
        %3390 = vmatpush1.msra.mxu0 0.0
        %3391 = vmatprep.subr.mxu0 0.0
        %3392 = vmatpush1.msra.mxu0 0.0
        %3393 = vmatprep.subr.mxu0 0.0
        %3394 = vmatpush1.msra.mxu0 0.0
        %3395 = vmatprep.subr.mxu0 0.0
        %3396 = vmatpush1.msra.mxu0 0.0
        %3397 = vmatprep.subr.mxu0 0.0
        %3398 = vmatpush1.msra.mxu0 0.0
        %3399 = vmatprep.subr.mxu0 0.0
        %3400 = vmatpush1.msra.mxu0 0.0
        %3401 = vmatprep.subr.mxu0 0.0
        %3402 = vmatpush1.msra.mxu0 0.0
        %3403 = vmatprep.subr.mxu0 0.0
        %3404 = vmatpush1.msra.mxu0 0.0
        %3405 = vmatprep.subr.mxu0 0.0
        %3406 = vmatpush1.msra.mxu0 0.0
        %3407 = vmatprep.subr.mxu0 0.0
        %3408 = vmatpush1.msra.mxu0 0.0
        %3409 = vmatprep.subr.mxu0 0.0
        %3410 = vmatpush1.msra.mxu0 0.0
        %3411 = vmatprep.subr.mxu0 0.0
        %3412 = vmatpush1.msra.mxu0 0.0
        %3413 = vmatprep.subr.mxu0 0.0
        %3414 = vmatpush1.msra.mxu0 0.0
        %3415 = vmatprep.subr.mxu0 0.0
        %3416 = vmatpush1.msra.mxu0 0.0
        %3417 = vmatprep.subr.mxu0 0.0
        %3418 = vmatpush1.msra.mxu0 0.0
        %3419 = vmatprep.subr.mxu0 0.0
        %3420 = vmatpush1.msra.mxu0 0.0
        %3421 = vmatprep.subr.mxu0 0.0
        %3422 = vmatpush1.msra.mxu0 0.0
        %3423 = vmatprep.subr.mxu0 0.0
        %3424 = vmatpush1.msra.mxu0 0.0
        %3425 = vmatprep.subr.mxu0 0.0
        %3426 = vmatpush1.msra.mxu0 0.0
        %3427 = vmatprep.subr.mxu0 0.0
        %3428 = vmatpush1.msra.mxu0 0.0
        %3429 = vmatprep.subr.mxu0 0.0
        %3430 = vmatpush1.msra.mxu0 0.0
        %3431 = vmatprep.subr.mxu0 0.0
        %3432 = vmatpush1.msra.mxu0 0.0
        %3433 = vmatprep.subr.mxu0 0.0
        %3434 = vmatpush1.msra.mxu0 0.0
        %3435 = vmatprep.subr.mxu0 0.0
        %3436 = vmatpush1.msra.mxu0 0.0
        %3437 = vmatprep.subr.mxu0 0.0
        %3438 = vmatpush1.msra.mxu0 0.0
        %3439 = vmatprep.subr.mxu0 0.0
        %3440 = vmatpush1.msra.mxu0 0.0
        %3441 = vmatprep.subr.mxu0 0.0
        %3442 = vmatpush1.msra.mxu0 0.0
        %3443 = vmatprep.subr.mxu0 0.0
        %3444 = vmatpush1.msra.mxu0 0.0
        %3445 = vmatprep.mubr.f32.mxu0 0.0
        %3446 = vmatmul.mubr.f32.gmra.mrb[0].mxu0 %v3379
        %v3447 = vpop.f32.mrb[0].mxu0
        %v3448 = vadd.f32 0.0, %v3447
        %v3449 = vpop.f32.mrb[0].mxu0
        %3450 = vdwg.mxu0
        %3453 = vrot.lane.b32.xlu0 %v1392, 4
        %v3454 = vpop.permute.xlu0 %3453
        %3455 = vrot.lane.b32.xlu0 %v1468, 4
        %v3456 = vpop.permute.xlu0 %3455
        %3461 = vrot.lane.b32.xlu0 %v1722, 8
        %v3462 = vpop.permute.xlu0 %3461
        %3463 = vrot.lane.b32.xlu0 %v1798, 8
        %v3464 = vpop.permute.xlu0 %3463
        %3469 = vrot.lane.b32.xlu0 %v2052, 12
        %v3470 = vpop.permute.xlu0 %3469
        %3471 = vrot.lane.b32.xlu0 %v2128, 12
        %v3472 = vpop.permute.xlu0 %3471
        %3477 = vrot.lane.b32.xlu0 %v2382, 16
        %v3478 = vpop.permute.xlu0 %3477
        %3479 = vrot.lane.b32.xlu0 %v2458, 16
        %v3480 = vpop.permute.xlu0 %3479
        %3485 = vrot.lane.b32.xlu0 %v2712, 20
        %v3486 = vpop.permute.xlu0 %3485
        %3487 = vrot.lane.b32.xlu0 %v2788, 20
        %v3488 = vpop.permute.xlu0 %3487
        %3493 = vrot.lane.b32.xlu0 %v3042, 24
        %v3494 = vpop.permute.xlu0 %3493
        %3495 = vrot.lane.b32.xlu0 %v3118, 24
        %v3496 = vpop.permute.xlu0 %3495
        %3501 = vrot.lane.b32.xlu0 %v3372, 28
        %v3502 = vpop.permute.xlu0 %3501
        %3503 = vrot.lane.b32.xlu0 %v3448, 28
        %v3504 = vpop.permute.xlu0 %3503
        %v3507 = vsel %vm814, %v1062, %v3454
        %v3508 = vsel %vm814, %v1138, %v3456
        %v3509 = vsel %vm966, %v3507, %v3462
        %v3510 = vsel %vm966, %v3508, %v3464
        %vm3511 = vcmask 97280
        %v3512 = vsel %vm3511, %v3509, %v3470
        %v3513 = vsel %vm3511, %v3510, %v3472
        %vm3514 = vcmask 130048
        %v3515 = vsel %vm3514, %v3512, %v3478
        %v3516 = vsel %vm3514, %v3513, %v3480
        %vm3517 = vcmask 162816
        %v3518 = vsel %vm3517, %v3515, %v3486
        %v3519 = vsel %vm3517, %v3516, %v3488
        %vm3520 = vcmask 195584
        %v3521 = vsel %vm3520, %v3518, %v3494
        %v3522 = vsel %vm3520, %v3519, %v3496
        %vm3523 = vcmask 228352
        %v3524 = vsel %vm3523, %v3521, %v3502
        %v3525 = vsel %vm3523, %v3522, %v3504
        %v3526 = vpack.c.bf16 %v3525, %v3524
        %v3527 = vld [vmem:[%s648] sm:$0xf]
        %v3528 = vld [vmem:[%s648 + $0x4] sm:$0xf]
        %v3529 = vld [vmem:[%s648 + $0x8] sm:$0xf]
        %v3530 = vld [vmem:[%s648 + $0xc] sm:$0xf]
        %v3531 = vld [vmem:[%s651] sm:$0x1]
        %v3533 = vlaneseq
        %v3534 = vshrl.u32 %v3533, 7
        %v3535 = vsub.s32 0, %v3534
        %v3536 = vrot.slane %v3531, %v3535
        %v3542 = vunpack.c.l.b16 %v3527
        %v3543 = vunpack.c.l.b16 %v3528
        %v3544 = vunpack.c.l.b16 %v3529
        %v3545 = vunpack.c.l.b16 %v3530
        %v3546 = vpack.c.b16 %v3543, %v3542
        %v3547 = vpack.c.b16 %v3545, %v3544
        %v3551 = vsel %vm699, %v3526, 0
        %3553 = vmatprep.subr.bf16.mxu0 0
        %3554 = vmatpush1.bf16.msra.mxu0 %v3546
        %3555 = vmatprep.subr.bf16.mxu0 0
        %3556 = vmatpush1.bf16.msra.mxu0 %v3547
        %3557 = vmatprep.subr.bf16.mxu0 0
        %3558 = vmatpush1.bf16.msra.mxu0 0
        %3559 = vmatprep.subr.bf16.mxu0 0
        %3560 = vmatpush1.bf16.msra.mxu0 0
        %3561 = vmatprep.subr.bf16.mxu0 0
        %3562 = vmatpush1.bf16.msra.mxu0 0
        %3563 = vmatprep.subr.bf16.mxu0 0
        %3564 = vmatpush1.bf16.msra.mxu0 0
        %3565 = vmatprep.subr.bf16.mxu0 0
        %3566 = vmatpush1.bf16.msra.mxu0 0
        %3567 = vmatprep.subr.bf16.mxu0 0
        %3568 = vmatpush1.bf16.msra.mxu0 0
        %3569 = vmatprep.subr.bf16.mxu0 0
        %3570 = vmatpush1.bf16.msra.mxu0 0
        %3571 = vmatprep.subr.bf16.mxu0 0
        %3572 = vmatpush1.bf16.msra.mxu0 0
        %3573 = vmatprep.subr.bf16.mxu0 0
        %3574 = vmatpush1.bf16.msra.mxu0 0
        %3575 = vmatprep.subr.bf16.mxu0 0
        %3576 = vmatpush1.bf16.msra.mxu0 0
        %3577 = vmatprep.subr.bf16.mxu0 0
        %3578 = vmatpush1.bf16.msra.mxu0 0
        %3579 = vmatprep.subr.bf16.mxu0 0
        %3580 = vmatpush1.bf16.msra.mxu0 0
        %3581 = vmatprep.subr.bf16.mxu0 0
        %3582 = vmatpush1.bf16.msra.mxu0 0
        %3583 = vmatprep.subr.bf16.mxu0 0
        %3584 = vmatpush1.bf16.msra.mxu0 0
        %3585 = vmatprep.mubr.bf16.mxu0 0
        %3586 = vmatmul.mubr.bf16.gmra.mrb[0].mxu0 %v3551
        %v3587 = vpop.f32.mrb[0].mxu0
        %v3588 = vadd.f32 %v3536, %v3587
        %v3589 = vpop.f32.mrb[0].mxu0
        %v3590 = vpop.f32.mrb[0].mxu0
        %v3591 = vadd.f32 %v3536, %v3590
        %v3592 = vpop.f32.mrb[0].mxu0
        %3593 = vdwg.mxu0
        %v3594 = vadd.f32 %v695, %v3588
        %v3595 = vadd.f32 %v696, %v3591
        %v3596 = vld [vmem:[%s676] sm:$0x1]
        %v3597 = vld [vmem:[%s679] sm:$0x1]
        %v3598 = vsel %vm699, %v3594, 0.0
        %3599 = vadd.xlane.f32.xlu0 %v3598
        %v3600 = vpop.xlane.xlu0 %3599
        %v3601 = vsel %vm699, %v3595, 0.0
        %3602 = vadd.xlane.f32.xlu0 %v3601
        %v3603 = vpop.xlane.xlu0 %3602
        %v3604 = vmul.f32 %v3600, %v706
        %v3605 = vmul.f32 %v3603, %v706
        %v3606 = vsub.f32 %v3594, %v3604
        %v3607 = vsub.f32 %v3595, %v3605
        %v3608 = vmul.f32 %v3606, %v3606
        %v3609 = vmul.f32 %v3607, %v3607
        %v3610 = vsel %vm699, %v3608, 0.0
        %3611 = vadd.xlane.f32.xlu0 %v3610
        %v3612 = vpop.xlane.xlu0 %3611
        %v3613 = vsel %vm699, %v3609, 0.0
        %3614 = vadd.xlane.f32.xlu0 %v3613
        %v3615 = vpop.xlane.xlu0 %3614
        %v3616 = vmul.f32 %v3612, %v706
        %v3617 = vmul.f32 %v3615, %v706
        %v3618 = vadd.f32 %v3616, 1e-05
        %v3619 = vadd.f32 %v3617, 1e-05
        %v3620 = vrsqrt.pop %v3618
        %v3621 = vrsqrt.pop %v3619
        %v3622 = vmul.f32 %v3606, %v3620
        %v3623 = vmul.f32 %v3607, %v3621
        %v3625 = vlaneseq
        %v3626 = vshrl.u32 %v3625, 7
        %v3627 = vsub.s32 0, %v3626
        %v3628 = vrot.slane %v3596, %v3627
        %v3630 = vmul.f32 %v3622, %v3628
        %v3631 = vmul.f32 %v3623, %v3628
        %v3633 = vlaneseq
        %v3634 = vshrl.u32 %v3633, 7
        %v3635 = vsub.s32 0, %v3634
        %v3636 = vrot.slane %v3597, %v3635
        %v3638 = vadd.f32 %v3630, %v3636
        %v3639 = vadd.f32 %v3631, %v3636
        %v3640 = vpack.c.bf16 %v3639, %v3638
        %v3641 = vld [vmem:[%s662] sm:$0xf]
        %v3642 = vld [vmem:[%s662 + $0x4] sm:$0xf]
        %v3643 = vld [vmem:[%s662 + $0x8] sm:$0xf]
        %v3644 = vld [vmem:[%s662 + $0xc] sm:$0xf]
        %v3645 = vld [vmem:[%s665] sm:$0x1]
        %v3647 = vlaneseq
        %v3648 = vshrl.u32 %v3647, 7
        %v3649 = vsub.s32 0, %v3648
        %v3650 = vrot.slane %v3645, %v3649
        %v3656 = vunpack.c.l.b16 %v3641
        %v3657 = vunpack.c.l.b16 %v3642
        %v3658 = vunpack.c.l.b16 %v3643
        %v3659 = vunpack.c.l.b16 %v3644
        %v3660 = vpack.c.b16 %v3657, %v3656
        %v3661 = vpack.c.b16 %v3659, %v3658
        %v3665 = vsel %vm699, %v3640, 0
        %3667 = vmatprep.subr.bf16.mxu0 0
        %3668 = vmatpush1.bf16.msra.mxu0 %v3660
        %3669 = vmatprep.subr.bf16.mxu0 0
        %3670 = vmatpush1.bf16.msra.mxu0 %v3661
        %3671 = vmatprep.subr.bf16.mxu0 0
        %3672 = vmatpush1.bf16.msra.mxu0 0
        %3673 = vmatprep.subr.bf16.mxu0 0
        %3674 = vmatpush1.bf16.msra.mxu0 0
        %3675 = vmatprep.subr.bf16.mxu0 0
        %3676 = vmatpush1.bf16.msra.mxu0 0
        %3677 = vmatprep.subr.bf16.mxu0 0
        %3678 = vmatpush1.bf16.msra.mxu0 0
        %3679 = vmatprep.subr.bf16.mxu0 0
        %3680 = vmatpush1.bf16.msra.mxu0 0
        %3681 = vmatprep.subr.bf16.mxu0 0
        %3682 = vmatpush1.bf16.msra.mxu0 0
        %3683 = vmatprep.subr.bf16.mxu0 0
        %3684 = vmatpush1.bf16.msra.mxu0 0
        %3685 = vmatprep.subr.bf16.mxu0 0
        %3686 = vmatpush1.bf16.msra.mxu0 0
        %3687 = vmatprep.subr.bf16.mxu0 0
        %3688 = vmatpush1.bf16.msra.mxu0 0
        %3689 = vmatprep.subr.bf16.mxu0 0
        %3690 = vmatpush1.bf16.msra.mxu0 0
        %3691 = vmatprep.subr.bf16.mxu0 0
        %3692 = vmatpush1.bf16.msra.mxu0 0
        %3693 = vmatprep.subr.bf16.mxu0 0
        %3694 = vmatpush1.bf16.msra.mxu0 0
        %3695 = vmatprep.subr.bf16.mxu0 0
        %3696 = vmatpush1.bf16.msra.mxu0 0
        %3697 = vmatprep.subr.bf16.mxu0 0
        %3698 = vmatpush1.bf16.msra.mxu0 0
        %3699 = vmatprep.mubr.bf16.mxu0 0
        %3700 = vmatmul.mubr.bf16.gmra.mrb[0].mxu0 %v3665
        %v3701 = vpop.f32.mrb[0].mxu0
        %v3702 = vadd.f32 %v3650, %v3701
        %v3703 = vpop.f32.mrb[0].mxu0
        %v3704 = vpop.f32.mrb[0].mxu0
        %v3705 = vadd.f32 %v3650, %v3704
        %v3706 = vpop.f32.mrb[0].mxu0
        %3707 = vdwg.mxu0
        %v3708 = vmul.f32 %v3702, %v3702
        %v3709 = vmul.f32 %v3705, %v3705
        %v3710 = vmul.f32 %v3702, %v3708
        %v3711 = vmul.f32 %v3705, %v3709
        %v3712 = vmul.f32 %v3710, 0.044715
        %v3713 = vmul.f32 %v3711, 0.044715
        %v3714 = vadd.f32 %v3702, %v3712
        %v3715 = vadd.f32 %v3705, %v3713
        %v3716 = vmul.f32 %v3714, 0.7978846
        %v3717 = vmul.f32 %v3715, 0.7978846
        %v3718 = vtanh.pop %v3716
        %v3719 = vtanh.pop %v3717
        %v3720 = vadd.f32 %v3718, 1.0
        %v3721 = vadd.f32 %v3719, 1.0
        %v3722 = vmul.f32 %v3720, 0.5
        %v3723 = vmul.f32 %v3721, 0.5
        %v3724 = vmul.f32 %v3702, %v3722
        %v3725 = vmul.f32 %v3705, %v3723
        %v3726 = vpack.c.bf16 %v3725, %v3724
        %v3727 = vld [vmem:[%s670] sm:$0xf]
        %v3728 = vld [vmem:[%s670 + $0x4] sm:$0xf]
        %v3729 = vld [vmem:[%s670 + $0x8] sm:$0xf]
        %v3730 = vld [vmem:[%s670 + $0xc] sm:$0xf]
        %v3731 = vld [vmem:[%s670 + $0x10] sm:$0xf]
        %v3732 = vld [vmem:[%s670 + $0x14] sm:$0xf]
        %v3733 = vld [vmem:[%s670 + $0x18] sm:$0xf]
        %v3734 = vld [vmem:[%s670 + $0x1c] sm:$0xf]
        %v3735 = vld [vmem:[%s673] sm:$0x1]
        %v3737 = vlaneseq
        %v3738 = vshrl.u32 %v3737, 7
        %v3739 = vsub.s32 0, %v3738
        %v3740 = vrot.slane %v3735, %v3739
        %v3750 = vunpack.c.l.b16 %v3727
        %v3751 = vunpack.c.l.b16 %v3728
        %v3752 = vunpack.c.l.b16 %v3729
        %v3753 = vunpack.c.l.b16 %v3730
        %v3754 = vunpack.c.l.b16 %v3731
        %v3755 = vunpack.c.l.b16 %v3732
        %v3756 = vunpack.c.l.b16 %v3733
        %v3757 = vunpack.c.l.b16 %v3734
        %v3758 = vpack.c.b16 %v3751, %v3750
        %v3759 = vpack.c.b16 %v3753, %v3752
        %v3760 = vpack.c.b16 %v3755, %v3754
        %v3761 = vpack.c.b16 %v3757, %v3756
        %vm3766 = vcmask 523264
        %v3768 = vsel %vm3766, %v3726, 0
        %3770 = vmatprep.subr.bf16.mxu0 0
        %3771 = vmatpush1.bf16.msra.mxu0 %v3758
        %3772 = vmatprep.subr.bf16.mxu0 0
        %3773 = vmatpush1.bf16.msra.mxu0 %v3759
        %3774 = vmatprep.subr.bf16.mxu0 0
        %3775 = vmatpush1.bf16.msra.mxu0 %v3760
        %3776 = vmatprep.subr.bf16.mxu0 0
        %3777 = vmatpush1.bf16.msra.mxu0 %v3761
        %3778 = vmatprep.subr.bf16.mxu0 0
        %3779 = vmatpush1.bf16.msra.mxu0 0
        %3780 = vmatprep.subr.bf16.mxu0 0
        %3781 = vmatpush1.bf16.msra.mxu0 0
        %3782 = vmatprep.subr.bf16.mxu0 0
        %3783 = vmatpush1.bf16.msra.mxu0 0
        %3784 = vmatprep.subr.bf16.mxu0 0
        %3785 = vmatpush1.bf16.msra.mxu0 0
        %3786 = vmatprep.subr.bf16.mxu0 0
        %3787 = vmatpush1.bf16.msra.mxu0 0
        %3788 = vmatprep.subr.bf16.mxu0 0
        %3789 = vmatpush1.bf16.msra.mxu0 0
        %3790 = vmatprep.subr.bf16.mxu0 0
        %3791 = vmatpush1.bf16.msra.mxu0 0
        %3792 = vmatprep.subr.bf16.mxu0 0
        %3793 = vmatpush1.bf16.msra.mxu0 0
        %3794 = vmatprep.subr.bf16.mxu0 0
        %3795 = vmatpush1.bf16.msra.mxu0 0
        %3796 = vmatprep.subr.bf16.mxu0 0
        %3797 = vmatpush1.bf16.msra.mxu0 0
        %3798 = vmatprep.subr.bf16.mxu0 0
        %3799 = vmatpush1.bf16.msra.mxu0 0
        %3800 = vmatprep.subr.bf16.mxu0 0
        %3801 = vmatpush1.bf16.msra.mxu0 0
        %3802 = vmatprep.mubr.bf16.mxu0 0
        %3803 = vmatmul.mubr.bf16.gmra.mrb[0].mxu0 %v3768
        %v3804 = vpop.f32.mrb[0].mxu0
        %v3805 = vadd.f32 %v3740, %v3804
        %v3806 = vpop.f32.mrb[0].mxu0
        %v3807 = vpop.f32.mrb[0].mxu0
        %v3808 = vadd.f32 %v3740, %v3807
        %v3809 = vpop.f32.mrb[0].mxu0
        %3810 = vdwg.mxu0
        %v3811 = vadd.f32 %v3594, %v3805
        %v3812 = vadd.f32 %v3595, %v3808
        %3813 = vst.msk [vmem:[#allocation2] sm:$0xff] %vm699, %v3811
        %3814 = vst.msk [vmem:[#allocation2 + $0x8] sm:$0xff] %vm699, %v3812
        %p3815 = scmp.eq.s32.totalorder %s28, 1
        // Predicated region
        $region89: #{bart_foreign_encoder_forward.1} parent=83 // pred_check
          %p3816 = pneg %p3815
        $region90: #{bart_foreign_encoder_forward.1} parent=83 // pred_check_branch
          %3818 = sbr.rel (%p3816) target = $region92
        $region91: #{bart_foreign_encoder_forward.1} parent=83 // pred_region
          %v3819 = vld [vmem:[%s14] sm:$0x1]
          %v3820 = vld [vmem:[%s15] sm:$0x1]
          %v3821 = vsel %vm699, %v3811, 0.0
          %3822 = vadd.xlane.f32.xlu0 %v3821
          %v3823 = vpop.xlane.xlu0 %3822
          %v3824 = vsel %vm699, %v3812, 0.0
          %3825 = vadd.xlane.f32.xlu0 %v3824
          %v3826 = vpop.xlane.xlu0 %3825
          %v3827 = vmul.f32 %v3823, %v706
          %v3828 = vmul.f32 %v3826, %v706
          %v3829 = vsub.f32 %v3811, %v3827
          %v3830 = vsub.f32 %v3812, %v3828
          %v3831 = vmul.f32 %v3829, %v3829
          %v3832 = vmul.f32 %v3830, %v3830
          %v3833 = vsel %vm699, %v3831, 0.0
          %3834 = vadd.xlane.f32.xlu0 %v3833
          %v3835 = vpop.xlane.xlu0 %3834
          %v3836 = vsel %vm699, %v3832, 0.0
          %3837 = vadd.xlane.f32.xlu0 %v3836
          %v3838 = vpop.xlane.xlu0 %3837
          %v3839 = vmul.f32 %v3835, %v706
          %v3840 = vmul.f32 %v3838, %v706
          %v3841 = vadd.f32 %v3839, 1e-05
          %v3842 = vadd.f32 %v3840, 1e-05
          %v3843 = vrsqrt.pop %v3841
          %v3844 = vrsqrt.pop %v3842
          %v3845 = vmul.f32 %v3829, %v3843
          %v3846 = vmul.f32 %v3830, %v3844
          %v3848 = vlaneseq
          %v3849 = vshrl.u32 %v3848, 7
          %v3850 = vsub.s32 0, %v3849
          %v3851 = vrot.slane %v3819, %v3850
          %v3853 = vmul.f32 %v3845, %v3851
          %v3854 = vmul.f32 %v3846, %v3851
          %v3856 = vlaneseq
          %v3857 = vshrl.u32 %v3856, 7
          %v3858 = vsub.s32 0, %v3857
          %v3859 = vrot.slane %v3820, %v3858
          %v3861 = vadd.f32 %v3853, %v3859
          %v3862 = vadd.f32 %v3854, %v3859
          %3863 = vst.msk [vmem:[#allocation3] sm:$0xff] %vm699, %v3861
          %3864 = vst.msk [vmem:[#allocation3 + $0x8] sm:$0xff] %vm699, %v3862
        $region92: #{bart_foreign_encoder_forward.1} parent=83 // pred_fallthru
          _
        // Predicated region
        $region93: #{bart_foreign_encoder_forward.1} parent=83 // pred_check
          %p3865 = pneg %p437
        $region94: #{bart_foreign_encoder_forward.1} parent=83 // pred_check_branch
          %3867 = sbr.rel (%p3865) target = $region96
        $region95: #{bart_foreign_encoder_forward.1} parent=83 // pred_region
          %s3869 = ssub.s32 256, 256
          %3870 = vsyncadd [#allocation4], %s3869
          %s3871 = sshll.u32 [#allocation3], 4
          %s3872 = int_to_ptr.vmem [resolvable:$true] %s3871
          %3877 = dma.vmem_to_hbm [thread:$0]  %s3872, 256, %s16, [#allocation4], 128, 128, 8
        $region96: #{bart_foreign_encoder_forward.1} parent=83 // pred_fallthru
          _
        // Predicated region
        $region97: #{bart_foreign_encoder_forward.1} parent=83 // pred_check
          %p3878 = pneg %p437
        $region98: #{bart_foreign_encoder_forward.1} parent=83 // pred_check_branch
          %3880 = sbr.rel (%p3878) target = $region100
        $region99: #{bart_foreign_encoder_forward.1} parent=83 // pred_region
          %3881 = dma.done [#allocation4], 256
        $region100: #{bart_foreign_encoder_forward.1} parent=83 // pred_fallthru
          _
      $region84: #{bart_foreign_encoder_forward.1} parent=5 // pred_fallthru
        _
      %p3882 = scmp.le.s32.totalorder 2, %s23
      // Predicated region
      $region101: #{bart_foreign_encoder_forward.1} parent=5 // pred_check
        %p3883 = pneg %p3882
      $region102: #{bart_foreign_encoder_forward.1} parent=5 // pred_check_branch
        %3885 = sbr.rel (%p3883) target = $region104
      $region103: #{bart_foreign_encoder_forward.1} parent=5 // pred_region
        %s3886 = ssub.s32 %s23, 2
      $region104: #{bart_foreign_encoder_forward.1} parent=5 // pred_fallthru
        _
    $region6: #{bart_foreign_encoder_forward.1} parent=1 // loop_footer
      %s27 = sadd.s32 1, %s23
    $region7: #{bart_foreign_encoder_forward.1} parent=1 // loop_footer_branch
      %22 = sbr.rel target = $region3
    $region8: #{bart_foreign_encoder_forward.1} parent=1 // loop_exit
      _
    %3887 = vsyncpa [#allocation4], 1
    %s3888 = scalar_lea.sflag [#allocation4], 1
    %3889 = vsyncpa %s3888, 1

</llo_original>
